<compile_context>
chip_gen: v7x
topology: tpu7x:2x2x1
jax: 0.10.0
libtpu: 0.0.40
codegen_flags: <defaults>
</compile_context>

<pallas_src>
import functools

import jax
import jax.numpy as jnp
from jax import lax
from jax.experimental import pallas as pl
from jax.experimental.pallas import tpu as pltpu


# ------------------------------- utilities --------------------------------- #

def _round_up(x, m):
    return ((x + m - 1) // m) * m


def _vmem_limit_bytes():
    # ~3/4 of physical VMEM, capped at 96 MiB (v5e/v6e: 128 MiB -> 96 MiB,
    # v7x: 64 MiB -> 48 MiB).  Falls back to the 32 MiB default.
    try:
        phys = int(pltpu.get_tpu_info().vmem_capacity_bytes)
        if phys <= 0:
            raise ValueError("bad vmem size")
        return min(phys * 3 // 4, 96 * 1024 * 1024)
    except Exception:
        return 32 * 1024 * 1024


_VMEM_LIMIT = _vmem_limit_bytes()


def _pick_row_tile(H, W, max_rows):
    """Largest TH <= max_rows that divides H with (TH*W) % 8 == 0, else H."""
    for th in range(min(max_rows, H), 0, -1):
        if H % th == 0 and (th * W) % 8 == 0:
            return th
    return H


# ----------------------------- Pallas kernels ------------------------------ #

def _stage1_kernel(x_ref, s1_ref, b1_ref, w1_ref, s2_ref, b2_ref, o_ref):
    """o = relu( relu(x*s1+b1) @ W1 * s2 + b2 )  (bn1+relu+conv1x1+bn2+relu).

    W1 columns / s2 / b2 beyond the true `planes` are zero, so padded output
    channels are exactly 0 after the ReLU.
    """
    h = jnp.maximum(x_ref[...] * s1_ref[...] + b1_ref[...], 0.0)
    acc = jnp.dot(h.astype(w1_ref.dtype), w1_ref[...],
                  preferred_element_type=jnp.float32)
    o_ref[...] = jnp.maximum(acc * s2_ref[...] + b2_ref[...], 0.0).astype(o_ref.dtype)


def _stage2_kernel(a2_ref, w2_ref, s3_ref, b3_ref, w3_ref, res_ref, o_ref,
                   xb_ref, *, H, W, TH):
    """3x3 conv as ONE K=9*Cp matmul on a halo'd row tile, then bn3+relu,
    1x1 conv (W3) and residual add.

    a2_ref  : [1, H*W, Cp]        whole image (bf16), resident across row tiles
    w2_ref  : [9*Cp, Cp]          tap-concatenated conv2 weights
    res_ref : [1, TH*W, Cin]      unpadded residual rows for this tile (f32)
    o_ref   : [1, TH*W, Cout]     output rows for this tile
    xb_ref  : [(TH+3)*(W+2), Cp]  scratch: zero-padded halo'd tile, flattened
    """
    th = pl.program_id(1)
    Wp = W + 2
    Cp = a2_ref.shape[-1]

    # ---- build the zero-padded halo'd row tile in VMEM (no HBM pad glue) ----
    xb_ref[...] = jnp.zeros_like(xb_ref)
    for r in range(TH + 2):                           # static unroll
        src = jnp.clip(th * TH - 1 + r, 0, H - 1)     # clamped halo row index
        start = src * W
        if W % 8 == 0:
            start = pl.multiple_of(start, 8)
        xb_ref[pl.ds(r * Wp + 1, W), :] = a2_ref[0, pl.ds(start, W), :]

    # image-boundary rows must be exactly zero (the clamped copy wrote data)
    @pl.when(th == 0)
    def _():
        xb_ref[0:Wp, :] = jnp.zeros((Wp, Cp), xb_ref.dtype)

    @pl.when(th == pl.num_programs(1) - 1)
    def _():
        xb_ref[(TH + 1) * Wp:(TH + 2) * Wp, :] = jnp.zeros((Wp, Cp), xb_ref.dtype)

    # ---- 3x3 conv: 9 shifted flat views concatenated -> one K=9*Cp matmul ----
    P = TH * Wp
    taps = []
    for t in range(9):
        kh, kw = divmod(t, 3)
        off = kh * Wp + kw
        taps.append(xb_ref[off:off + P, :])
    big = jnp.concatenate(taps, axis=-1)                         # [P, 9*Cp]
    acc = jnp.dot(big, w2_ref[...], preferred_element_type=jnp.float32)

    # ---- drop the 2 garbage columns per row before bn3 / conv3 ----
    valid = jnp.concatenate([acc[r * Wp:r * Wp + W, :] for r in range(TH)],
                            axis=0)                              # [TH*W, Cp]
    h3 = jnp.maximum(valid * s3_ref[...] + b3_ref[...], 0.0)
    out = jnp.dot(h3.astype(w3_ref.dtype), w3_ref[...],
                  preferred_element_type=jnp.float32)
    out = out + res_ref[0].astype(jnp.float32)
    o_ref[0] = out.astype(o_ref.dtype)


# --------------------------- pallas_call wrappers --------------------------- #

def _stage1(x2d, s1, b1, w1, s2, b2, *, tm):
    M, Cin = x2d.shape
    Cp = w1.shape[1]
    tm_eff = min(tm, _round_up(M, 8))
    grid = (pl.cdiv(M, tm_eff),)
    cost = pl.CostEstimate(
        flops=int(2 * M * Cin * Cp),
        transcendentals=0,
        bytes_accessed=int(M * Cin * 4 + M * Cp * 2 + Cin * Cp * 2
                           + 2 * (Cin + Cp) * 4))
    return pl.pallas_call(
        _stage1_kernel,
        out_shape=jax.ShapeDtypeStruct((M, Cp), jnp.bfloat16),
        grid=grid,
        in_specs=[pl.BlockSpec((tm_eff, Cin), lambda i: (i, 0)),
                  pl.BlockSpec((1, Cin), lambda i: (0, 0)),
                  pl.BlockSpec((1, Cin), lambda i: (0, 0)),
                  pl.BlockSpec((Cin, Cp), lambda i: (0, 0)),
                  pl.BlockSpec((1, Cp), lambda i: (0, 0)),
                  pl.BlockSpec((1, Cp), lambda i: (0, 0))],
        out_specs=pl.BlockSpec((tm_eff, Cp), lambda i: (i, 0)),
        compiler_params=pltpu.CompilerParams(
            dimension_semantics=("parallel",),
            vmem_limit_bytes=_VMEM_LIMIT),
        cost_estimate=cost,
    )(x2d, s1, b1, w1, s2, b2)


def _stage2(a2, w2, s3, b3, w3, res, *, H, W, row_tile):
    N, _, Cp = a2.shape
    Cin = res.shape[-1]
    Cout = w3.shape[-1]
    TH = _pick_row_tile(H, W, row_tile)
    n_th = H // TH
    kernel = functools.partial(_stage2_kernel, H=H, W=W, TH=TH)
    cost = pl.CostEstimate(
        flops=int(2 * N * H * (W + 2) * (9 * Cp) * Cp
                  + 2 * N * H * W * Cp * Cout),
        transcendentals=0,
        bytes_accessed=int(N * H * W * (Cp * 2 + Cin * 4 + Cout * 4)
                           + 9 * Cp * Cp * 2 + Cp * Cout * 2))
    return pl.pallas_call(
        kernel,
        out_shape=jax.ShapeDtypeStruct((N, H * W, Cout), jnp.float32),
        grid=(N, n_th),
        in_specs=[pl.BlockSpec((1, H * W, Cp), lambda n, t: (n, 0, 0)),
                  pl.BlockSpec((9 * Cp, Cp), lambda n, t: (0, 0)),
                  pl.BlockSpec((1, Cp), lambda n, t: (0, 0)),
                  pl.BlockSpec((1, Cp), lambda n, t: (0, 0)),
                  pl.BlockSpec((Cp, Cout), lambda n, t: (0, 0)),
                  pl.BlockSpec((1, TH * W, Cin), lambda n, t: (n, t, 0))],
        out_specs=pl.BlockSpec((1, TH * W, Cout), lambda n, t: (n, t, 0)),
        scratch_shapes=[pltpu.VMEM(((TH + 3) * (W + 2), Cp), jnp.bfloat16)],
        compiler_params=pltpu.CompilerParams(
            dimension_semantics=("parallel", "parallel"),
            vmem_limit_bytes=_VMEM_LIMIT),
        cost_estimate=cost,
    )(a2, w2, s3, b3, w3, res)


# ------------------------------- param prep --------------------------------- #

def fold_bn(bn, eps=1e-5):
    # eval-mode BatchNorm2d folded to per-channel scale/shift
    w, b, mean, var = bn
    scale = w / jnp.sqrt(var + eps)
    shift = b - mean * scale
    return scale.astype(jnp.float32), shift.astype(jnp.float32)


def prepare_params(params, eps=1e-5, compute_dtype=jnp.bfloat16, lane=128):
    """One-time weight/BN prep: BN folding, weight reshapes, and zero-padding of
    the `planes` channel dimension up to a multiple of 128 lanes."""
    planes, inplanes = params["w1"].shape[:2]
    Cout = params["w3"].shape[0]
    Cp = _round_up(planes, lane)
    pad = Cp - planes

    s1, b1 = fold_bn(params["bn1"], eps)
    s2, b2 = fold_bn(params["bn2"], eps)
    s3, b3 = fold_bn(params["bn3"], eps)

    # conv1 1x1: (planes, inplanes, 1, 1) -> (inplanes, Cp) zero-padded columns
    w1 = jnp.pad(params["w1"].reshape(planes, inplanes).T, ((0, 0), (0, pad)))
    # padded bn2/bn3 scale & shift are 0 -> padded channels stay exactly 0
    s2 = jnp.pad(s2, (0, pad)); b2 = jnp.pad(b2, (0, pad))
    s3 = jnp.pad(s3, (0, pad)); b3 = jnp.pad(b3, (0, pad))
    # conv2 3x3: (O,I,3,3) -> (3,3,I,O) -> pad I,O to Cp -> (9*Cp, Cp)
    w2 = jnp.transpose(params["w2"], (2, 3, 1, 0))
    w2 = jnp.pad(w2, ((0, 0), (0, 0), (0, pad), (0, pad))).reshape(9 * Cp, Cp)
    # conv3 1x1: (4p, planes, 1, 1) -> (Cp, 4p) zero-padded rows
    w3 = jnp.pad(params["w3"].reshape(Cout, planes).T, ((0, pad), (0, 0)))

    return {
        "s1": s1.reshape(1, -1), "b1": b1.reshape(1, -1),
        "s2": s2.reshape(1, -1), "b2": b2.reshape(1, -1),
        "s3": s3.reshape(1, -1), "b3": b3.reshape(1, -1),
        "w1": w1.astype(compute_dtype),
        "w2": w2.astype(compute_dtype),
        "w3": w3.astype(compute_dtype),
    }


# --------------------------- Bottleneck forward ----------------------------- #

@functools.partial(jax.jit, static_argnames=("stride", "tm", "row_tile"))
def bottleneck_forward_nhwc(x_nhwc, prep, stride=1, tm=512, row_tile=8):
    """Pre-activation bottleneck, NHWC in / NHWC out; only metadata reshapes
    between the two pallas_calls (no pads / slices / transposes)."""
    assert stride == 1  # TODO(synk): stride>1 needs the downsample branch
    N, H, W, Cin = x_nhwc.shape
    Cp = prep["w1"].shape[1]
    Cout = prep["w3"].shape[1]
    assert Cin == Cout, "residual add requires inplanes == 4*planes (downsample=None)"

    x_nhwc = x_nhwc.astype(jnp.float32)
    x2d = x_nhwc.reshape(N * H * W, Cin)              # metadata-only reshape

    act2 = _stage1(x2d, prep["s1"], prep["b1"], prep["w1"],
                   prep["s2"], prep["b2"], tm=tm)     # [M, Cp] bf16, lane-dense
    a2 = act2.reshape(N, H * W, Cp)                   # metadata-only
    res = x_nhwc.reshape(N, H * W, Cin)               # metadata-only (unpadded)

    out = _stage2(a2, prep["w2"], prep["s3"], prep["b3"], prep["w3"], res,
                  H=H, W=W, row_tile=row_tile)        # [N, H*W, Cout] f32
    return out.reshape(N, H, W, Cout)                 # metadata-only


def bottleneck_forward_nchw(x_nchw, prep, stride=1, tm=512, row_tile=8):
    # PyTorch-layout adapter; in a full network keep NHWC end-to-end instead.
    x_nhwc = jnp.transpose(x_nchw, (0, 2, 3, 1))
    out = bottleneck_forward_nhwc(x_nhwc, prep, stride=stride,
                                  tm=tm, row_tile=row_tile)
    return jnp.transpose(out, (0, 3, 1, 2))


# ------------------------------- reference ---------------------------------- #

def reference_forward(x, params, stride=1, eps=1e-5):
    def bn(v, p):
        w, b, m, var = p
        inv = 1.0 / jnp.sqrt(var + eps)
        return ((v - m[None, :, None, None]) * inv[None, :, None, None]
                * w[None, :, None, None] + b[None, :, None, None])

    dn = ("NCHW", "OIHW", "NCHW")
    out = jax.nn.relu(bn(x, params["bn1"]))
    out = lax.conv_general_dilated(out, params["w1"], (1, 1), "VALID",
                                   dimension_numbers=dn)
    out = jax.nn.relu(bn(out, params["bn2"]))
    out = lax.conv_general_dilated(out, params["w2"], (stride, stride),
                                   ((1, 1), (1, 1)), dimension_numbers=dn)
    out = jax.nn.relu(bn(out, params["bn3"]))
    out = lax.conv_general_dilated(out, params["w3"], (1, 1), "VALID",
                                   dimension_numbers=dn)
    return out + x


# --------------------------------- main -------------------------------------- #

def make_params(key, inplanes, planes):
    ks = jax.random.split(key, 6)

    def bn_params(k, c):
        k1, k2, k3, k4 = jax.random.split(k, 4)
        weight = 1.0 + 0.1 * jax.random.normal(k1, (c,), jnp.float32)
        bias = 0.1 * jax.random.normal(k2, (c,), jnp.float32)
        mean = 0.1 * jax.random.normal(k3, (c,), jnp.float32)
        var = 1.0 + 0.1 * jnp.abs(jax.random.normal(k4, (c,), jnp.float32))
        return (weight, bias, mean, var)

    return {
        "bn1": bn_params(ks[0], inplanes),
        "w1": 0.1 * jax.random.normal(ks[1], (planes, inplanes, 1, 1), jnp.float32),
        "bn2": bn_params(ks[2], planes),
        "w2": 0.1 * jax.random.normal(ks[3], (planes, planes, 3, 3), jnp.float32),
        "bn3": bn_params(ks[4], planes),
        "w3": 0.1 * jax.random.normal(ks[5], (planes * 4, planes, 1, 1), jnp.float32),
    }


if __name__ == "__main__":
    key = jax.random.PRNGKey(0)
    k_x, k_p = jax.random.split(key)

    planes = 8
    inplanes = planes * 4            # expansion = 4, so residual add is valid
    N, H, W = 2, 16, 16
    stride = 1

    x_nchw = jax.random.normal(k_x, (N, inplanes, H, W), jnp.float32)
    params = make_params(k_p, inplanes, planes)
    prep = prepare_params(params)    # weight prep / BN folding / 128-lane padding

    # NHWC end-to-end path (layout conversion lives at the network boundary)
    x_nhwc = jnp.transpose(x_nchw, (0, 2, 3, 1))
    out_nhwc = bottleneck_forward_nhwc(x_nhwc, prep, stride=stride)
    out_nhwc = jax.block_until_ready(out_nhwc)

    ref = reference_forward(x_nchw, params, stride=stride)      # NCHW reference
    out_nchw = jnp.transpose(out_nhwc, (0, 3, 1, 2))
    assert out_nchw.shape == (N, planes * 4, H, W), out_nchw.shape
    # bf16 MXU inputs with f32 accumulation -> relaxed tolerance vs f32 reference
    err = float(jnp.max(jnp.abs(out_nchw - ref)))
    assert jnp.allclose(out_nchw, ref, atol=5e-2, rtol=5e-2), err

    print("KERNEL_OK")
</pallas_src>

<mosaic_0001>
module attributes {stable_mosaic.version = 11 : i64} {
  func.func @_stage2_kernel(%arg0: i32, %arg1: i32, %arg2: memref<1x256x128xbf16, #tpu.memory_space<vmem>>, %arg3: memref<1152x128xbf16, #tpu.memory_space<vmem>>, %arg4: memref<1x128xf32, #tpu.memory_space<vmem>>, %arg5: memref<1x128xf32, #tpu.memory_space<vmem>>, %arg6: memref<128x32xbf16, #tpu.memory_space<vmem>>, %arg7: memref<1x128x32xf32, #tpu.memory_space<vmem>>, %arg8: memref<1x128x32xf32, #tpu.memory_space<vmem>>, %arg9: memref<198x128xbf16, #tpu.memory_space<vmem>>) attributes {dimension_semantics = [#tpu.dimension_semantics<parallel>, #tpu.dimension_semantics<parallel>], iteration_bounds = array<i64: 2, 2>, scalar_prefetch = 0 : i64, scratch_operands = 1 : i64, tpu.core_type = #tpu.core_type<tc>, window_params = [{transform_indices = @transform_0, window_bounds = array<i64: 1, 256, 128>}, {pipeline_mode = #tpu.pipeline_mode<synchronous>, transform_indices = @transform_1, window_bounds = array<i64: 1152, 128>}, {pipeline_mode = #tpu.pipeline_mode<synchronous>, transform_indices = @transform_2, window_bounds = array<i64: 1, 128>}, {pipeline_mode = #tpu.pipeline_mode<synchronous>, transform_indices = @transform_3, window_bounds = array<i64: 1, 128>}, {pipeline_mode = #tpu.pipeline_mode<synchronous>, transform_indices = @transform_4, window_bounds = array<i64: 128, 32>}, {transform_indices = @transform_5, window_bounds = array<i64: 1, 128, 32>}, {transform_indices = @transform_6, window_bounds = array<i64: 1, 128, 32>}]} {
    %cst = arith.constant 0.000000e+00 : bf16
    %0 = vector.broadcast %cst : bf16 to vector<198x128xbf16>
    %c0 = arith.constant 0 : index
    %c0_0 = arith.constant 0 : index
    %1 = vector.load %arg9[%c0, %c0_0] : memref<198x128xbf16, #tpu.memory_space<vmem>>, vector<198x128xbf16>
    tpu.vector_store %arg9[%c0, %c0_0], %0 {strides = array<i32>} : memref<198x128xbf16, #tpu.memory_space<vmem>>, vector<198x128xbf16>,
    %c8_i32 = arith.constant 8 : i32
    %2 = arith.muli %arg1, %c8_i32 : i32
    %c1_i32 = arith.constant 1 : i32
    %3 = arith.subi %2, %c1_i32 : i32
    %c0_i32 = arith.constant 0 : i32
    %4 = arith.addi %3, %c0_i32 : i32
    %c0_i32_1 = arith.constant 0 : i32
    %c15_i32 = arith.constant 15 : i32
    %5 = arith.maxsi %c0_i32_1, %4 : i32
    %6 = arith.minsi %c15_i32, %5 : i32
    %c16_i32 = arith.constant 16 : i32
    %7 = arith.muli %6, %c16_i32 : i32
    %8 = tpu.assume_multiple %7, 8 : i32
    %c0_2 = arith.constant 0 : index
    %9 = arith.index_cast %8 : i32 to index
    %c0_3 = arith.constant 0 : index
    %10 = vector.load %arg2[%c0_2, %9, %c0_3] : memref<1x256x128xbf16, #tpu.memory_space<vmem>>, vector<1x16x128xbf16>
    %11 = vector.shape_cast %10 : vector<1x16x128xbf16> to vector<16x128xbf16>
    %c1 = arith.constant 1 : index
    %c0_4 = arith.constant 0 : index
    %12 = vector.load %arg9[%c1, %c0_4] : memref<198x128xbf16, #tpu.memory_space<vmem>>, vector<16x128xbf16>
    tpu.vector_store %arg9[%c1, %c0_4], %11 {strides = array<i32>} : memref<198x128xbf16, #tpu.memory_space<vmem>>, vector<16x128xbf16>,
    %c8_i32_5 = arith.constant 8 : i32
    %13 = arith.muli %arg1, %c8_i32_5 : i32
    %c1_i32_6 = arith.constant 1 : i32
    %14 = arith.subi %13, %c1_i32_6 : i32
    %c1_i32_7 = arith.constant 1 : i32
    %15 = arith.addi %14, %c1_i32_7 : i32
    %c0_i32_8 = arith.constant 0 : i32
    %c15_i32_9 = arith.constant 15 : i32
    %16 = arith.maxsi %c0_i32_8, %15 : i32
    %17 = arith.minsi %c15_i32_9, %16 : i32
    %c16_i32_10 = arith.constant 16 : i32
    %18 = arith.muli %17, %c16_i32_10 : i32
    %19 = tpu.assume_multiple %18, 8 : i32
    %c0_11 = arith.constant 0 : index
    %20 = arith.index_cast %19 : i32 to index
    %c0_12 = arith.constant 0 : index
    %21 = vector.load %arg2[%c0_11, %20, %c0_12] : memref<1x256x128xbf16, #tpu.memory_space<vmem>>, vector<1x16x128xbf16>
    %22 = vector.shape_cast %21 : vector<1x16x128xbf16> to vector<16x128xbf16>
    %c19 = arith.constant 19 : index
    %c0_13 = arith.constant 0 : index
    %23 = vector.load %arg9[%c19, %c0_13] : memref<198x128xbf16, #tpu.memory_space<vmem>>, vector<16x128xbf16>
    tpu.vector_store %arg9[%c19, %c0_13], %22 {strides = array<i32>} : memref<198x128xbf16, #tpu.memory_space<vmem>>, vector<16x128xbf16>,
    %c8_i32_14 = arith.constant 8 : i32
    %24 = arith.muli %arg1, %c8_i32_14 : i32
    %c1_i32_15 = arith.constant 1 : i32
    %25 = arith.subi %24, %c1_i32_15 : i32
    %c2_i32 = arith.constant 2 : i32
    %26 = arith.addi %25, %c2_i32 : i32
    %c0_i32_16 = arith.constant 0 : i32
    %c15_i32_17 = arith.constant 15 : i32
    %27 = arith.maxsi %c0_i32_16, %26 : i32
    %28 = arith.minsi %c15_i32_17, %27 : i32
    %c16_i32_18 = arith.constant 16 : i32
    %29 = arith.muli %28, %c16_i32_18 : i32
    %30 = tpu.assume_multiple %29, 8 : i32
    %c0_19 = arith.constant 0 : index
    %31 = arith.index_cast %30 : i32 to index
    %c0_20 = arith.constant 0 : index
    %32 = vector.load %arg2[%c0_19, %31, %c0_20] : memref<1x256x128xbf16, #tpu.memory_space<vmem>>, vector<1x16x128xbf16>
    %33 = vector.shape_cast %32 : vector<1x16x128xbf16> to vector<16x128xbf16>
    %c37 = arith.constant 37 : index
    %c0_21 = arith.constant 0 : index
    %34 = vector.load %arg9[%c37, %c0_21] : memref<198x128xbf16, #tpu.memory_space<vmem>>, vector<16x128xbf16>
    tpu.vector_store %arg9[%c37, %c0_21], %33 {strides = array<i32>} : memref<198x128xbf16, #tpu.memory_space<vmem>>, vector<16x128xbf16>,
    %c8_i32_22 = arith.constant 8 : i32
    %35 = arith.muli %arg1, %c8_i32_22 : i32
    %c1_i32_23 = arith.constant 1 : i32
    %36 = arith.subi %35, %c1_i32_23 : i32
    %c3_i32 = arith.constant 3 : i32
    %37 = arith.addi %36, %c3_i32 : i32
    %c0_i32_24 = arith.constant 0 : i32
    %c15_i32_25 = arith.constant 15 : i32
    %38 = arith.maxsi %c0_i32_24, %37 : i32
    %39 = arith.minsi %c15_i32_25, %38 : i32
    %c16_i32_26 = arith.constant 16 : i32
    %40 = arith.muli %39, %c16_i32_26 : i32
    %41 = tpu.assume_multiple %40, 8 : i32
    %c0_27 = arith.constant 0 : index
    %42 = arith.index_cast %41 : i32 to index
    %c0_28 = arith.constant 0 : index
    %43 = vector.load %arg2[%c0_27, %42, %c0_28] : memref<1x256x128xbf16, #tpu.memory_space<vmem>>, vector<1x16x128xbf16>
    %44 = vector.shape_cast %43 : vector<1x16x128xbf16> to vector<16x128xbf16>
    %c55 = arith.constant 55 : index
    %c0_29 = arith.constant 0 : index
    %45 = vector.load %arg9[%c55, %c0_29] : memref<198x128xbf16, #tpu.memory_space<vmem>>, vector<16x128xbf16>
    tpu.vector_store %arg9[%c55, %c0_29], %44 {strides = array<i32>} : memref<198x128xbf16, #tpu.memory_space<vmem>>, vector<16x128xbf16>,
    %c8_i32_30 = arith.constant 8 : i32
    %46 = arith.muli %arg1, %c8_i32_30 : i32
    %c1_i32_31 = arith.constant 1 : i32
    %47 = arith.subi %46, %c1_i32_31 : i32
    %c4_i32 = arith.constant 4 : i32
    %48 = arith.addi %47, %c4_i32 : i32
    %c0_i32_32 = arith.constant 0 : i32
    %c15_i32_33 = arith.constant 15 : i32
    %49 = arith.maxsi %c0_i32_32, %48 : i32
    %50 = arith.minsi %c15_i32_33, %49 : i32
    %c16_i32_34 = arith.constant 16 : i32
    %51 = arith.muli %50, %c16_i32_34 : i32
    %52 = tpu.assume_multiple %51, 8 : i32
    %c0_35 = arith.constant 0 : index
    %53 = arith.index_cast %52 : i32 to index
    %c0_36 = arith.constant 0 : index
    %54 = vector.load %arg2[%c0_35, %53, %c0_36] : memref<1x256x128xbf16, #tpu.memory_space<vmem>>, vector<1x16x128xbf16>
    %55 = vector.shape_cast %54 : vector<1x16x128xbf16> to vector<16x128xbf16>
    %c73 = arith.constant 73 : index
    %c0_37 = arith.constant 0 : index
    %56 = vector.load %arg9[%c73, %c0_37] : memref<198x128xbf16, #tpu.memory_space<vmem>>, vector<16x128xbf16>
    tpu.vector_store %arg9[%c73, %c0_37], %55 {strides = array<i32>} : memref<198x128xbf16, #tpu.memory_space<vmem>>, vector<16x128xbf16>,
    %c8_i32_38 = arith.constant 8 : i32
    %57 = arith.muli %arg1, %c8_i32_38 : i32
    %c1_i32_39 = arith.constant 1 : i32
    %58 = arith.subi %57, %c1_i32_39 : i32
    %c5_i32 = arith.constant 5 : i32
    %59 = arith.addi %58, %c5_i32 : i32
    %c0_i32_40 = arith.constant 0 : i32
    %c15_i32_41 = arith.constant 15 : i32
    %60 = arith.maxsi %c0_i32_40, %59 : i32
    %61 = arith.minsi %c15_i32_41, %60 : i32
    %c16_i32_42 = arith.constant 16 : i32
    %62 = arith.muli %61, %c16_i32_42 : i32
    %63 = tpu.assume_multiple %62, 8 : i32
    %c0_43 = arith.constant 0 : index
    %64 = arith.index_cast %63 : i32 to index
    %c0_44 = arith.constant 0 : index
    %65 = vector.load %arg2[%c0_43, %64, %c0_44] : memref<1x256x128xbf16, #tpu.memory_space<vmem>>, vector<1x16x128xbf16>
    %66 = vector.shape_cast %65 : vector<1x16x128xbf16> to vector<16x128xbf16>
    %c91 = arith.constant 91 : index
    %c0_45 = arith.constant 0 : index
    %67 = vector.load %arg9[%c91, %c0_45] : memref<198x128xbf16, #tpu.memory_space<vmem>>, vector<16x128xbf16>
    tpu.vector_store %arg9[%c91, %c0_45], %66 {strides = array<i32>} : memref<198x128xbf16, #tpu.memory_space<vmem>>, vector<16x128xbf16>,
    %c8_i32_46 = arith.constant 8 : i32
    %68 = arith.muli %arg1, %c8_i32_46 : i32
    %c1_i32_47 = arith.constant 1 : i32
    %69 = arith.subi %68, %c1_i32_47 : i32
    %c6_i32 = arith.constant 6 : i32
    %70 = arith.addi %69, %c6_i32 : i32
    %c0_i32_48 = arith.constant 0 : i32
    %c15_i32_49 = arith.constant 15 : i32
    %71 = arith.maxsi %c0_i32_48, %70 : i32
    %72 = arith.minsi %c15_i32_49, %71 : i32
    %c16_i32_50 = arith.constant 16 : i32
    %73 = arith.muli %72, %c16_i32_50 : i32
    %74 = tpu.assume_multiple %73, 8 : i32
    %c0_51 = arith.constant 0 : index
    %75 = arith.index_cast %74 : i32 to index
    %c0_52 = arith.constant 0 : index
    %76 = vector.load %arg2[%c0_51, %75, %c0_52] : memref<1x256x128xbf16, #tpu.memory_space<vmem>>, vector<1x16x128xbf16>
    %77 = vector.shape_cast %76 : vector<1x16x128xbf16> to vector<16x128xbf16>
    %c109 = arith.constant 109 : index
    %c0_53 = arith.constant 0 : index
    %78 = vector.load %arg9[%c109, %c0_53] : memref<198x128xbf16, #tpu.memory_space<vmem>>, vector<16x128xbf16>
    tpu.vector_store %arg9[%c109, %c0_53], %77 {strides = array<i32>} : memref<198x128xbf16, #tpu.memory_space<vmem>>, vector<16x128xbf16>,
    %c8_i32_54 = arith.constant 8 : i32
    %79 = arith.muli %arg1, %c8_i32_54 : i32
    %c1_i32_55 = arith.constant 1 : i32
    %80 = arith.subi %79, %c1_i32_55 : i32
    %c7_i32 = arith.constant 7 : i32
    %81 = arith.addi %80, %c7_i32 : i32
    %c0_i32_56 = arith.constant 0 : i32
    %c15_i32_57 = arith.constant 15 : i32
    %82 = arith.maxsi %c0_i32_56, %81 : i32
    %83 = arith.minsi %c15_i32_57, %82 : i32
    %c16_i32_58 = arith.constant 16 : i32
    %84 = arith.muli %83, %c16_i32_58 : i32
    %85 = tpu.assume_multiple %84, 8 : i32
    %c0_59 = arith.constant 0 : index
    %86 = arith.index_cast %85 : i32 to index
    %c0_60 = arith.constant 0 : index
    %87 = vector.load %arg2[%c0_59, %86, %c0_60] : memref<1x256x128xbf16, #tpu.memory_space<vmem>>, vector<1x16x128xbf16>
    %88 = vector.shape_cast %87 : vector<1x16x128xbf16> to vector<16x128xbf16>
    %c127 = arith.constant 127 : index
    %c0_61 = arith.constant 0 : index
    %89 = vector.load %arg9[%c127, %c0_61] : memref<198x128xbf16, #tpu.memory_space<vmem>>, vector<16x128xbf16>
    tpu.vector_store %arg9[%c127, %c0_61], %88 {strides = array<i32>} : memref<198x128xbf16, #tpu.memory_space<vmem>>, vector<16x128xbf16>,
    %c8_i32_62 = arith.constant 8 : i32
    %90 = arith.muli %arg1, %c8_i32_62 : i32
    %c1_i32_63 = arith.constant 1 : i32
    %91 = arith.subi %90, %c1_i32_63 : i32
    %c8_i32_64 = arith.constant 8 : i32
    %92 = arith.addi %91, %c8_i32_64 : i32
    %c0_i32_65 = arith.constant 0 : i32
    %c15_i32_66 = arith.constant 15 : i32
    %93 = arith.maxsi %c0_i32_65, %92 : i32
    %94 = arith.minsi %c15_i32_66, %93 : i32
    %c16_i32_67 = arith.constant 16 : i32
    %95 = arith.muli %94, %c16_i32_67 : i32
    %96 = tpu.assume_multiple %95, 8 : i32
    %c0_68 = arith.constant 0 : index
    %97 = arith.index_cast %96 : i32 to index
    %c0_69 = arith.constant 0 : index
    %98 = vector.load %arg2[%c0_68, %97, %c0_69] : memref<1x256x128xbf16, #tpu.memory_space<vmem>>, vector<1x16x128xbf16>
    %99 = vector.shape_cast %98 : vector<1x16x128xbf16> to vector<16x128xbf16>
    %c145 = arith.constant 145 : index
    %c0_70 = arith.constant 0 : index
    %100 = vector.load %arg9[%c145, %c0_70] : memref<198x128xbf16, #tpu.memory_space<vmem>>, vector<16x128xbf16>
    tpu.vector_store %arg9[%c145, %c0_70], %99 {strides = array<i32>} : memref<198x128xbf16, #tpu.memory_space<vmem>>, vector<16x128xbf16>,
    %c8_i32_71 = arith.constant 8 : i32
    %101 = arith.muli %arg1, %c8_i32_71 : i32
    %c1_i32_72 = arith.constant 1 : i32
    %102 = arith.subi %101, %c1_i32_72 : i32
    %c9_i32 = arith.constant 9 : i32
    %103 = arith.addi %102, %c9_i32 : i32
    %c0_i32_73 = arith.constant 0 : i32
    %c15_i32_74 = arith.constant 15 : i32
    %104 = arith.maxsi %c0_i32_73, %103 : i32
    %105 = arith.minsi %c15_i32_74, %104 : i32
    %c16_i32_75 = arith.constant 16 : i32
    %106 = arith.muli %105, %c16_i32_75 : i32
    %107 = tpu.assume_multiple %106, 8 : i32
    %c0_76 = arith.constant 0 : index
    %108 = arith.index_cast %107 : i32 to index
    %c0_77 = arith.constant 0 : index
    %109 = vector.load %arg2[%c0_76, %108, %c0_77] : memref<1x256x128xbf16, #tpu.memory_space<vmem>>, vector<1x16x128xbf16>
    %110 = vector.shape_cast %109 : vector<1x16x128xbf16> to vector<16x128xbf16>
    %c163 = arith.constant 163 : index
    %c0_78 = arith.constant 0 : index
    %111 = vector.load %arg9[%c163, %c0_78] : memref<198x128xbf16, #tpu.memory_space<vmem>>, vector<16x128xbf16>
    tpu.vector_store %arg9[%c163, %c0_78], %110 {strides = array<i32>} : memref<198x128xbf16, #tpu.memory_space<vmem>>, vector<16x128xbf16>,
    %c0_i32_79 = arith.constant 0 : i32
    %112 = arith.cmpi eq, %arg1, %c0_i32_79 : i32
    %113 = arith.extui %112 : i1 to i32
    %c0_i32_80 = arith.constant 0 : i32
    %114 = arith.cmpi ne, %113, %c0_i32_80 : i32
    scf.if %114 {
      %cst_113 = arith.constant 0.000000e+00 : bf16
      %156 = vector.broadcast %cst_113 : bf16 to vector<18x128xbf16>
      %c0_114 = arith.constant 0 : index
      %c0_115 = arith.constant 0 : index
      %157 = vector.load %arg9[%c0_114, %c0_115] : memref<198x128xbf16, #tpu.memory_space<vmem>>, vector<18x128xbf16>
      tpu.vector_store %arg9[%c0_114, %c0_115], %156 {strides = array<i32>} : memref<198x128xbf16, #tpu.memory_space<vmem>>, vector<18x128xbf16>,
    } else {
    }
    %c1_i32_81 = arith.constant 1 : i32
    %115 = arith.cmpi eq, %arg1, %c1_i32_81 : i32
    %116 = arith.extui %115 : i1 to i32
    %c0_i32_82 = arith.constant 0 : i32
    %117 = arith.cmpi ne, %116, %c0_i32_82 : i32
    scf.if %117 {
      %cst_113 = arith.constant 0.000000e+00 : bf16
      %156 = vector.broadcast %cst_113 : bf16 to vector<18x128xbf16>
      %c162 = arith.constant 162 : index
      %c0_114 = arith.constant 0 : index
      %157 = vector.load %arg9[%c162, %c0_114] : memref<198x128xbf16, #tpu.memory_space<vmem>>, vector<18x128xbf16>
      tpu.vector_store %arg9[%c162, %c0_114], %156 {strides = array<i32>} : memref<198x128xbf16, #tpu.memory_space<vmem>>, vector<18x128xbf16>,
    } else {
    }
    %c0_83 = arith.constant 0 : index
    %c0_84 = arith.constant 0 : index
    %118 = vector.load %arg9[%c0_83, %c0_84] : memref<198x128xbf16, #tpu.memory_space<vmem>>, vector<144x128xbf16>
    %c1_85 = arith.constant 1 : index
    %c0_86 = arith.constant 0 : index
    %119 = vector.load %arg9[%c1_85, %c0_86] : memref<198x128xbf16, #tpu.memory_space<vmem>>, vector<144x128xbf16>
    %c2 = arith.constant 2 : index
    %c0_87 = arith.constant 0 : index
    %120 = vector.load %arg9[%c2, %c0_87] : memref<198x128xbf16, #tpu.memory_space<vmem>>, vector<144x128xbf16>
    %c18 = arith.constant 18 : index
    %c0_88 = arith.constant 0 : index
    %121 = vector.load %arg9[%c18, %c0_88] : memref<198x128xbf16, #tpu.memory_space<vmem>>, vector<144x128xbf16>
    %c19_89 = arith.constant 19 : index
    %c0_90 = arith.constant 0 : index
    %122 = vector.load %arg9[%c19_89, %c0_90] : memref<198x128xbf16, #tpu.memory_space<vmem>>, vector<144x128xbf16>
    %c20 = arith.constant 20 : index
    %c0_91 = arith.constant 0 : index
    %123 = vector.load %arg9[%c20, %c0_91] : memref<198x128xbf16, #tpu.memory_space<vmem>>, vector<144x128xbf16>
    %c36 = arith.constant 36 : index
    %c0_92 = arith.constant 0 : index
    %124 = vector.load %arg9[%c36, %c0_92] : memref<198x128xbf16, #tpu.memory_space<vmem>>, vector<144x128xbf16>
    %c37_93 = arith.constant 37 : index
    %c0_94 = arith.constant 0 : index
    %125 = vector.load %arg9[%c37_93, %c0_94] : memref<198x128xbf16, #tpu.memory_space<vmem>>, vector<144x128xbf16>
    %c38 = arith.constant 38 : index
    %c0_95 = arith.constant 0 : index
    %126 = vector.load %arg9[%c38, %c0_95] : memref<198x128xbf16, #tpu.memory_space<vmem>>, vector<144x128xbf16>
    %127 = tpu.concatenate %118, %119, %120, %121, %122, %123, %124, %125, %126 in 1 : vector<144x128xbf16>, vector<144x128xbf16>, vector<144x128xbf16>, vector<144x128xbf16>, vector<144x128xbf16>, vector<144x128xbf16>, vector<144x128xbf16>, vector<144x128xbf16>, vector<144x128xbf16> -> vector<144x1152xbf16>
    %c0_96 = arith.constant 0 : index
    %c0_97 = arith.constant 0 : index
    %128 = vector.load %arg3[%c0_96, %c0_97] : memref<1152x128xbf16, #tpu.memory_space<vmem>>, vector<1152x128xbf16>
    %cst_98 = arith.constant dense<0.000000e+00> : vector<144x128xf32>
    %129 = tpu.matmul %127, %128, %cst_98 {dimension_numbers = #tpu.dot_dimension_numbers<[1], [0], [0], [1], [0, 0, 1, 1], [], []>} : vector<144x1152xbf16>, vector<1152x128xbf16>, vector<144x128xf32> -> vector<144x128xf32>
    %130 = vector.extract_strided_slice %129 {offsets = [0, 0], sizes = [16, 128], strides = [1, 1]} : vector<144x128xf32> to vector<16x128xf32>
    %131 = vector.extract_strided_slice %129 {offsets = [18, 0], sizes = [16, 128], strides = [1, 1]} : vector<144x128xf32> to vector<16x128xf32>
    %132 = vector.extract_strided_slice %129 {offsets = [36, 0], sizes = [16, 128], strides = [1, 1]} : vector<144x128xf32> to vector<16x128xf32>
    %133 = vector.extract_strided_slice %129 {offsets = [54, 0], sizes = [16, 128], strides = [1, 1]} : vector<144x128xf32> to vector<16x128xf32>
    %134 = vector.extract_strided_slice %129 {offsets = [72, 0], sizes = [16, 128], strides = [1, 1]} : vector<144x128xf32> to vector<16x128xf32>
    %135 = vector.extract_strided_slice %129 {offsets = [90, 0], sizes = [16, 128], strides = [1, 1]} : vector<144x128xf32> to vector<16x128xf32>
    %136 = vector.extract_strided_slice %129 {offsets = [108, 0], sizes = [16, 128], strides = [1, 1]} : vector<144x128xf32> to vector<16x128xf32>
    %137 = vector.extract_strided_slice %129 {offsets = [126, 0], sizes = [16, 128], strides = [1, 1]} : vector<144x128xf32> to vector<16x128xf32>
    %138 = tpu.concatenate %130, %131, %132, %133, %134, %135, %136, %137 in 0 : vector<16x128xf32>, vector<16x128xf32>, vector<16x128xf32>, vector<16x128xf32>, vector<16x128xf32>, vector<16x128xf32>, vector<16x128xf32>, vector<16x128xf32> -> vector<128x128xf32>
    %c0_99 = arith.constant 0 : index
    %c0_100 = arith.constant 0 : index
    %139 = vector.load %arg4[%c0_99, %c0_100] : memref<1x128xf32, #tpu.memory_space<vmem>>, vector<1x128xf32>
    %140 = vector.broadcast %139 : vector<1x128xf32> to vector<128x128xf32>
    %141 = arith.mulf %138, %140 : vector<128x128xf32>
    %c0_101 = arith.constant 0 : index
    %c0_102 = arith.constant 0 : index
    %142 = vector.load %arg5[%c0_101, %c0_102] : memref<1x128xf32, #tpu.memory_space<vmem>>, vector<1x128xf32>
    %143 = vector.broadcast %142 : vector<1x128xf32> to vector<128x128xf32>
    %144 = arith.addf %141, %143 : vector<128x128xf32>
    %cst_103 = arith.constant 0.000000e+00 : f32
    %145 = vector.broadcast %cst_103 : f32 to vector<128x128xf32>
    %146 = arith.maximumf %144, %145 : vector<128x128xf32>
    %147 = arith.truncf %146 : vector<128x128xf32> to vector<128x128xbf16>
    %c0_104 = arith.constant 0 : index
    %c0_105 = arith.constant 0 : index
    %148 = vector.load %arg6[%c0_104, %c0_105] : memref<128x32xbf16, #tpu.memory_space<vmem>>, vector<128x32xbf16>
    %cst_106 = arith.constant dense<0.000000e+00> : vector<128x32xf32>
    %149 = tpu.matmul %147, %148, %cst_106 {dimension_numbers = #tpu.dot_dimension_numbers<[1], [0], [0], [1], [0, 0, 1, 1], [], []>} : vector<128x128xbf16>, vector<128x32xbf16>, vector<128x32xf32> -> vector<128x32xf32>
    %c0_107 = arith.constant 0 : index
    %c0_108 = arith.constant 0 : index
    %c0_109 = arith.constant 0 : index
    %150 = vector.load %arg7[%c0_107, %c0_108, %c0_109] : memref<1x128x32xf32, #tpu.memory_space<vmem>>, vector<1x128x32xf32>
    %151 = vector.shape_cast %150 : vector<1x128x32xf32> to vector<128x32xf32>
    %152 = arith.addf %149, %151 : vector<128x32xf32>
    %c0_110 = arith.constant 0 : index
    %c0_111 = arith.constant 0 : index
    %c0_112 = arith.constant 0 : index
    %153 = vector.load %arg8[%c0_110, %c0_111, %c0_112] : memref<1x128x32xf32, #tpu.memory_space<vmem>>, vector<1x128x32xf32>
    %154 = vector.shape_cast %153 : vector<1x128x32xf32> to vector<128x32xf32>
    %155 = vector.shape_cast %152 : vector<128x32xf32> to vector<1x128x32xf32>
    tpu.vector_store %arg8[%c0_110, %c0_111, %c0_112], %155 {strides = array<i32>} : memref<1x128x32xf32, #tpu.memory_space<vmem>>, vector<1x128x32xf32>,
    return
  }
  func.func @transform_0(%arg0: i32, %arg1: i32) -> (i32, i32, i32) {
    %c0_i32 = arith.constant 0 : i32
    %c0_i32_0 = arith.constant 0 : i32
    %c0_i32_1 = arith.constant 0 : i32
    return %arg0, %c0_i32, %c0_i32_0 : i32, i32, i32
  }
  func.func @transform_1(%arg0: i32, %arg1: i32) -> (i32, i32) {
    %c0_i32 = arith.constant 0 : i32
    %c0_i32_0 = arith.constant 0 : i32
    %c0_i32_1 = arith.constant 0 : i32
    return %c0_i32, %c0_i32_0 : i32, i32
  }
  func.func @transform_2(%arg0: i32, %arg1: i32) -> (i32, i32) {
    %c0_i32 = arith.constant 0 : i32
    %c0_i32_0 = arith.constant 0 : i32
    %c0_i32_1 = arith.constant 0 : i32
    return %c0_i32, %c0_i32_0 : i32, i32
  }
  func.func @transform_3(%arg0: i32, %arg1: i32) -> (i32, i32) {
    %c0_i32 = arith.constant 0 : i32
    %c0_i32_0 = arith.constant 0 : i32
    %c0_i32_1 = arith.constant 0 : i32
    return %c0_i32, %c0_i32_0 : i32, i32
  }
  func.func @transform_4(%arg0: i32, %arg1: i32) -> (i32, i32) {
    %c0_i32 = arith.constant 0 : i32
    %c0_i32_0 = arith.constant 0 : i32
    %c0_i32_1 = arith.constant 0 : i32
    return %c0_i32, %c0_i32_0 : i32, i32
  }
  func.func @transform_5(%arg0: i32, %arg1: i32) -> (i32, i32, i32) {
    %c0_i32 = arith.constant 0 : i32
    %c0_i32_0 = arith.constant 0 : i32
    return %arg0, %arg1, %c0_i32 : i32, i32, i32
  }
  func.func @transform_6(%arg0: i32, %arg1: i32) -> (i32, i32, i32) {
    %c0_i32 = arith.constant 0 : i32
    %c0_i32_0 = arith.constant 0 : i32
    return %arg0, %arg1, %c0_i32 : i32, i32, i32
  }
}

module attributes {stable_mosaic.version = 11 : i64} {
  func.func @_stage1_kernel(%arg0: i32, %arg1: memref<512x32xf32, #tpu.memory_space<vmem>>, %arg2: memref<1x32xf32, #tpu.memory_space<vmem>>, %arg3: memref<1x32xf32, #tpu.memory_space<vmem>>, %arg4: memref<32x128xbf16, #tpu.memory_space<vmem>>, %arg5: memref<1x128xf32, #tpu.memory_space<vmem>>, %arg6: memref<1x128xf32, #tpu.memory_space<vmem>>, %arg7: memref<512x128xbf16, #tpu.memory_space<vmem>>) attributes {dimension_semantics = [#tpu.dimension_semantics<parallel>], iteration_bounds = array<i64: 1>, scalar_prefetch = 0 : i64, scratch_operands = 0 : i64, tpu.core_type = #tpu.core_type<tc>, window_params = [{transform_indices = @transform_0, window_bounds = array<i64: 512, 32>}, {pipeline_mode = #tpu.pipeline_mode<synchronous>, transform_indices = @transform_1, window_bounds = array<i64: 1, 32>}, {pipeline_mode = #tpu.pipeline_mode<synchronous>, transform_indices = @transform_2, window_bounds = array<i64: 1, 32>}, {pipeline_mode = #tpu.pipeline_mode<synchronous>, transform_indices = @transform_3, window_bounds = array<i64: 32, 128>}, {pipeline_mode = #tpu.pipeline_mode<synchronous>, transform_indices = @transform_4, window_bounds = array<i64: 1, 128>}, {pipeline_mode = #tpu.pipeline_mode<synchronous>, transform_indices = @transform_5, window_bounds = array<i64: 1, 128>}, {transform_indices = @transform_6, window_bounds = array<i64: 512, 128>}]} {
    %c0 = arith.constant 0 : index
    %c0_0 = arith.constant 0 : index
    %0 = vector.load %arg1[%c0, %c0_0] : memref<512x32xf32, #tpu.memory_space<vmem>>, vector<512x32xf32>
    %c0_1 = arith.constant 0 : index
    %c0_2 = arith.constant 0 : index
    %1 = vector.load %arg2[%c0_1, %c0_2] : memref<1x32xf32, #tpu.memory_space<vmem>>, vector<1x32xf32>
    %2 = vector.broadcast %1 : vector<1x32xf32> to vector<512x32xf32>
    %3 = arith.mulf %0, %2 : vector<512x32xf32>
    %c0_3 = arith.constant 0 : index
    %c0_4 = arith.constant 0 : index
    %4 = vector.load %arg3[%c0_3, %c0_4] : memref<1x32xf32, #tpu.memory_space<vmem>>, vector<1x32xf32>
    %5 = vector.broadcast %4 : vector<1x32xf32> to vector<512x32xf32>
    %6 = arith.addf %3, %5 : vector<512x32xf32>
    %cst = arith.constant 0.000000e+00 : f32
    %7 = vector.broadcast %cst : f32 to vector<512x32xf32>
    %8 = arith.maximumf %6, %7 : vector<512x32xf32>
    %9 = arith.truncf %8 : vector<512x32xf32> to vector<512x32xbf16>
    %c0_5 = arith.constant 0 : index
    %c0_6 = arith.constant 0 : index
    %10 = vector.load %arg4[%c0_5, %c0_6] : memref<32x128xbf16, #tpu.memory_space<vmem>>, vector<32x128xbf16>
    %cst_7 = arith.constant dense<0.000000e+00> : vector<512x128xf32>
    %11 = tpu.matmul %9, %10, %cst_7 {dimension_numbers = #tpu.dot_dimension_numbers<[1], [0], [0], [1], [0, 0, 1, 1], [], []>} : vector<512x32xbf16>, vector<32x128xbf16>, vector<512x128xf32> -> vector<512x128xf32>
    %c0_8 = arith.constant 0 : index
    %c0_9 = arith.constant 0 : index
    %12 = vector.load %arg5[%c0_8, %c0_9] : memref<1x128xf32, #tpu.memory_space<vmem>>, vector<1x128xf32>
    %13 = vector.broadcast %12 : vector<1x128xf32> to vector<512x128xf32>
    %14 = arith.mulf %11, %13 : vector<512x128xf32>
    %c0_10 = arith.constant 0 : index
    %c0_11 = arith.constant 0 : index
    %15 = vector.load %arg6[%c0_10, %c0_11] : memref<1x128xf32, #tpu.memory_space<vmem>>, vector<1x128xf32>
    %16 = vector.broadcast %15 : vector<1x128xf32> to vector<512x128xf32>
    %17 = arith.addf %14, %16 : vector<512x128xf32>
    %cst_12 = arith.constant 0.000000e+00 : f32
    %18 = vector.broadcast %cst_12 : f32 to vector<512x128xf32>
    %19 = arith.maximumf %17, %18 : vector<512x128xf32>
    %20 = arith.truncf %19 : vector<512x128xf32> to vector<512x128xbf16>
    %c0_13 = arith.constant 0 : index
    %c0_14 = arith.constant 0 : index
    %21 = vector.load %arg7[%c0_13, %c0_14] : memref<512x128xbf16, #tpu.memory_space<vmem>>, vector<512x128xbf16>
    tpu.vector_store %arg7[%c0_13, %c0_14], %20 {strides = array<i32>} : memref<512x128xbf16, #tpu.memory_space<vmem>>, vector<512x128xbf16>,
    return
  }
  func.func @transform_0(%arg0: i32) -> (i32, i32) {
    %c0_i32 = arith.constant 0 : i32
    %c0_i32_0 = arith.constant 0 : i32
    return %arg0, %c0_i32 : i32, i32
  }
  func.func @transform_1(%arg0: i32) -> (i32, i32) {
    %c0_i32 = arith.constant 0 : i32
    %c0_i32_0 = arith.constant 0 : i32
    %c0_i32_1 = arith.constant 0 : i32
    return %c0_i32, %c0_i32_0 : i32, i32
  }
  func.func @transform_2(%arg0: i32) -> (i32, i32) {
    %c0_i32 = arith.constant 0 : i32
    %c0_i32_0 = arith.constant 0 : i32
    %c0_i32_1 = arith.constant 0 : i32
    return %c0_i32, %c0_i32_0 : i32, i32
  }
  func.func @transform_3(%arg0: i32) -> (i32, i32) {
    %c0_i32 = arith.constant 0 : i32
    %c0_i32_0 = arith.constant 0 : i32
    %c0_i32_1 = arith.constant 0 : i32
    return %c0_i32, %c0_i32_0 : i32, i32
  }
  func.func @transform_4(%arg0: i32) -> (i32, i32) {
    %c0_i32 = arith.constant 0 : i32
    %c0_i32_0 = arith.constant 0 : i32
    %c0_i32_1 = arith.constant 0 : i32
    return %c0_i32, %c0_i32_0 : i32, i32
  }
  func.func @transform_5(%arg0: i32) -> (i32, i32) {
    %c0_i32 = arith.constant 0 : i32
    %c0_i32_0 = arith.constant 0 : i32
    %c0_i32_1 = arith.constant 0 : i32
    return %c0_i32, %c0_i32_0 : i32, i32
  }
  func.func @transform_6(%arg0: i32) -> (i32, i32) {
    %c0_i32 = arith.constant 0 : i32
    %c0_i32_0 = arith.constant 0 : i32
    return %arg0, %c0_i32 : i32, i32
  }
}

</mosaic_0001>

<llo_original>
// kernel: bottleneck_forward_nhwc.2
$region0: #{bottleneck_forward_nhwc.2}
  #allocation0 [shape = 'u32[]', space=smem, size = 0x4, offset = 0x4, fixed_abs, tag = 'smem constant byte address 0x4 - core index']
  #allocation1 [shape = 'u32[144,128]{1,0:T(1,128)}', space=vmem, size = 0x12000, scoped, tag = 'internal scratch']
  %s0 = inlined_call_operand.hbm [shape: f32[512,32], index: 0, kind: input, shape index: {}]
  %s1 = inlined_call_operand.hbm [shape: f32[1,32], index: 1, kind: input, shape index: {}]
  %s2 = inlined_call_operand.hbm [shape: f32[1,32], index: 2, kind: input, shape index: {}]
  %s3 = inlined_call_operand.hbm [shape: bf16[32,128], index: 3, kind: input, shape index: {}]
  %s4 = inlined_call_operand.hbm [shape: f32[1,128], index: 4, kind: input, shape index: {}]
  %s5 = inlined_call_operand.hbm [shape: f32[1,128], index: 5, kind: input, shape index: {}]
  %s6 = inlined_call_operand.vmem [shape: bf16[512,128], index: 6, kind: output, shape index: {}]
  %s7 = sld [smem:[#allocation0]]
  $region58: #{bottleneck_forward_nhwc.2} parent=0
    _
  %s9 = ssub.s32 1, %s7
  %s10 = scalar_select 0, %s9, %s7
  $region1: #{bottleneck_forward_nhwc.2} parent=0
    #allocation2 [shape = 'u8[262144]{0}', space=vmem, size = 0x40000, scoped, tag = 'input window, operand 0, single buffered']
    #allocation3 [shape = 's32[1]{0}', space=sflag, size = 0x4, scoped, tag = 'scoped memory for bottleneck_forward_nhwc.2']
    #allocation4 [shape = 'u8[512]{0}', space=vmem, size = 0x400, scoped, tag = 'input window, operand 1, single buffered']
    #allocation5 [shape = 's32[1]{0}', space=sflag, size = 0x4, scoped, tag = 'scoped memory for bottleneck_forward_nhwc.2']
    #allocation6 [shape = 'u8[512]{0}', space=vmem, size = 0x400, scoped, tag = 'input window, operand 2, single buffered']
    #allocation7 [shape = 'u8[8192]{0}', space=vmem, size = 0x2000, scoped, tag = 'input window, operand 3, single buffered']
    #allocation8 [shape = 's32[1]{0}', space=sflag, size = 0x4, scoped, tag = 'scoped memory for bottleneck_forward_nhwc.2']
    #allocation9 [shape = 'u8[512]{0}', space=vmem, size = 0x400, scoped, tag = 'input window, operand 4, single buffered']
    #allocation10 [shape = 'u8[512]{0}', space=vmem, size = 0x400, scoped, tag = 'input window, operand 5, single buffered']
    #allocation11 [shape = 's32[1]{0}', space=sflag, size = 0x4, scoped, tag = 'scoped memory for bottleneck_forward_nhwc.2']
    %11 = vsyncpa [#allocation3], 0
    %12 = vsyncpa [#allocation5], 0
    %13 = vsyncpa [#allocation8], 0
    %14 = vsyncpa [#allocation11], 0
    // Predicated region
    $region2: #{bottleneck_forward_nhwc.2} parent=1 // pred_check
      _
    $region3: #{bottleneck_forward_nhwc.2} parent=1 // pred_check_branch
      %16 = sbr.rel (0) target = $region5
    $region4: #{bottleneck_forward_nhwc.2} parent=1 // pred_region
      %s18 = ssub.s32 8192, 8192
      %19 = vsyncadd [#allocation3], %s18
      %s20 = sshll.u32 [#allocation2], 4
      %s21 = int_to_ptr.vmem [resolvable:$true] %s20
      %26 = dma.hbm_to_vmem [thread:$0]  %s0, 8192, %s21, [#allocation3], 128, 128, 8
    $region5: #{bottleneck_forward_nhwc.2} parent=1 // pred_fallthru
      _
    // Predicated region
    $region6: #{bottleneck_forward_nhwc.2} parent=1 // pred_check
      _
    $region7: #{bottleneck_forward_nhwc.2} parent=1 // pred_check_branch
      %28 = sbr.rel (0) target = $region9
    $region8: #{bottleneck_forward_nhwc.2} parent=1 // pred_region
      %s30 = ssub.s32 16, 16
      %31 = vsyncadd [#allocation5], %s30
      %s33 = sshll.u32 [#allocation4], 4
      %s34 = int_to_ptr.vmem [resolvable:$true] %s33
      %36 = dma.hbm_to_vmem [thread:$0]  %s1, 16, %s34, [#allocation5]
    $region9: #{bottleneck_forward_nhwc.2} parent=1 // pred_fallthru
      _
    // Predicated region
    $region10: #{bottleneck_forward_nhwc.2} parent=1 // pred_check
      _
    $region11: #{bottleneck_forward_nhwc.2} parent=1 // pred_check_branch
      %38 = sbr.rel (0) target = $region13
    $region12: #{bottleneck_forward_nhwc.2} parent=1 // pred_region
      %s40 = ssub.s32 16, 16
      %41 = vsyncadd [#allocation5], %s40
      %s43 = sshll.u32 [#allocation6], 4
      %s44 = int_to_ptr.vmem [resolvable:$true] %s43
      %46 = dma.hbm_to_vmem [thread:$0]  %s2, 16, %s44, [#allocation5]
    $region13: #{bottleneck_forward_nhwc.2} parent=1 // pred_fallthru
      _
    // Predicated region
    $region14: #{bottleneck_forward_nhwc.2} parent=1 // pred_check
      _
    $region15: #{bottleneck_forward_nhwc.2} parent=1 // pred_check_branch
      %48 = sbr.rel (0) target = $region17
    $region16: #{bottleneck_forward_nhwc.2} parent=1 // pred_region
      %s50 = ssub.s32 256, 256
      %51 = vsyncadd [#allocation8], %s50
      %s52 = sshll.u32 [#allocation7], 4
      %s53 = int_to_ptr.vmem [resolvable:$true] %s52
      %58 = dma.hbm_to_vmem [thread:$0]  %s3, 256, %s53, [#allocation8], 64, 64, 4
    $region17: #{bottleneck_forward_nhwc.2} parent=1 // pred_fallthru
      _
    // Predicated region
    $region18: #{bottleneck_forward_nhwc.2} parent=1 // pred_check
      _
    $region19: #{bottleneck_forward_nhwc.2} parent=1 // pred_check_branch
      %60 = sbr.rel (0) target = $region21
    $region20: #{bottleneck_forward_nhwc.2} parent=1 // pred_region
      %s62 = ssub.s32 16, 16
      %63 = vsyncadd [#allocation8], %s62
      %s65 = sshll.u32 [#allocation9], 4
      %s66 = int_to_ptr.vmem [resolvable:$true] %s65
      %68 = dma.hbm_to_vmem [thread:$0]  %s4, 16, %s66, [#allocation8]
    $region21: #{bottleneck_forward_nhwc.2} parent=1 // pred_fallthru
      _
    // Predicated region
    $region22: #{bottleneck_forward_nhwc.2} parent=1 // pred_check
      _
    $region23: #{bottleneck_forward_nhwc.2} parent=1 // pred_check_branch
      %70 = sbr.rel (0) target = $region25
    $region24: #{bottleneck_forward_nhwc.2} parent=1 // pred_region
      %s72 = ssub.s32 16, 16
      %73 = vsyncadd [#allocation11], %s72
      %s75 = sshll.u32 [#allocation10], 4
      %s76 = int_to_ptr.vmem [resolvable:$true] %s75
      %78 = dma.hbm_to_vmem [thread:$0]  %s5, 16, %s76, [#allocation11]
    $region25: #{bottleneck_forward_nhwc.2} parent=1 // pred_fallthru
      _
    // Predicated region
    $region26: #{bottleneck_forward_nhwc.2} parent=1 // pred_check
      _
    $region27: #{bottleneck_forward_nhwc.2} parent=1 // pred_check_branch
      %80 = sbr.rel (0) target = $region29
    $region28: #{bottleneck_forward_nhwc.2} parent=1 // pred_region
      %81 = dma.done [#allocation3], 8192
    $region29: #{bottleneck_forward_nhwc.2} parent=1 // pred_fallthru
      _
    // Predicated region
    $region30: #{bottleneck_forward_nhwc.2} parent=1 // pred_check
      _
    $region31: #{bottleneck_forward_nhwc.2} parent=1 // pred_check_branch
      %83 = sbr.rel (0) target = $region33
    $region32: #{bottleneck_forward_nhwc.2} parent=1 // pred_region
      %84 = dma.done [#allocation5], 16
    $region33: #{bottleneck_forward_nhwc.2} parent=1 // pred_fallthru
      _
    // Predicated region
    $region34: #{bottleneck_forward_nhwc.2} parent=1 // pred_check
      _
    $region35: #{bottleneck_forward_nhwc.2} parent=1 // pred_check_branch
      %86 = sbr.rel (0) target = $region37
    $region36: #{bottleneck_forward_nhwc.2} parent=1 // pred_region
      %87 = dma.done [#allocation5], 16
    $region37: #{bottleneck_forward_nhwc.2} parent=1 // pred_fallthru
      _
    // Predicated region
    $region38: #{bottleneck_forward_nhwc.2} parent=1 // pred_check
      _
    $region39: #{bottleneck_forward_nhwc.2} parent=1 // pred_check_branch
      %89 = sbr.rel (0) target = $region41
    $region40: #{bottleneck_forward_nhwc.2} parent=1 // pred_region
      %90 = dma.done [#allocation8], 256
    $region41: #{bottleneck_forward_nhwc.2} parent=1 // pred_fallthru
      _
    // Predicated region
    $region42: #{bottleneck_forward_nhwc.2} parent=1 // pred_check
      _
    $region43: #{bottleneck_forward_nhwc.2} parent=1 // pred_check_branch
      %92 = sbr.rel (0) target = $region45
    $region44: #{bottleneck_forward_nhwc.2} parent=1 // pred_region
      %93 = dma.done [#allocation8], 16
    $region45: #{bottleneck_forward_nhwc.2} parent=1 // pred_fallthru
      _
    // Predicated region
    $region46: #{bottleneck_forward_nhwc.2} parent=1 // pred_check
      _
    $region47: #{bottleneck_forward_nhwc.2} parent=1 // pred_check_branch
      %95 = sbr.rel (0) target = $region49
    $region48: #{bottleneck_forward_nhwc.2} parent=1 // pred_region
      %96 = dma.done [#allocation11], 16
    $region49: #{bottleneck_forward_nhwc.2} parent=1 // pred_fallthru
      _
    %v98 = vld [vmem:[#allocation2] sm:$0xff]
    %v99 = vld [vmem:[#allocation2 + $0x8] sm:$0xff]
    %v100 = vld [vmem:[#allocation2 + $0x10] sm:$0xff]
    %v101 = vld [vmem:[#allocation2 + $0x18] sm:$0xff]
    %v102 = vld [vmem:[#allocation2 + $0x20] sm:$0xff]
    %v103 = vld [vmem:[#allocation2 + $0x28] sm:$0xff]
    %v104 = vld [vmem:[#allocation2 + $0x30] sm:$0xff]
    %v105 = vld [vmem:[#allocation2 + $0x38] sm:$0xff]
    %v106 = vld [vmem:[#allocation2 + $0x40] sm:$0xff]
    %v107 = vld [vmem:[#allocation2 + $0x48] sm:$0xff]
    %v108 = vld [vmem:[#allocation2 + $0x50] sm:$0xff]
    %v109 = vld [vmem:[#allocation2 + $0x58] sm:$0xff]
    %v110 = vld [vmem:[#allocation2 + $0x60] sm:$0xff]
    %v111 = vld [vmem:[#allocation2 + $0x68] sm:$0xff]
    %v112 = vld [vmem:[#allocation2 + $0x70] sm:$0xff]
    %v113 = vld [vmem:[#allocation2 + $0x78] sm:$0xff]
    %v114 = vld [vmem:[#allocation2 + $0x80] sm:$0xff]
    %v115 = vld [vmem:[#allocation2 + $0x88] sm:$0xff]
    %v116 = vld [vmem:[#allocation2 + $0x90] sm:$0xff]
    %v117 = vld [vmem:[#allocation2 + $0x98] sm:$0xff]
    %v118 = vld [vmem:[#allocation2 + $0xa0] sm:$0xff]
    %v119 = vld [vmem:[#allocation2 + $0xa8] sm:$0xff]
    %v120 = vld [vmem:[#allocation2 + $0xb0] sm:$0xff]
    %v121 = vld [vmem:[#allocation2 + $0xb8] sm:$0xff]
    %v122 = vld [vmem:[#allocation2 + $0xc0] sm:$0xff]
    %v123 = vld [vmem:[#allocation2 + $0xc8] sm:$0xff]
    %v124 = vld [vmem:[#allocation2 + $0xd0] sm:$0xff]
    %v125 = vld [vmem:[#allocation2 + $0xd8] sm:$0xff]
    %v126 = vld [vmem:[#allocation2 + $0xe0] sm:$0xff]
    %v127 = vld [vmem:[#allocation2 + $0xe8] sm:$0xff]
    %v128 = vld [vmem:[#allocation2 + $0xf0] sm:$0xff]
    %v129 = vld [vmem:[#allocation2 + $0xf8] sm:$0xff]
    %v130 = vld [vmem:[#allocation2 + $0x100] sm:$0xff]
    %v131 = vld [vmem:[#allocation2 + $0x108] sm:$0xff]
    %v132 = vld [vmem:[#allocation2 + $0x110] sm:$0xff]
    %v133 = vld [vmem:[#allocation2 + $0x118] sm:$0xff]
    %v134 = vld [vmem:[#allocation2 + $0x120] sm:$0xff]
    %v135 = vld [vmem:[#allocation2 + $0x128] sm:$0xff]
    %v136 = vld [vmem:[#allocation2 + $0x130] sm:$0xff]
    %v137 = vld [vmem:[#allocation2 + $0x138] sm:$0xff]
    %v138 = vld [vmem:[#allocation2 + $0x140] sm:$0xff]
    %v139 = vld [vmem:[#allocation2 + $0x148] sm:$0xff]
    %v140 = vld [vmem:[#allocation2 + $0x150] sm:$0xff]
    %v141 = vld [vmem:[#allocation2 + $0x158] sm:$0xff]
    %v142 = vld [vmem:[#allocation2 + $0x160] sm:$0xff]
    %v143 = vld [vmem:[#allocation2 + $0x168] sm:$0xff]
    %v144 = vld [vmem:[#allocation2 + $0x170] sm:$0xff]
    %v145 = vld [vmem:[#allocation2 + $0x178] sm:$0xff]
    %v146 = vld [vmem:[#allocation2 + $0x180] sm:$0xff]
    %v147 = vld [vmem:[#allocation2 + $0x188] sm:$0xff]
    %v148 = vld [vmem:[#allocation2 + $0x190] sm:$0xff]
    %v149 = vld [vmem:[#allocation2 + $0x198] sm:$0xff]
    %v150 = vld [vmem:[#allocation2 + $0x1a0] sm:$0xff]
    %v151 = vld [vmem:[#allocation2 + $0x1a8] sm:$0xff]
    %v152 = vld [vmem:[#allocation2 + $0x1b0] sm:$0xff]
    %v153 = vld [vmem:[#allocation2 + $0x1b8] sm:$0xff]
    %v154 = vld [vmem:[#allocation2 + $0x1c0] sm:$0xff]
    %v155 = vld [vmem:[#allocation2 + $0x1c8] sm:$0xff]
    %v156 = vld [vmem:[#allocation2 + $0x1d0] sm:$0xff]
    %v157 = vld [vmem:[#allocation2 + $0x1d8] sm:$0xff]
    %v158 = vld [vmem:[#allocation2 + $0x1e0] sm:$0xff]
    %v159 = vld [vmem:[#allocation2 + $0x1e8] sm:$0xff]
    %v160 = vld [vmem:[#allocation2 + $0x1f0] sm:$0xff]
    %v161 = vld [vmem:[#allocation2 + $0x1f8] sm:$0xff]
    %v162 = vld [vmem:[#allocation4] sm:$0x1]
    %v164 = vlaneseq
    %v165 = vshrl.u32 %v164, 7
    %v166 = vsub.s32 0, %v165
    %v167 = vrot.slane %v162, %v166
    %v169 = vmul.f32 %v98, %v167
    %v170 = vmul.f32 %v99, %v167
    %v171 = vmul.f32 %v100, %v167
    %v172 = vmul.f32 %v101, %v167
    %v173 = vmul.f32 %v102, %v167
    %v174 = vmul.f32 %v103, %v167
    %v175 = vmul.f32 %v104, %v167
    %v176 = vmul.f32 %v105, %v167
    %v177 = vmul.f32 %v106, %v167
    %v178 = vmul.f32 %v107, %v167
    %v179 = vmul.f32 %v108, %v167
    %v180 = vmul.f32 %v109, %v167
    %v181 = vmul.f32 %v110, %v167
    %v182 = vmul.f32 %v111, %v167
    %v183 = vmul.f32 %v112, %v167
    %v184 = vmul.f32 %v113, %v167
    %v185 = vmul.f32 %v114, %v167
    %v186 = vmul.f32 %v115, %v167
    %v187 = vmul.f32 %v116, %v167
    %v188 = vmul.f32 %v117, %v167
    %v189 = vmul.f32 %v118, %v167
    %v190 = vmul.f32 %v119, %v167
    %v191 = vmul.f32 %v120, %v167
    %v192 = vmul.f32 %v121, %v167
    %v193 = vmul.f32 %v122, %v167
    %v194 = vmul.f32 %v123, %v167
    %v195 = vmul.f32 %v124, %v167
    %v196 = vmul.f32 %v125, %v167
    %v197 = vmul.f32 %v126, %v167
    %v198 = vmul.f32 %v127, %v167
    %v199 = vmul.f32 %v128, %v167
    %v200 = vmul.f32 %v129, %v167
    %v201 = vmul.f32 %v130, %v167
    %v202 = vmul.f32 %v131, %v167
    %v203 = vmul.f32 %v132, %v167
    %v204 = vmul.f32 %v133, %v167
    %v205 = vmul.f32 %v134, %v167
    %v206 = vmul.f32 %v135, %v167
    %v207 = vmul.f32 %v136, %v167
    %v208 = vmul.f32 %v137, %v167
    %v209 = vmul.f32 %v138, %v167
    %v210 = vmul.f32 %v139, %v167
    %v211 = vmul.f32 %v140, %v167
    %v212 = vmul.f32 %v141, %v167
    %v213 = vmul.f32 %v142, %v167
    %v214 = vmul.f32 %v143, %v167
    %v215 = vmul.f32 %v144, %v167
    %v216 = vmul.f32 %v145, %v167
    %v217 = vmul.f32 %v146, %v167
    %v218 = vmul.f32 %v147, %v167
    %v219 = vmul.f32 %v148, %v167
    %v220 = vmul.f32 %v149, %v167
    %v221 = vmul.f32 %v150, %v167
    %v222 = vmul.f32 %v151, %v167
    %v223 = vmul.f32 %v152, %v167
    %v224 = vmul.f32 %v153, %v167
    %v225 = vmul.f32 %v154, %v167
    %v226 = vmul.f32 %v155, %v167
    %v227 = vmul.f32 %v156, %v167
    %v228 = vmul.f32 %v157, %v167
    %v229 = vmul.f32 %v158, %v167
    %v230 = vmul.f32 %v159, %v167
    %v231 = vmul.f32 %v160, %v167
    %v232 = vmul.f32 %v161, %v167
    %v233 = vld [vmem:[#allocation6] sm:$0x1]
    %v235 = vlaneseq
    %v236 = vshrl.u32 %v235, 7
    %v237 = vsub.s32 0, %v236
    %v238 = vrot.slane %v233, %v237
    %v240 = vadd.f32 %v169, %v238
    %v241 = vadd.f32 %v170, %v238
    %v242 = vadd.f32 %v171, %v238
    %v243 = vadd.f32 %v172, %v238
    %v244 = vadd.f32 %v173, %v238
    %v245 = vadd.f32 %v174, %v238
    %v246 = vadd.f32 %v175, %v238
    %v247 = vadd.f32 %v176, %v238
    %v248 = vadd.f32 %v177, %v238
    %v249 = vadd.f32 %v178, %v238
    %v250 = vadd.f32 %v179, %v238
    %v251 = vadd.f32 %v180, %v238
    %v252 = vadd.f32 %v181, %v238
    %v253 = vadd.f32 %v182, %v238
    %v254 = vadd.f32 %v183, %v238
    %v255 = vadd.f32 %v184, %v238
    %v256 = vadd.f32 %v185, %v238
    %v257 = vadd.f32 %v186, %v238
    %v258 = vadd.f32 %v187, %v238
    %v259 = vadd.f32 %v188, %v238
    %v260 = vadd.f32 %v189, %v238
    %v261 = vadd.f32 %v190, %v238
    %v262 = vadd.f32 %v191, %v238
    %v263 = vadd.f32 %v192, %v238
    %v264 = vadd.f32 %v193, %v238
    %v265 = vadd.f32 %v194, %v238
    %v266 = vadd.f32 %v195, %v238
    %v267 = vadd.f32 %v196, %v238
    %v268 = vadd.f32 %v197, %v238
    %v269 = vadd.f32 %v198, %v238
    %v270 = vadd.f32 %v199, %v238
    %v271 = vadd.f32 %v200, %v238
    %v272 = vadd.f32 %v201, %v238
    %v273 = vadd.f32 %v202, %v238
    %v274 = vadd.f32 %v203, %v238
    %v275 = vadd.f32 %v204, %v238
    %v276 = vadd.f32 %v205, %v238
    %v277 = vadd.f32 %v206, %v238
    %v278 = vadd.f32 %v207, %v238
    %v279 = vadd.f32 %v208, %v238
    %v280 = vadd.f32 %v209, %v238
    %v281 = vadd.f32 %v210, %v238
    %v282 = vadd.f32 %v211, %v238
    %v283 = vadd.f32 %v212, %v238
    %v284 = vadd.f32 %v213, %v238
    %v285 = vadd.f32 %v214, %v238
    %v286 = vadd.f32 %v215, %v238
    %v287 = vadd.f32 %v216, %v238
    %v288 = vadd.f32 %v217, %v238
    %v289 = vadd.f32 %v218, %v238
    %v290 = vadd.f32 %v219, %v238
    %v291 = vadd.f32 %v220, %v238
    %v292 = vadd.f32 %v221, %v238
    %v293 = vadd.f32 %v222, %v238
    %v294 = vadd.f32 %v223, %v238
    %v295 = vadd.f32 %v224, %v238
    %v296 = vadd.f32 %v225, %v238
    %v297 = vadd.f32 %v226, %v238
    %v298 = vadd.f32 %v227, %v238
    %v299 = vadd.f32 %v228, %v238
    %v300 = vadd.f32 %v229, %v238
    %v301 = vadd.f32 %v230, %v238
    %v302 = vadd.f32 %v231, %v238
    %v303 = vadd.f32 %v232, %v238
    %v304 = vmax.f32 %v240, 0.0
    %v305 = vmax.f32 %v241, 0.0
    %v306 = vmax.f32 %v242, 0.0
    %v307 = vmax.f32 %v243, 0.0
    %v308 = vmax.f32 %v244, 0.0
    %v309 = vmax.f32 %v245, 0.0
    %v310 = vmax.f32 %v246, 0.0
    %v311 = vmax.f32 %v247, 0.0
    %v312 = vmax.f32 %v248, 0.0
    %v313 = vmax.f32 %v249, 0.0
    %v314 = vmax.f32 %v250, 0.0
    %v315 = vmax.f32 %v251, 0.0
    %v316 = vmax.f32 %v252, 0.0
    %v317 = vmax.f32 %v253, 0.0
    %v318 = vmax.f32 %v254, 0.0
    %v319 = vmax.f32 %v255, 0.0
    %v320 = vmax.f32 %v256, 0.0
    %v321 = vmax.f32 %v257, 0.0
    %v322 = vmax.f32 %v258, 0.0
    %v323 = vmax.f32 %v259, 0.0
    %v324 = vmax.f32 %v260, 0.0
    %v325 = vmax.f32 %v261, 0.0
    %v326 = vmax.f32 %v262, 0.0
    %v327 = vmax.f32 %v263, 0.0
    %v328 = vmax.f32 %v264, 0.0
    %v329 = vmax.f32 %v265, 0.0
    %v330 = vmax.f32 %v266, 0.0
    %v331 = vmax.f32 %v267, 0.0
    %v332 = vmax.f32 %v268, 0.0
    %v333 = vmax.f32 %v269, 0.0
    %v334 = vmax.f32 %v270, 0.0
    %v335 = vmax.f32 %v271, 0.0
    %v336 = vmax.f32 %v272, 0.0
    %v337 = vmax.f32 %v273, 0.0
    %v338 = vmax.f32 %v274, 0.0
    %v339 = vmax.f32 %v275, 0.0
    %v340 = vmax.f32 %v276, 0.0
    %v341 = vmax.f32 %v277, 0.0
    %v342 = vmax.f32 %v278, 0.0
    %v343 = vmax.f32 %v279, 0.0
    %v344 = vmax.f32 %v280, 0.0
    %v345 = vmax.f32 %v281, 0.0
    %v346 = vmax.f32 %v282, 0.0
    %v347 = vmax.f32 %v283, 0.0
    %v348 = vmax.f32 %v284, 0.0
    %v349 = vmax.f32 %v285, 0.0
    %v350 = vmax.f32 %v286, 0.0
    %v351 = vmax.f32 %v287, 0.0
    %v352 = vmax.f32 %v288, 0.0
    %v353 = vmax.f32 %v289, 0.0
    %v354 = vmax.f32 %v290, 0.0
    %v355 = vmax.f32 %v291, 0.0
    %v356 = vmax.f32 %v292, 0.0
    %v357 = vmax.f32 %v293, 0.0
    %v358 = vmax.f32 %v294, 0.0
    %v359 = vmax.f32 %v295, 0.0
    %v360 = vmax.f32 %v296, 0.0
    %v361 = vmax.f32 %v297, 0.0
    %v362 = vmax.f32 %v298, 0.0
    %v363 = vmax.f32 %v299, 0.0
    %v364 = vmax.f32 %v300, 0.0
    %v365 = vmax.f32 %v301, 0.0
    %v366 = vmax.f32 %v302, 0.0
    %v367 = vmax.f32 %v303, 0.0
    %v368 = vpack.c.bf16 %v305, %v304
    %v369 = vpack.c.bf16 %v307, %v306
    %v370 = vpack.c.bf16 %v309, %v308
    %v371 = vpack.c.bf16 %v311, %v310
    %v372 = vpack.c.bf16 %v313, %v312
    %v373 = vpack.c.bf16 %v315, %v314
    %v374 = vpack.c.bf16 %v317, %v316
    %v375 = vpack.c.bf16 %v319, %v318
    %v376 = vpack.c.bf16 %v321, %v320
    %v377 = vpack.c.bf16 %v323, %v322
    %v378 = vpack.c.bf16 %v325, %v324
    %v379 = vpack.c.bf16 %v327, %v326
    %v380 = vpack.c.bf16 %v329, %v328
    %v381 = vpack.c.bf16 %v331, %v330
    %v382 = vpack.c.bf16 %v333, %v332
    %v383 = vpack.c.bf16 %v335, %v334
    %v384 = vpack.c.bf16 %v337, %v336
    %v385 = vpack.c.bf16 %v339, %v338
    %v386 = vpack.c.bf16 %v341, %v340
    %v387 = vpack.c.bf16 %v343, %v342
    %v388 = vpack.c.bf16 %v345, %v344
    %v389 = vpack.c.bf16 %v347, %v346
    %v390 = vpack.c.bf16 %v349, %v348
    %v391 = vpack.c.bf16 %v351, %v350
    %v392 = vpack.c.bf16 %v353, %v352
    %v393 = vpack.c.bf16 %v355, %v354
    %v394 = vpack.c.bf16 %v357, %v356
    %v395 = vpack.c.bf16 %v359, %v358
    %v396 = vpack.c.bf16 %v361, %v360
    %v397 = vpack.c.bf16 %v363, %v362
    %v398 = vpack.c.bf16 %v365, %v364
    %v399 = vpack.c.bf16 %v367, %v366
    %v400 = vld [vmem:[#allocation7] sm:$0xf]
    %v401 = vld [vmem:[#allocation7 + $0x4] sm:$0xf]
    %v402 = vld [vmem:[#allocation7 + $0x8] sm:$0xf]
    %v403 = vld [vmem:[#allocation7 + $0xc] sm:$0xf]
    %v408 = vunpack.c.l.b16 %v400
    %v409 = vunpack.c.l.b16 %v401
    %v410 = vunpack.c.l.b16 %v402
    %v411 = vunpack.c.l.b16 %v403
    %v412 = vpack.c.b16 %v409, %v408
    %v413 = vpack.c.b16 %v411, %v410
    %vm416 = vcmask 261120
    %v418 = vsel %vm416, %v368, 0
    %v421 = vsel %vm416, %v369, 0
    %v424 = vsel %vm416, %v370, 0
    %v427 = vsel %vm416, %v371, 0
    %v430 = vsel %vm416, %v372, 0
    %v433 = vsel %vm416, %v373, 0
    %v436 = vsel %vm416, %v374, 0
    %v439 = vsel %vm416, %v375, 0
    %v442 = vsel %vm416, %v376, 0
    %v445 = vsel %vm416, %v377, 0
    %v448 = vsel %vm416, %v378, 0
    %v451 = vsel %vm416, %v379, 0
    %v454 = vsel %vm416, %v380, 0
    %v457 = vsel %vm416, %v381, 0
    %v460 = vsel %vm416, %v382, 0
    %v463 = vsel %vm416, %v383, 0
    %v466 = vsel %vm416, %v384, 0
    %v469 = vsel %vm416, %v385, 0
    %v472 = vsel %vm416, %v386, 0
    %v475 = vsel %vm416, %v387, 0
    %v478 = vsel %vm416, %v388, 0
    %v481 = vsel %vm416, %v389, 0
    %v484 = vsel %vm416, %v390, 0
    %v487 = vsel %vm416, %v391, 0
    %v490 = vsel %vm416, %v392, 0
    %v493 = vsel %vm416, %v393, 0
    %v496 = vsel %vm416, %v394, 0
    %v499 = vsel %vm416, %v395, 0
    %v502 = vsel %vm416, %v396, 0
    %v505 = vsel %vm416, %v397, 0
    %v508 = vsel %vm416, %v398, 0
    %v511 = vsel %vm416, %v399, 0
    %513 = vmatprep.subr.bf16.mxu0 0
    %514 = vmatpush1.bf16.msra.mxu0 %v412
    %515 = vmatprep.subr.bf16.mxu0 0
    %516 = vmatpush1.bf16.msra.mxu0 %v413
    %517 = vmatprep.subr.bf16.mxu0 0
    %518 = vmatpush1.bf16.msra.mxu0 0
    %519 = vmatprep.subr.bf16.mxu0 0
    %520 = vmatpush1.bf16.msra.mxu0 0
    %521 = vmatprep.subr.bf16.mxu0 0
    %522 = vmatpush1.bf16.msra.mxu0 0
    %523 = vmatprep.subr.bf16.mxu0 0
    %524 = vmatpush1.bf16.msra.mxu0 0
    %525 = vmatprep.subr.bf16.mxu0 0
    %526 = vmatpush1.bf16.msra.mxu0 0
    %527 = vmatprep.subr.bf16.mxu0 0
    %528 = vmatpush1.bf16.msra.mxu0 0
    %529 = vmatprep.subr.bf16.mxu0 0
    %530 = vmatpush1.bf16.msra.mxu0 0
    %531 = vmatprep.subr.bf16.mxu0 0
    %532 = vmatpush1.bf16.msra.mxu0 0
    %533 = vmatprep.subr.bf16.mxu0 0
    %534 = vmatpush1.bf16.msra.mxu0 0
    %535 = vmatprep.subr.bf16.mxu0 0
    %536 = vmatpush1.bf16.msra.mxu0 0
    %537 = vmatprep.subr.bf16.mxu0 0
    %538 = vmatpush1.bf16.msra.mxu0 0
    %539 = vmatprep.subr.bf16.mxu0 0
    %540 = vmatpush1.bf16.msra.mxu0 0
    %541 = vmatprep.subr.bf16.mxu0 0
    %542 = vmatpush1.bf16.msra.mxu0 0
    %543 = vmatprep.subr.bf16.mxu0 0
    %544 = vmatpush1.bf16.msra.mxu0 0
    %545 = vmatprep.mubr.bf16.mxu0 0
    %546 = vmatmul.mubr.bf16.gmra.mrb[0].mxu0 %v418
    %v547 = vpop.f32.mrb[0].mxu0
    %v548 = vadd.f32 0.0, %v547
    %v549 = vpop.f32.mrb[0].mxu0
    %v550 = vpop.f32.mrb[0].mxu0
    %v551 = vadd.f32 0.0, %v550
    %v552 = vpop.f32.mrb[0].mxu0
    %553 = vmatprep.mubr.bf16.mxu0 0
    %554 = vmatmul.mubr.bf16.gmra.mrb[0].mxu0 %v421
    %v555 = vpop.f32.mrb[0].mxu0
    %v556 = vadd.f32 0.0, %v555
    %v557 = vpop.f32.mrb[0].mxu0
    %v558 = vpop.f32.mrb[0].mxu0
    %v559 = vadd.f32 0.0, %v558
    %v560 = vpop.f32.mrb[0].mxu0
    %561 = vmatprep.mubr.bf16.mxu0 0
    %562 = vmatmul.mubr.bf16.gmra.mrb[0].mxu0 %v424
    %v563 = vpop.f32.mrb[0].mxu0
    %v564 = vadd.f32 0.0, %v563
    %v565 = vpop.f32.mrb[0].mxu0
    %v566 = vpop.f32.mrb[0].mxu0
    %v567 = vadd.f32 0.0, %v566
    %v568 = vpop.f32.mrb[0].mxu0
    %569 = vmatprep.mubr.bf16.mxu0 0
    %570 = vmatmul.mubr.bf16.gmra.mrb[0].mxu0 %v427
    %v571 = vpop.f32.mrb[0].mxu0
    %v572 = vadd.f32 0.0, %v571
    %v573 = vpop.f32.mrb[0].mxu0
    %v574 = vpop.f32.mrb[0].mxu0
    %v575 = vadd.f32 0.0, %v574
    %v576 = vpop.f32.mrb[0].mxu0
    %577 = vmatprep.mubr.bf16.mxu0 0
    %578 = vmatmul.mubr.bf16.gmra.mrb[0].mxu0 %v430
    %v579 = vpop.f32.mrb[0].mxu0
    %v580 = vadd.f32 0.0, %v579
    %v581 = vpop.f32.mrb[0].mxu0
    %v582 = vpop.f32.mrb[0].mxu0
    %v583 = vadd.f32 0.0, %v582
    %v584 = vpop.f32.mrb[0].mxu0
    %585 = vmatprep.mubr.bf16.mxu0 0
    %586 = vmatmul.mubr.bf16.gmra.mrb[0].mxu0 %v433
    %v587 = vpop.f32.mrb[0].mxu0
    %v588 = vadd.f32 0.0, %v587
    %v589 = vpop.f32.mrb[0].mxu0
    %v590 = vpop.f32.mrb[0].mxu0
    %v591 = vadd.f32 0.0, %v590
    %v592 = vpop.f32.mrb[0].mxu0
    %593 = vmatprep.mubr.bf16.mxu0 0
    %594 = vmatmul.mubr.bf16.gmra.mrb[0].mxu0 %v436
    %v595 = vpop.f32.mrb[0].mxu0
    %v596 = vadd.f32 0.0, %v595
    %v597 = vpop.f32.mrb[0].mxu0
    %v598 = vpop.f32.mrb[0].mxu0
    %v599 = vadd.f32 0.0, %v598
    %v600 = vpop.f32.mrb[0].mxu0
    %601 = vmatprep.mubr.bf16.mxu0 0
    %602 = vmatmul.mubr.bf16.gmra.mrb[0].mxu0 %v439
    %v603 = vpop.f32.mrb[0].mxu0
    %v604 = vadd.f32 0.0, %v603
    %v605 = vpop.f32.mrb[0].mxu0
    %v606 = vpop.f32.mrb[0].mxu0
    %v607 = vadd.f32 0.0, %v606
    %v608 = vpop.f32.mrb[0].mxu0
    %609 = vmatprep.mubr.bf16.mxu0 0
    %610 = vmatmul.mubr.bf16.gmra.mrb[0].mxu0 %v442
    %v611 = vpop.f32.mrb[0].mxu0
    %v612 = vadd.f32 0.0, %v611
    %v613 = vpop.f32.mrb[0].mxu0
    %v614 = vpop.f32.mrb[0].mxu0
    %v615 = vadd.f32 0.0, %v614
    %v616 = vpop.f32.mrb[0].mxu0
    %617 = vmatprep.mubr.bf16.mxu0 0
    %618 = vmatmul.mubr.bf16.gmra.mrb[0].mxu0 %v445
    %v619 = vpop.f32.mrb[0].mxu0
    %v620 = vadd.f32 0.0, %v619
    %v621 = vpop.f32.mrb[0].mxu0
    %v622 = vpop.f32.mrb[0].mxu0
    %v623 = vadd.f32 0.0, %v622
    %v624 = vpop.f32.mrb[0].mxu0
    %625 = vmatprep.mubr.bf16.mxu0 0
    %626 = vmatmul.mubr.bf16.gmra.mrb[0].mxu0 %v448
    %v627 = vpop.f32.mrb[0].mxu0
    %v628 = vadd.f32 0.0, %v627
    %v629 = vpop.f32.mrb[0].mxu0
    %v630 = vpop.f32.mrb[0].mxu0
    %v631 = vadd.f32 0.0, %v630
    %v632 = vpop.f32.mrb[0].mxu0
    %633 = vmatprep.mubr.bf16.mxu0 0
    %634 = vmatmul.mubr.bf16.gmra.mrb[0].mxu0 %v451
    %v635 = vpop.f32.mrb[0].mxu0
    %v636 = vadd.f32 0.0, %v635
    %v637 = vpop.f32.mrb[0].mxu0
    %v638 = vpop.f32.mrb[0].mxu0
    %v639 = vadd.f32 0.0, %v638
    %v640 = vpop.f32.mrb[0].mxu0
    %641 = vmatprep.mubr.bf16.mxu0 0
    %642 = vmatmul.mubr.bf16.gmra.mrb[0].mxu0 %v454
    %v643 = vpop.f32.mrb[0].mxu0
    %v644 = vadd.f32 0.0, %v643
    %v645 = vpop.f32.mrb[0].mxu0
    %v646 = vpop.f32.mrb[0].mxu0
    %v647 = vadd.f32 0.0, %v646
    %v648 = vpop.f32.mrb[0].mxu0
    %649 = vmatprep.mubr.bf16.mxu0 0
    %650 = vmatmul.mubr.bf16.gmra.mrb[0].mxu0 %v457
    %v651 = vpop.f32.mrb[0].mxu0
    %v652 = vadd.f32 0.0, %v651
    %v653 = vpop.f32.mrb[0].mxu0
    %v654 = vpop.f32.mrb[0].mxu0
    %v655 = vadd.f32 0.0, %v654
    %v656 = vpop.f32.mrb[0].mxu0
    %657 = vmatprep.mubr.bf16.mxu0 0
    %658 = vmatmul.mubr.bf16.gmra.mrb[0].mxu0 %v460
    %v659 = vpop.f32.mrb[0].mxu0
    %v660 = vadd.f32 0.0, %v659
    %v661 = vpop.f32.mrb[0].mxu0
    %v662 = vpop.f32.mrb[0].mxu0
    %v663 = vadd.f32 0.0, %v662
    %v664 = vpop.f32.mrb[0].mxu0
    %665 = vmatprep.mubr.bf16.mxu0 0
    %666 = vmatmul.mubr.bf16.gmra.mrb[0].mxu0 %v463
    %v667 = vpop.f32.mrb[0].mxu0
    %v668 = vadd.f32 0.0, %v667
    %v669 = vpop.f32.mrb[0].mxu0
    %v670 = vpop.f32.mrb[0].mxu0
    %v671 = vadd.f32 0.0, %v670
    %v672 = vpop.f32.mrb[0].mxu0
    %673 = vmatprep.mubr.bf16.mxu0 0
    %674 = vmatmul.mubr.bf16.gmra.mrb[0].mxu0 %v466
    %v675 = vpop.f32.mrb[0].mxu0
    %v676 = vadd.f32 0.0, %v675
    %v677 = vpop.f32.mrb[0].mxu0
    %v678 = vpop.f32.mrb[0].mxu0
    %v679 = vadd.f32 0.0, %v678
    %v680 = vpop.f32.mrb[0].mxu0
    %681 = vmatprep.mubr.bf16.mxu0 0
    %682 = vmatmul.mubr.bf16.gmra.mrb[0].mxu0 %v469
    %v683 = vpop.f32.mrb[0].mxu0
    %v684 = vadd.f32 0.0, %v683
    %v685 = vpop.f32.mrb[0].mxu0
    %v686 = vpop.f32.mrb[0].mxu0
    %v687 = vadd.f32 0.0, %v686
    %v688 = vpop.f32.mrb[0].mxu0
    %689 = vmatprep.mubr.bf16.mxu0 0
    %690 = vmatmul.mubr.bf16.gmra.mrb[0].mxu0 %v472
    %v691 = vpop.f32.mrb[0].mxu0
    %v692 = vadd.f32 0.0, %v691
    %v693 = vpop.f32.mrb[0].mxu0
    %v694 = vpop.f32.mrb[0].mxu0
    %v695 = vadd.f32 0.0, %v694
    %v696 = vpop.f32.mrb[0].mxu0
    %697 = vmatprep.mubr.bf16.mxu0 0
    %698 = vmatmul.mubr.bf16.gmra.mrb[0].mxu0 %v475
    %v699 = vpop.f32.mrb[0].mxu0
    %v700 = vadd.f32 0.0, %v699
    %v701 = vpop.f32.mrb[0].mxu0
    %v702 = vpop.f32.mrb[0].mxu0
    %v703 = vadd.f32 0.0, %v702
    %v704 = vpop.f32.mrb[0].mxu0
    %705 = vmatprep.mubr.bf16.mxu0 0
    %706 = vmatmul.mubr.bf16.gmra.mrb[0].mxu0 %v478
    %v707 = vpop.f32.mrb[0].mxu0
    %v708 = vadd.f32 0.0, %v707
    %v709 = vpop.f32.mrb[0].mxu0
    %v710 = vpop.f32.mrb[0].mxu0
    %v711 = vadd.f32 0.0, %v710
    %v712 = vpop.f32.mrb[0].mxu0
    %713 = vmatprep.mubr.bf16.mxu0 0
    %714 = vmatmul.mubr.bf16.gmra.mrb[0].mxu0 %v481
    %v715 = vpop.f32.mrb[0].mxu0
    %v716 = vadd.f32 0.0, %v715
    %v717 = vpop.f32.mrb[0].mxu0
    %v718 = vpop.f32.mrb[0].mxu0
    %v719 = vadd.f32 0.0, %v718
    %v720 = vpop.f32.mrb[0].mxu0
    %721 = vmatprep.mubr.bf16.mxu0 0
    %722 = vmatmul.mubr.bf16.gmra.mrb[0].mxu0 %v484
    %v723 = vpop.f32.mrb[0].mxu0
    %v724 = vadd.f32 0.0, %v723
    %v725 = vpop.f32.mrb[0].mxu0
    %v726 = vpop.f32.mrb[0].mxu0
    %v727 = vadd.f32 0.0, %v726
    %v728 = vpop.f32.mrb[0].mxu0
    %729 = vmatprep.mubr.bf16.mxu0 0
    %730 = vmatmul.mubr.bf16.gmra.mrb[0].mxu0 %v487
    %v731 = vpop.f32.mrb[0].mxu0
    %v732 = vadd.f32 0.0, %v731
    %v733 = vpop.f32.mrb[0].mxu0
    %v734 = vpop.f32.mrb[0].mxu0
    %v735 = vadd.f32 0.0, %v734
    %v736 = vpop.f32.mrb[0].mxu0
    %737 = vmatprep.mubr.bf16.mxu0 0
    %738 = vmatmul.mubr.bf16.gmra.mrb[0].mxu0 %v490
    %v739 = vpop.f32.mrb[0].mxu0
    %v740 = vadd.f32 0.0, %v739
    %v741 = vpop.f32.mrb[0].mxu0
    %v742 = vpop.f32.mrb[0].mxu0
    %v743 = vadd.f32 0.0, %v742
    %v744 = vpop.f32.mrb[0].mxu0
    %745 = vmatprep.mubr.bf16.mxu0 0
    %746 = vmatmul.mubr.bf16.gmra.mrb[0].mxu0 %v493
    %v747 = vpop.f32.mrb[0].mxu0
    %v748 = vadd.f32 0.0, %v747
    %v749 = vpop.f32.mrb[0].mxu0
    %v750 = vpop.f32.mrb[0].mxu0
    %v751 = vadd.f32 0.0, %v750
    %v752 = vpop.f32.mrb[0].mxu0
    %753 = vmatprep.mubr.bf16.mxu0 0
    %754 = vmatmul.mubr.bf16.gmra.mrb[0].mxu0 %v496
    %v755 = vpop.f32.mrb[0].mxu0
    %v756 = vadd.f32 0.0, %v755
    %v757 = vpop.f32.mrb[0].mxu0
    %v758 = vpop.f32.mrb[0].mxu0
    %v759 = vadd.f32 0.0, %v758
    %v760 = vpop.f32.mrb[0].mxu0
    %761 = vmatprep.mubr.bf16.mxu0 0
    %762 = vmatmul.mubr.bf16.gmra.mrb[0].mxu0 %v499
    %v763 = vpop.f32.mrb[0].mxu0
    %v764 = vadd.f32 0.0, %v763
    %v765 = vpop.f32.mrb[0].mxu0
    %v766 = vpop.f32.mrb[0].mxu0
    %v767 = vadd.f32 0.0, %v766
    %v768 = vpop.f32.mrb[0].mxu0
    %769 = vmatprep.mubr.bf16.mxu0 0
    %770 = vmatmul.mubr.bf16.gmra.mrb[0].mxu0 %v502
    %v771 = vpop.f32.mrb[0].mxu0
    %v772 = vadd.f32 0.0, %v771
    %v773 = vpop.f32.mrb[0].mxu0
    %v774 = vpop.f32.mrb[0].mxu0
    %v775 = vadd.f32 0.0, %v774
    %v776 = vpop.f32.mrb[0].mxu0
    %777 = vmatprep.mubr.bf16.mxu0 0
    %778 = vmatmul.mubr.bf16.gmra.mrb[0].mxu0 %v505
    %v779 = vpop.f32.mrb[0].mxu0
    %v780 = vadd.f32 0.0, %v779
    %v781 = vpop.f32.mrb[0].mxu0
    %v782 = vpop.f32.mrb[0].mxu0
    %v783 = vadd.f32 0.0, %v782
    %v784 = vpop.f32.mrb[0].mxu0
    %785 = vmatprep.mubr.bf16.mxu0 0
    %786 = vmatmul.mubr.bf16.gmra.mrb[0].mxu0 %v508
    %v787 = vpop.f32.mrb[0].mxu0
    %v788 = vadd.f32 0.0, %v787
    %v789 = vpop.f32.mrb[0].mxu0
    %v790 = vpop.f32.mrb[0].mxu0
    %v791 = vadd.f32 0.0, %v790
    %v792 = vpop.f32.mrb[0].mxu0
    %793 = vmatprep.mubr.bf16.mxu0 0
    %794 = vmatmul.mubr.bf16.gmra.mrb[0].mxu0 %v511
    %v795 = vpop.f32.mrb[0].mxu0
    %v796 = vadd.f32 0.0, %v795
    %v797 = vpop.f32.mrb[0].mxu0
    %v798 = vpop.f32.mrb[0].mxu0
    %v799 = vadd.f32 0.0, %v798
    %v800 = vpop.f32.mrb[0].mxu0
    %801 = vdwg.mxu0
    %v802 = vld [vmem:[#allocation9] sm:$0x1]
    %v804 = vlaneseq
    %v805 = vshrl.u32 %v804, 7
    %v806 = vsub.s32 0, %v805
    %v807 = vrot.slane %v802, %v806
    %v809 = vmul.f32 %v548, %v807
    %v810 = vmul.f32 %v551, %v807
    %v811 = vmul.f32 %v556, %v807
    %v812 = vmul.f32 %v559, %v807
    %v813 = vmul.f32 %v564, %v807
    %v814 = vmul.f32 %v567, %v807
    %v815 = vmul.f32 %v572, %v807
    %v816 = vmul.f32 %v575, %v807
    %v817 = vmul.f32 %v580, %v807
    %v818 = vmul.f32 %v583, %v807
    %v819 = vmul.f32 %v588, %v807
    %v820 = vmul.f32 %v591, %v807
    %v821 = vmul.f32 %v596, %v807
    %v822 = vmul.f32 %v599, %v807
    %v823 = vmul.f32 %v604, %v807
    %v824 = vmul.f32 %v607, %v807
    %v825 = vmul.f32 %v612, %v807
    %v826 = vmul.f32 %v615, %v807
    %v827 = vmul.f32 %v620, %v807
    %v828 = vmul.f32 %v623, %v807
    %v829 = vmul.f32 %v628, %v807
    %v830 = vmul.f32 %v631, %v807
    %v831 = vmul.f32 %v636, %v807
    %v832 = vmul.f32 %v639, %v807
    %v833 = vmul.f32 %v644, %v807
    %v834 = vmul.f32 %v647, %v807
    %v835 = vmul.f32 %v652, %v807
    %v836 = vmul.f32 %v655, %v807
    %v837 = vmul.f32 %v660, %v807
    %v838 = vmul.f32 %v663, %v807
    %v839 = vmul.f32 %v668, %v807
    %v840 = vmul.f32 %v671, %v807
    %v841 = vmul.f32 %v676, %v807
    %v842 = vmul.f32 %v679, %v807
    %v843 = vmul.f32 %v684, %v807
    %v844 = vmul.f32 %v687, %v807
    %v845 = vmul.f32 %v692, %v807
    %v846 = vmul.f32 %v695, %v807
    %v847 = vmul.f32 %v700, %v807
    %v848 = vmul.f32 %v703, %v807
    %v849 = vmul.f32 %v708, %v807
    %v850 = vmul.f32 %v711, %v807
    %v851 = vmul.f32 %v716, %v807
    %v852 = vmul.f32 %v719, %v807
    %v853 = vmul.f32 %v724, %v807
    %v854 = vmul.f32 %v727, %v807
    %v855 = vmul.f32 %v732, %v807
    %v856 = vmul.f32 %v735, %v807
    %v857 = vmul.f32 %v740, %v807
    %v858 = vmul.f32 %v743, %v807
    %v859 = vmul.f32 %v748, %v807
    %v860 = vmul.f32 %v751, %v807
    %v861 = vmul.f32 %v756, %v807
    %v862 = vmul.f32 %v759, %v807
    %v863 = vmul.f32 %v764, %v807
    %v864 = vmul.f32 %v767, %v807
    %v865 = vmul.f32 %v772, %v807
    %v866 = vmul.f32 %v775, %v807
    %v867 = vmul.f32 %v780, %v807
    %v868 = vmul.f32 %v783, %v807
    %v869 = vmul.f32 %v788, %v807
    %v870 = vmul.f32 %v791, %v807
    %v871 = vmul.f32 %v796, %v807
    %v872 = vmul.f32 %v799, %v807
    %v873 = vld [vmem:[#allocation10] sm:$0x1]
    %v875 = vlaneseq
    %v876 = vshrl.u32 %v875, 7
    %v877 = vsub.s32 0, %v876
    %v878 = vrot.slane %v873, %v877
    %v880 = vadd.f32 %v809, %v878
    %v881 = vadd.f32 %v810, %v878
    %v882 = vadd.f32 %v811, %v878
    %v883 = vadd.f32 %v812, %v878
    %v884 = vadd.f32 %v813, %v878
    %v885 = vadd.f32 %v814, %v878
    %v886 = vadd.f32 %v815, %v878
    %v887 = vadd.f32 %v816, %v878
    %v888 = vadd.f32 %v817, %v878
    %v889 = vadd.f32 %v818, %v878
    %v890 = vadd.f32 %v819, %v878
    %v891 = vadd.f32 %v820, %v878
    %v892 = vadd.f32 %v821, %v878
    %v893 = vadd.f32 %v822, %v878
    %v894 = vadd.f32 %v823, %v878
    %v895 = vadd.f32 %v824, %v878
    %v896 = vadd.f32 %v825, %v878
    %v897 = vadd.f32 %v826, %v878
    %v898 = vadd.f32 %v827, %v878
    %v899 = vadd.f32 %v828, %v878
    %v900 = vadd.f32 %v829, %v878
    %v901 = vadd.f32 %v830, %v878
    %v902 = vadd.f32 %v831, %v878
    %v903 = vadd.f32 %v832, %v878
    %v904 = vadd.f32 %v833, %v878
    %v905 = vadd.f32 %v834, %v878
    %v906 = vadd.f32 %v835, %v878
    %v907 = vadd.f32 %v836, %v878
    %v908 = vadd.f32 %v837, %v878
    %v909 = vadd.f32 %v838, %v878
    %v910 = vadd.f32 %v839, %v878
    %v911 = vadd.f32 %v840, %v878
    %v912 = vadd.f32 %v841, %v878
    %v913 = vadd.f32 %v842, %v878
    %v914 = vadd.f32 %v843, %v878
    %v915 = vadd.f32 %v844, %v878
    %v916 = vadd.f32 %v845, %v878
    %v917 = vadd.f32 %v846, %v878
    %v918 = vadd.f32 %v847, %v878
    %v919 = vadd.f32 %v848, %v878
    %v920 = vadd.f32 %v849, %v878
    %v921 = vadd.f32 %v850, %v878
    %v922 = vadd.f32 %v851, %v878
    %v923 = vadd.f32 %v852, %v878
    %v924 = vadd.f32 %v853, %v878
    %v925 = vadd.f32 %v854, %v878
    %v926 = vadd.f32 %v855, %v878
    %v927 = vadd.f32 %v856, %v878
    %v928 = vadd.f32 %v857, %v878
    %v929 = vadd.f32 %v858, %v878
    %v930 = vadd.f32 %v859, %v878
    %v931 = vadd.f32 %v860, %v878
    %v932 = vadd.f32 %v861, %v878
    %v933 = vadd.f32 %v862, %v878
    %v934 = vadd.f32 %v863, %v878
    %v935 = vadd.f32 %v864, %v878
    %v936 = vadd.f32 %v865, %v878
    %v937 = vadd.f32 %v866, %v878
    %v938 = vadd.f32 %v867, %v878
    %v939 = vadd.f32 %v868, %v878
    %v940 = vadd.f32 %v869, %v878
    %v941 = vadd.f32 %v870, %v878
    %v942 = vadd.f32 %v871, %v878
    %v943 = vadd.f32 %v872, %v878
    %v944 = vmax.f32 %v880, 0.0
    %v945 = vmax.f32 %v881, 0.0
    %v946 = vmax.f32 %v882, 0.0
    %v947 = vmax.f32 %v883, 0.0
    %v948 = vmax.f32 %v884, 0.0
    %v949 = vmax.f32 %v885, 0.0
    %v950 = vmax.f32 %v886, 0.0
    %v951 = vmax.f32 %v887, 0.0
    %v952 = vmax.f32 %v888, 0.0
    %v953 = vmax.f32 %v889, 0.0
    %v954 = vmax.f32 %v890, 0.0
    %v955 = vmax.f32 %v891, 0.0
    %v956 = vmax.f32 %v892, 0.0
    %v957 = vmax.f32 %v893, 0.0
    %v958 = vmax.f32 %v894, 0.0
    %v959 = vmax.f32 %v895, 0.0
    %v960 = vmax.f32 %v896, 0.0
    %v961 = vmax.f32 %v897, 0.0
    %v962 = vmax.f32 %v898, 0.0
    %v963 = vmax.f32 %v899, 0.0
    %v964 = vmax.f32 %v900, 0.0
    %v965 = vmax.f32 %v901, 0.0
    %v966 = vmax.f32 %v902, 0.0
    %v967 = vmax.f32 %v903, 0.0
    %v968 = vmax.f32 %v904, 0.0
    %v969 = vmax.f32 %v905, 0.0
    %v970 = vmax.f32 %v906, 0.0
    %v971 = vmax.f32 %v907, 0.0
    %v972 = vmax.f32 %v908, 0.0
    %v973 = vmax.f32 %v909, 0.0
    %v974 = vmax.f32 %v910, 0.0
    %v975 = vmax.f32 %v911, 0.0
    %v976 = vmax.f32 %v912, 0.0
    %v977 = vmax.f32 %v913, 0.0
    %v978 = vmax.f32 %v914, 0.0
    %v979 = vmax.f32 %v915, 0.0
    %v980 = vmax.f32 %v916, 0.0
    %v981 = vmax.f32 %v917, 0.0
    %v982 = vmax.f32 %v918, 0.0
    %v983 = vmax.f32 %v919, 0.0
    %v984 = vmax.f32 %v920, 0.0
    %v985 = vmax.f32 %v921, 0.0
    %v986 = vmax.f32 %v922, 0.0
    %v987 = vmax.f32 %v923, 0.0
    %v988 = vmax.f32 %v924, 0.0
    %v989 = vmax.f32 %v925, 0.0
    %v990 = vmax.f32 %v926, 0.0
    %v991 = vmax.f32 %v927, 0.0
    %v992 = vmax.f32 %v928, 0.0
    %v993 = vmax.f32 %v929, 0.0
    %v994 = vmax.f32 %v930, 0.0
    %v995 = vmax.f32 %v931, 0.0
    %v996 = vmax.f32 %v932, 0.0
    %v997 = vmax.f32 %v933, 0.0
    %v998 = vmax.f32 %v934, 0.0
    %v999 = vmax.f32 %v935, 0.0
    %v1000 = vmax.f32 %v936, 0.0
    %v1001 = vmax.f32 %v937, 0.0
    %v1002 = vmax.f32 %v938, 0.0
    %v1003 = vmax.f32 %v939, 0.0
    %v1004 = vmax.f32 %v940, 0.0
    %v1005 = vmax.f32 %v941, 0.0
    %v1006 = vmax.f32 %v942, 0.0
    %v1007 = vmax.f32 %v943, 0.0
    %v1008 = vpack.c.bf16 %v945, %v944
    %v1009 = vpack.c.bf16 %v947, %v946
    %v1010 = vpack.c.bf16 %v949, %v948
    %v1011 = vpack.c.bf16 %v951, %v950
    %v1012 = vpack.c.bf16 %v953, %v952
    %v1013 = vpack.c.bf16 %v955, %v954
    %v1014 = vpack.c.bf16 %v957, %v956
    %v1015 = vpack.c.bf16 %v959, %v958
    %v1016 = vpack.c.bf16 %v961, %v960
    %v1017 = vpack.c.bf16 %v963, %v962
    %v1018 = vpack.c.bf16 %v965, %v964
    %v1019 = vpack.c.bf16 %v967, %v966
    %v1020 = vpack.c.bf16 %v969, %v968
    %v1021 = vpack.c.bf16 %v971, %v970
    %v1022 = vpack.c.bf16 %v973, %v972
    %v1023 = vpack.c.bf16 %v975, %v974
    %v1024 = vpack.c.bf16 %v977, %v976
    %v1025 = vpack.c.bf16 %v979, %v978
    %v1026 = vpack.c.bf16 %v981, %v980
    %v1027 = vpack.c.bf16 %v983, %v982
    %v1028 = vpack.c.bf16 %v985, %v984
    %v1029 = vpack.c.bf16 %v987, %v986
    %v1030 = vpack.c.bf16 %v989, %v988
    %v1031 = vpack.c.bf16 %v991, %v990
    %v1032 = vpack.c.bf16 %v993, %v992
    %v1033 = vpack.c.bf16 %v995, %v994
    %v1034 = vpack.c.bf16 %v997, %v996
    %v1035 = vpack.c.bf16 %v999, %v998
    %v1036 = vpack.c.bf16 %v1001, %v1000
    %v1037 = vpack.c.bf16 %v1003, %v1002
    %v1038 = vpack.c.bf16 %v1005, %v1004
    %v1039 = vpack.c.bf16 %v1007, %v1006
    %v1072 = vunpack.c.l.b16 %v1008
    %v1073 = vunpack.c.h.b16 %v1008
    %v1074 = vunpack.c.l.b16 %v1009
    %v1075 = vunpack.c.h.b16 %v1009
    %v1076 = vunpack.c.l.b16 %v1010
    %v1077 = vunpack.c.h.b16 %v1010
    %v1078 = vunpack.c.l.b16 %v1011
    %v1079 = vunpack.c.h.b16 %v1011
    %v1080 = vunpack.c.l.b16 %v1012
    %v1081 = vunpack.c.h.b16 %v1012
    %v1082 = vunpack.c.l.b16 %v1013
    %v1083 = vunpack.c.h.b16 %v1013
    %v1084 = vunpack.c.l.b16 %v1014
    %v1085 = vunpack.c.h.b16 %v1014
    %v1086 = vunpack.c.l.b16 %v1015
    %v1087 = vunpack.c.h.b16 %v1015
    %v1088 = vunpack.c.l.b16 %v1016
    %v1089 = vunpack.c.h.b16 %v1016
    %v1090 = vunpack.c.l.b16 %v1017
    %v1091 = vunpack.c.h.b16 %v1017
    %v1092 = vunpack.c.l.b16 %v1018
    %v1093 = vunpack.c.h.b16 %v1018
    %v1094 = vunpack.c.l.b16 %v1019
    %v1095 = vunpack.c.h.b16 %v1019
    %v1096 = vunpack.c.l.b16 %v1020
    %v1097 = vunpack.c.h.b16 %v1020
    %v1098 = vunpack.c.l.b16 %v1021
    %v1099 = vunpack.c.h.b16 %v1021
    %v1100 = vunpack.c.l.b16 %v1022
    %v1101 = vunpack.c.h.b16 %v1022
    %v1102 = vunpack.c.l.b16 %v1023
    %v1103 = vunpack.c.h.b16 %v1023
    %v1104 = vunpack.c.l.b16 %v1024
    %v1105 = vunpack.c.h.b16 %v1024
    %v1106 = vunpack.c.l.b16 %v1025
    %v1107 = vunpack.c.h.b16 %v1025
    %v1108 = vunpack.c.l.b16 %v1026
    %v1109 = vunpack.c.h.b16 %v1026
    %v1110 = vunpack.c.l.b16 %v1027
    %v1111 = vunpack.c.h.b16 %v1027
    %v1112 = vunpack.c.l.b16 %v1028
    %v1113 = vunpack.c.h.b16 %v1028
    %v1114 = vunpack.c.l.b16 %v1029
    %v1115 = vunpack.c.h.b16 %v1029
    %v1116 = vunpack.c.l.b16 %v1030
    %v1117 = vunpack.c.h.b16 %v1030
    %v1118 = vunpack.c.l.b16 %v1031
    %v1119 = vunpack.c.h.b16 %v1031
    %v1120 = vunpack.c.l.b16 %v1032
    %v1121 = vunpack.c.h.b16 %v1032
    %v1122 = vunpack.c.l.b16 %v1033
    %v1123 = vunpack.c.h.b16 %v1033
    %v1124 = vunpack.c.l.b16 %v1034
    %v1125 = vunpack.c.h.b16 %v1034
    %v1126 = vunpack.c.l.b16 %v1035
    %v1127 = vunpack.c.h.b16 %v1035
    %v1128 = vunpack.c.l.b16 %v1036
    %v1129 = vunpack.c.h.b16 %v1036
    %v1130 = vunpack.c.l.b16 %v1037
    %v1131 = vunpack.c.h.b16 %v1037
    %v1132 = vunpack.c.l.b16 %v1038
    %v1133 = vunpack.c.h.b16 %v1038
    %v1134 = vunpack.c.l.b16 %v1039
    %v1135 = vunpack.c.h.b16 %v1039
    %v1136 = vpack.c.b16 %v1072, %v1072
    %v1137 = vpack.c.b16 %v1073, %v1073
    %v1138 = vpack.c.b16 %v1074, %v1074
    %v1139 = vpack.c.b16 %v1075, %v1075
    %v1140 = vpack.c.b16 %v1076, %v1076
    %v1141 = vpack.c.b16 %v1077, %v1077
    %v1142 = vpack.c.b16 %v1078, %v1078
    %v1143 = vpack.c.b16 %v1079, %v1079
    %v1144 = vpack.c.b16 %v1080, %v1080
    %v1145 = vpack.c.b16 %v1081, %v1081
    %v1146 = vpack.c.b16 %v1082, %v1082
    %v1147 = vpack.c.b16 %v1083, %v1083
    %v1148 = vpack.c.b16 %v1084, %v1084
    %v1149 = vpack.c.b16 %v1085, %v1085
    %v1150 = vpack.c.b16 %v1086, %v1086
    %v1151 = vpack.c.b16 %v1087, %v1087
    %v1152 = vpack.c.b16 %v1088, %v1088
    %v1153 = vpack.c.b16 %v1089, %v1089
    %v1154 = vpack.c.b16 %v1090, %v1090
    %v1155 = vpack.c.b16 %v1091, %v1091
    %v1156 = vpack.c.b16 %v1092, %v1092
    %v1157 = vpack.c.b16 %v1093, %v1093
    %v1158 = vpack.c.b16 %v1094, %v1094
    %v1159 = vpack.c.b16 %v1095, %v1095
    %v1160 = vpack.c.b16 %v1096, %v1096
    %v1161 = vpack.c.b16 %v1097, %v1097
    %v1162 = vpack.c.b16 %v1098, %v1098
    %v1163 = vpack.c.b16 %v1099, %v1099
    %v1164 = vpack.c.b16 %v1100, %v1100
    %v1165 = vpack.c.b16 %v1101, %v1101
    %v1166 = vpack.c.b16 %v1102, %v1102
    %v1167 = vpack.c.b16 %v1103, %v1103
    %v1168 = vpack.c.b16 %v1104, %v1104
    %v1169 = vpack.c.b16 %v1105, %v1105
    %v1170 = vpack.c.b16 %v1106, %v1106
    %v1171 = vpack.c.b16 %v1107, %v1107
    %v1172 = vpack.c.b16 %v1108, %v1108
    %v1173 = vpack.c.b16 %v1109, %v1109
    %v1174 = vpack.c.b16 %v1110, %v1110
    %v1175 = vpack.c.b16 %v1111, %v1111
    %v1176 = vpack.c.b16 %v1112, %v1112
    %v1177 = vpack.c.b16 %v1113, %v1113
    %v1178 = vpack.c.b16 %v1114, %v1114
    %v1179 = vpack.c.b16 %v1115, %v1115
    %v1180 = vpack.c.b16 %v1116, %v1116
    %v1181 = vpack.c.b16 %v1117, %v1117
    %v1182 = vpack.c.b16 %v1118, %v1118
    %v1183 = vpack.c.b16 %v1119, %v1119
    %v1184 = vpack.c.b16 %v1120, %v1120
    %v1185 = vpack.c.b16 %v1121, %v1121
    %v1186 = vpack.c.b16 %v1122, %v1122
    %v1187 = vpack.c.b16 %v1123, %v1123
    %v1188 = vpack.c.b16 %v1124, %v1124
    %v1189 = vpack.c.b16 %v1125, %v1125
    %v1190 = vpack.c.b16 %v1126, %v1126
    %v1191 = vpack.c.b16 %v1127, %v1127
    %v1192 = vpack.c.b16 %v1128, %v1128
    %v1193 = vpack.c.b16 %v1129, %v1129
    %v1194 = vpack.c.b16 %v1130, %v1130
    %v1195 = vpack.c.b16 %v1131, %v1131
    %v1196 = vpack.c.b16 %v1132, %v1132
    %v1197 = vpack.c.b16 %v1133, %v1133
    %v1198 = vpack.c.b16 %v1134, %v1134
    %v1199 = vpack.c.b16 %v1135, %v1135
    %1264 = vst [vmem:[%s6] sm:$0xf] %v1136
    %1265 = vst [vmem:[%s6 + $0x4] sm:$0xf] %v1137
    %1266 = vst [vmem:[%s6 + $0x8] sm:$0xf] %v1138
    %1267 = vst [vmem:[%s6 + $0xc] sm:$0xf] %v1139
    %1268 = vst [vmem:[%s6 + $0x10] sm:$0xf] %v1140
    %1269 = vst [vmem:[%s6 + $0x14] sm:$0xf] %v1141
    %1270 = vst [vmem:[%s6 + $0x18] sm:$0xf] %v1142
    %1271 = vst [vmem:[%s6 + $0x1c] sm:$0xf] %v1143
    %1272 = vst [vmem:[%s6 + $0x20] sm:$0xf] %v1144
    %1273 = vst [vmem:[%s6 + $0x24] sm:$0xf] %v1145
    %1274 = vst [vmem:[%s6 + $0x28] sm:$0xf] %v1146
    %1275 = vst [vmem:[%s6 + $0x2c] sm:$0xf] %v1147
    %1276 = vst [vmem:[%s6 + $0x30] sm:$0xf] %v1148
    %1277 = vst [vmem:[%s6 + $0x34] sm:$0xf] %v1149
    %1278 = vst [vmem:[%s6 + $0x38] sm:$0xf] %v1150
    %1279 = vst [vmem:[%s6 + $0x3c] sm:$0xf] %v1151
    %1280 = vst [vmem:[%s6 + $0x40] sm:$0xf] %v1152
    %1281 = vst [vmem:[%s6 + $0x44] sm:$0xf] %v1153
    %1282 = vst [vmem:[%s6 + $0x48] sm:$0xf] %v1154
    %1283 = vst [vmem:[%s6 + $0x4c] sm:$0xf] %v1155
    %1284 = vst [vmem:[%s6 + $0x50] sm:$0xf] %v1156
    %1285 = vst [vmem:[%s6 + $0x54] sm:$0xf] %v1157
    %1286 = vst [vmem:[%s6 + $0x58] sm:$0xf] %v1158
    %1287 = vst [vmem:[%s6 + $0x5c] sm:$0xf] %v1159
    %1288 = vst [vmem:[%s6 + $0x60] sm:$0xf] %v1160
    %1289 = vst [vmem:[%s6 + $0x64] sm:$0xf] %v1161
    %1290 = vst [vmem:[%s6 + $0x68] sm:$0xf] %v1162
    %1291 = vst [vmem:[%s6 + $0x6c] sm:$0xf] %v1163
    %1292 = vst [vmem:[%s6 + $0x70] sm:$0xf] %v1164
    %1293 = vst [vmem:[%s6 + $0x74] sm:$0xf] %v1165
    %1294 = vst [vmem:[%s6 + $0x78] sm:$0xf] %v1166
    %1295 = vst [vmem:[%s6 + $0x7c] sm:$0xf] %v1167
    %1296 = vst [vmem:[%s6 + $0x80] sm:$0xf] %v1168
    %1297 = vst [vmem:[%s6 + $0x84] sm:$0xf] %v1169
    %1298 = vst [vmem:[%s6 + $0x88] sm:$0xf] %v1170
    %1299 = vst [vmem:[%s6 + $0x8c] sm:$0xf] %v1171
    %1300 = vst [vmem:[%s6 + $0x90] sm:$0xf] %v1172
    %1301 = vst [vmem:[%s6 + $0x94] sm:$0xf] %v1173
    %1302 = vst [vmem:[%s6 + $0x98] sm:$0xf] %v1174
    %1303 = vst [vmem:[%s6 + $0x9c] sm:$0xf] %v1175
    %1304 = vst [vmem:[%s6 + $0xa0] sm:$0xf] %v1176
    %1305 = vst [vmem:[%s6 + $0xa4] sm:$0xf] %v1177
    %1306 = vst [vmem:[%s6 + $0xa8] sm:$0xf] %v1178
    %1307 = vst [vmem:[%s6 + $0xac] sm:$0xf] %v1179
    %1308 = vst [vmem:[%s6 + $0xb0] sm:$0xf] %v1180
    %1309 = vst [vmem:[%s6 + $0xb4] sm:$0xf] %v1181
    %1310 = vst [vmem:[%s6 + $0xb8] sm:$0xf] %v1182
    %1311 = vst [vmem:[%s6 + $0xbc] sm:$0xf] %v1183
    %1312 = vst [vmem:[%s6 + $0xc0] sm:$0xf] %v1184
    %1313 = vst [vmem:[%s6 + $0xc4] sm:$0xf] %v1185
    %1314 = vst [vmem:[%s6 + $0xc8] sm:$0xf] %v1186
    %1315 = vst [vmem:[%s6 + $0xcc] sm:$0xf] %v1187
    %1316 = vst [vmem:[%s6 + $0xd0] sm:$0xf] %v1188
    %1317 = vst [vmem:[%s6 + $0xd4] sm:$0xf] %v1189
    %1318 = vst [vmem:[%s6 + $0xd8] sm:$0xf] %v1190
    %1319 = vst [vmem:[%s6 + $0xdc] sm:$0xf] %v1191
    %1320 = vst [vmem:[%s6 + $0xe0] sm:$0xf] %v1192
    %1321 = vst [vmem:[%s6 + $0xe4] sm:$0xf] %v1193
    %1322 = vst [vmem:[%s6 + $0xe8] sm:$0xf] %v1194
    %1323 = vst [vmem:[%s6 + $0xec] sm:$0xf] %v1195
    %1324 = vst [vmem:[%s6 + $0xf0] sm:$0xf] %v1196
    %1325 = vst [vmem:[%s6 + $0xf4] sm:$0xf] %v1197
    %1326 = vst [vmem:[%s6 + $0xf8] sm:$0xf] %v1198
    %1327 = vst [vmem:[%s6 + $0xfc] sm:$0xf] %v1199
    // Predicated region
    $region50: #{bottleneck_forward_nhwc.2} parent=1 // pred_check
      _
    $region51: #{bottleneck_forward_nhwc.2} parent=1 // pred_check_branch
      %1329 = sbr.rel (0) target = $region53
    $region52: #{bottleneck_forward_nhwc.2} parent=1 // pred_region
      _
    $region53: #{bottleneck_forward_nhwc.2} parent=1 // pred_fallthru
      _
    // Predicated region
    $region54: #{bottleneck_forward_nhwc.2} parent=1 // pred_check
      _
    $region55: #{bottleneck_forward_nhwc.2} parent=1 // pred_check_branch
      %1331 = sbr.rel (0) target = $region57
    $region56: #{bottleneck_forward_nhwc.2} parent=1 // pred_region
      _
    $region57: #{bottleneck_forward_nhwc.2} parent=1 // pred_fallthru
      _
    %1332 = vsyncpa [#allocation3], 1
    %1333 = vsyncpa [#allocation5], 1
    %1334 = vsyncpa [#allocation8], 1
    %1335 = vsyncpa [#allocation11], 1

// kernel: bottleneck_forward_nhwc.3
$region0: #{bottleneck_forward_nhwc.3}
  #allocation0 [shape = 'u32[]', space=smem, size = 0x4, offset = 0x4, fixed_abs, tag = 'smem constant byte address 0x4 - core index']
  #allocation1 [shape = 'u32[144,128]{1,0:T(1,128)}', space=vmem, size = 0x12000, scoped, tag = 'internal scratch']
  #allocation2 [shape = 'bf16[198,128]{1,0:T(8,128)(2,1)}', space=vmem, size = 0xc800, scoped, tag = 'scratch operand']
  %s0 = inlined_call_operand.vmem [shape: bf16[2,256,128], index: 0, kind: input, shape index: {}]
  %s1 = inlined_call_operand.hbm [shape: bf16[1152,128], index: 1, kind: input, shape index: {}]
  %s2 = inlined_call_operand.vmem [shape: f32[1,128], index: 2, kind: input, shape index: {}]
  %s3 = inlined_call_operand.vmem [shape: f32[1,128], index: 3, kind: input, shape index: {}]
  %s4 = inlined_call_operand.vmem [shape: bf16[128,32], index: 4, kind: input, shape index: {}]
  %s5 = inlined_call_operand.vmem [shape: f32[2,256,32], index: 5, kind: input, shape index: {}]
  %s6 = inlined_call_operand.hbm [shape: f32[2,256,32], index: 6, kind: output, shape index: {}]
  %s7 = sld [smem:[#allocation0]]
  $region69: #{bottleneck_forward_nhwc.3} parent=0
    _
  %s9 = ssub.s32 1, %s7
  %s10 = scalar_select 0, %s9, %s7
  $region1: #{bottleneck_forward_nhwc.3} parent=0
    #allocation3 [shape = 'u8[294912]{0}', space=vmem, size = 0x48000, scoped, tag = 'input window, operand 1, single buffered']
    #allocation4 [shape = 's32[2]{0}', space=sflag, size = 0x8, scoped, tag = 'scoped memory for bottleneck_forward_nhwc.3']
    #allocation5 [shape = 's32[2]{0}', space=sflag, size = 0x8, scoped, tag = 'scoped memory for bottleneck_forward_nhwc.3']
    #allocation6 [shape = 'u8[131072]{0}', space=vmem, size = 0x20000, scoped, tag = 'output window, operand 0']
    %11 = vsyncpa [#allocation4], 0
    %12 = vsyncpa [#allocation5], 0
    %s13 = scalar_lea.sflag [#allocation5], 1
    %14 = vsyncpa %s13, 0
    loop: start=0, step=1, limit=6
    $region2: #{bottleneck_forward_nhwc.3} parent=1 // loop_pre_header
      _
    $region3: #{bottleneck_forward_nhwc.3} parent=1 // loop_header
      %s16 = sphi 0, %s20
      %p17 = scmp.ge.s32.totalorder %s16, 6
      %s23 = sphi 0, %s35
      %s24 = sphi 0, %s31
      %s25 = sphi 0, %s23
      %s26 = sphi 0, %s24
      %s27 = sphi 0, %s25
      %s28 = sphi 0, %s26
      %s38 = sphi 0, %s40
      %s41 = sphi 0, %s38
      %s42 = sphi 0, %s41
      %s58 = sphi 0, %s42
      %s62 = sphi 0, %s62
      %s64 = sphi 0, %s62
      %s65 = sphi 0, %s64
      %s79 = sphi 0, %s65
      %s83 = sphi 0, %s83
      %s85 = sphi 0, %s83
      %s86 = sphi 0, %s85
      %s100 = sphi 0, %s86
      %s104 = sphi 0, %s104
      %s106 = sphi 0, %s104
      %s107 = sphi 0, %s106
      %s121 = sphi 0, %s107
      %s125 = sphi 0, %s125
      %s127 = sphi 0, %s125
      %s128 = sphi 0, %s127
      %s142 = sphi 0, %s128
      %s150 = sphi 0, %s152
      %s153 = sphi 0, %s150
      %s154 = sphi 0, %s153
      %s170 = sphi 0, %s154
      %s178 = sphi 0, %s180
      %s181 = sphi 0, %s178
      %s182 = sphi 0, %s181
      %s198 = sphi 0, %s182
    $region4: #{bottleneck_forward_nhwc.3} parent=1 // loop_header_branch
      %19 = sbr.rel (%p17) target = $region8
    $region5: #{bottleneck_forward_nhwc.3} parent=1 // loop_body
      %s21 = ssub.s32 %s16, 1
      %s22 = ssub.s32 %s16, 2
      %s29 = sadd.s32 1, %s24
      %p30 = scmp.ge.s32.totalorder %s29, 2
      %s31 = scalar_select %p30, 0, %s29
      %s32 = sadd.s32 1, %s23
      %s33 = scalar_select %p30, %s32, %s23
      %p34 = scmp.ge.s32.totalorder %s33, 2
      %s35 = scalar_select %p34, 0, %s33
      %s36 = ssub.s32 %s23, %s35
      %p37 = scmp.eq.s32.totalorder %s36, 0
      %s39 = sadd.s32 %s38, 1
      %s40 = scalar_select %p37, %s38, %s39
      %p43 = pneg %p37
      %p44 = scmp.eq.s32.totalorder %s16, 3
      %p45 = por %p43, %p44
      %p46 = scmp.ne.s32.totalorder %s38, %s41
      %p47 = scmp.eq.s32.totalorder %s16, 0
      %p48 = por %p46, %p47
      %p49 = scmp.ne.s32.totalorder %s38, %s41
      %p50 = scmp.eq.s32.totalorder %s21, 3
      %p51 = por %p49, %p50
      %p52 = scmp.ne.s32.totalorder %s41, %s42
      %p53 = scmp.eq.s32.totalorder %s21, 0
      %p54 = por %p52, %p53
      %p55 = scmp.ne.s32.totalorder %s41, %s42
      %p56 = scmp.eq.s32.totalorder %s22, 3
      %p57 = por %p55, %p56
      %p59 = scmp.ne.s32.totalorder %s42, %s58
      %p60 = scmp.eq.s32.totalorder %s22, 0
      %p61 = por %p59, %p60
      %s63 = sadd.s32 %s62, 1
      %p66 = scmp.eq.s32.totalorder %s16, 3
      %p67 = scmp.ne.s32.totalorder %s62, %s64
      %p68 = scmp.eq.s32.totalorder %s16, 0
      %p69 = por %p67, %p68
      %p70 = scmp.ne.s32.totalorder %s62, %s64
      %p71 = scmp.eq.s32.totalorder %s21, 3
      %p72 = por %p70, %p71
      %p73 = scmp.ne.s32.totalorder %s64, %s65
      %p74 = scmp.eq.s32.totalorder %s21, 0
      %p75 = por %p73, %p74
      %p76 = scmp.ne.s32.totalorder %s64, %s65
      %p77 = scmp.eq.s32.totalorder %s22, 3
      %p78 = por %p76, %p77
      %p80 = scmp.ne.s32.totalorder %s65, %s79
      %p81 = scmp.eq.s32.totalorder %s22, 0
      %p82 = por %p80, %p81
      %s84 = sadd.s32 %s83, 1
      %p87 = scmp.eq.s32.totalorder %s16, 3
      %p88 = scmp.ne.s32.totalorder %s83, %s85
      %p89 = scmp.eq.s32.totalorder %s16, 0
      %p90 = por %p88, %p89
      %p91 = scmp.ne.s32.totalorder %s83, %s85
      %p92 = scmp.eq.s32.totalorder %s21, 3
      %p93 = por %p91, %p92
      %p94 = scmp.ne.s32.totalorder %s85, %s86
      %p95 = scmp.eq.s32.totalorder %s21, 0
      %p96 = por %p94, %p95
      %p97 = scmp.ne.s32.totalorder %s85, %s86
      %p98 = scmp.eq.s32.totalorder %s22, 3
      %p99 = por %p97, %p98
      %p101 = scmp.ne.s32.totalorder %s86, %s100
      %p102 = scmp.eq.s32.totalorder %s22, 0
      %p103 = por %p101, %p102
      %s105 = sadd.s32 %s104, 1
      %p108 = scmp.eq.s32.totalorder %s16, 3
      %p109 = scmp.ne.s32.totalorder %s104, %s106
      %p110 = scmp.eq.s32.totalorder %s16, 0
      %p111 = por %p109, %p110
      %p112 = scmp.ne.s32.totalorder %s104, %s106
      %p113 = scmp.eq.s32.totalorder %s21, 3
      %p114 = por %p112, %p113
      %p115 = scmp.ne.s32.totalorder %s106, %s107
      %p116 = scmp.eq.s32.totalorder %s21, 0
      %p117 = por %p115, %p116
      %p118 = scmp.ne.s32.totalorder %s106, %s107
      %p119 = scmp.eq.s32.totalorder %s22, 3
      %p120 = por %p118, %p119
      %p122 = scmp.ne.s32.totalorder %s107, %s121
      %p123 = scmp.eq.s32.totalorder %s22, 0
      %p124 = por %p122, %p123
      %s126 = sadd.s32 %s125, 1
      %p129 = scmp.eq.s32.totalorder %s16, 3
      %p130 = scmp.ne.s32.totalorder %s125, %s127
      %p131 = scmp.eq.s32.totalorder %s16, 0
      %p132 = por %p130, %p131
      %p133 = scmp.ne.s32.totalorder %s125, %s127
      %p134 = scmp.eq.s32.totalorder %s21, 3
      %p135 = por %p133, %p134
      %p136 = scmp.ne.s32.totalorder %s127, %s128
      %p137 = scmp.eq.s32.totalorder %s21, 0
      %p138 = por %p136, %p137
      %p139 = scmp.ne.s32.totalorder %s127, %s128
      %p140 = scmp.eq.s32.totalorder %s22, 3
      %p141 = por %p139, %p140
      %p143 = scmp.ne.s32.totalorder %s128, %s142
      %p144 = scmp.eq.s32.totalorder %s22, 0
      %p145 = por %p143, %p144
      %s146 = ssub.s32 %s23, %s35
      %s147 = ssub.s32 %s24, %s31
      %s148 = sor.u32 %s146, %s147
      %p149 = scmp.eq.s32.totalorder %s148, 0
      %s151 = sadd.s32 %s150, 1
      %s152 = scalar_select %p149, %s150, %s151
      %p155 = pneg %p149
      %p156 = scmp.eq.s32.totalorder %s16, 3
      %p157 = por %p155, %p156
      %p158 = scmp.ne.s32.totalorder %s150, %s153
      %p159 = scmp.eq.s32.totalorder %s16, 0
      %p160 = por %p158, %p159
      %p161 = scmp.ne.s32.totalorder %s150, %s153
      %p162 = scmp.eq.s32.totalorder %s21, 3
      %p163 = por %p161, %p162
      %p164 = scmp.ne.s32.totalorder %s153, %s154
      %p165 = scmp.eq.s32.totalorder %s21, 0
      %p166 = por %p164, %p165
      %p167 = scmp.ne.s32.totalorder %s153, %s154
      %p168 = scmp.eq.s32.totalorder %s22, 3
      %p169 = por %p167, %p168
      %p171 = scmp.ne.s32.totalorder %s154, %s170
      %p172 = scmp.eq.s32.totalorder %s22, 0
      %p173 = por %p171, %p172
      %s174 = ssub.s32 %s23, %s35
      %s175 = ssub.s32 %s24, %s31
      %s176 = sor.u32 %s174, %s175
      %p177 = scmp.eq.s32.totalorder %s176, 0
      %s179 = sadd.s32 %s178, 1
      %s180 = scalar_select %p177, %s178, %s179
      %p183 = pneg %p177
      %p184 = scmp.eq.s32.totalorder %s16, 3
      %p185 = por %p183, %p184
      %p186 = scmp.ne.s32.totalorder %s178, %s181
      %p187 = scmp.eq.s32.totalorder %s16, 0
      %p188 = por %p186, %p187
      %p189 = scmp.ne.s32.totalorder %s178, %s181
      %p190 = scmp.eq.s32.totalorder %s21, 3
      %p191 = por %p189, %p190
      %p192 = scmp.ne.s32.totalorder %s181, %s182
      %p193 = scmp.eq.s32.totalorder %s21, 0
      %p194 = por %p192, %p193
      %p195 = scmp.ne.s32.totalorder %s181, %s182
      %p196 = scmp.eq.s32.totalorder %s22, 3
      %p197 = por %p195, %p196
      %p199 = scmp.ne.s32.totalorder %s182, %s198
      %p200 = scmp.eq.s32.totalorder %s22, 0
      %p201 = por %p199, %p200
      %p202 = scmp.le.s32.totalorder 1, %s16
      %p203 = scmp.lt.s32.totalorder %s16, 5
      %p204 = pnand %p202, %p203
      %p205 = pneg %p204
      // Predicated region
      $region9: #{bottleneck_forward_nhwc.3} parent=5 // pred_check
        _
      $region10: #{bottleneck_forward_nhwc.3} parent=5 // pred_check_branch
        %207 = sbr.rel (%p204) target = $region12
      $region11: #{bottleneck_forward_nhwc.3} parent=5 // pred_region
        %s208 = ssub.s32 %s16, 1
        // Predicated region
        $region13: #{bottleneck_forward_nhwc.3} parent=11 // pred_check
          %p209 = pneg %p75
        $region14: #{bottleneck_forward_nhwc.3} parent=11 // pred_check_branch
          %211 = sbr.rel (%p209) target = $region16
        $region15: #{bottleneck_forward_nhwc.3} parent=11 // pred_region
          %s213 = ssub.s32 9216, 9216
          %214 = vsyncadd [#allocation4], %s213
          %s215 = sshll.u32 [#allocation3], 4
          %s216 = int_to_ptr.vmem [resolvable:$true] %s215
          %221 = dma.hbm_to_vmem [thread:$0]  %s1, 9216, %s216, [#allocation4], 64, 64, 4
        $region16: #{bottleneck_forward_nhwc.3} parent=11 // pred_fallthru
          _
        // Predicated region
        $region17: #{bottleneck_forward_nhwc.3} parent=11 // pred_check
          %p222 = pneg %p96
        $region18: #{bottleneck_forward_nhwc.3} parent=11 // pred_check_branch
          %224 = sbr.rel (%p222) target = $region20
        $region19: #{bottleneck_forward_nhwc.3} parent=11 // pred_region
          _
        $region20: #{bottleneck_forward_nhwc.3} parent=11 // pred_fallthru
          _
        // Predicated region
        $region21: #{bottleneck_forward_nhwc.3} parent=11 // pred_check
          %p225 = pneg %p117
        $region22: #{bottleneck_forward_nhwc.3} parent=11 // pred_check_branch
          %227 = sbr.rel (%p225) target = $region24
        $region23: #{bottleneck_forward_nhwc.3} parent=11 // pred_region
          _
        $region24: #{bottleneck_forward_nhwc.3} parent=11 // pred_fallthru
          _
        // Predicated region
        $region25: #{bottleneck_forward_nhwc.3} parent=11 // pred_check
          %p228 = pneg %p138
        $region26: #{bottleneck_forward_nhwc.3} parent=11 // pred_check_branch
          %230 = sbr.rel (%p228) target = $region28
        $region27: #{bottleneck_forward_nhwc.3} parent=11 // pred_region
          _
        $region28: #{bottleneck_forward_nhwc.3} parent=11 // pred_fallthru
          _
      $region12: #{bottleneck_forward_nhwc.3} parent=5 // pred_fallthru
        _
      %p231 = scmp.lt.s32.totalorder %s16, 4
      // Predicated region
      $region29: #{bottleneck_forward_nhwc.3} parent=5 // pred_check
        %p232 = pneg %p231
      $region30: #{bottleneck_forward_nhwc.3} parent=5 // pred_check_branch
        %234 = sbr.rel (%p232) target = $region32
      $region31: #{bottleneck_forward_nhwc.3} parent=5 // pred_region
        // Predicated region
        $region33: #{bottleneck_forward_nhwc.3} parent=31 // pred_check
          %p235 = pneg %p48
        $region34: #{bottleneck_forward_nhwc.3} parent=31 // pred_check_branch
          %237 = sbr.rel (%p235) target = $region36
        $region35: #{bottleneck_forward_nhwc.3} parent=31 // pred_region
          %p238 = scmp.lt.s32.totalorder %s23, 1
          %s239 = scalar_select %p238, %s23, 1
          %s240 = smul.addr %s239, 32
          %s241 = smul.addr %s240, 4
          %s242 = scalar_lea.vmem %s0, %s241
        $region36: #{bottleneck_forward_nhwc.3} parent=31 // pred_fallthru
          _
        // Predicated region
        $region37: #{bottleneck_forward_nhwc.3} parent=31 // pred_check
          %p243 = pneg %p160
        $region38: #{bottleneck_forward_nhwc.3} parent=31 // pred_check_branch
          %245 = sbr.rel (%p243) target = $region40
        $region39: #{bottleneck_forward_nhwc.3} parent=31 // pred_region
          %s246 = smul.u32 16, %s24
          %p247 = scmp.lt.s32.totalorder %s23, 1
          %s248 = scalar_select %p247, %s23, 1
          %p249 = scmp.lt.s32.totalorder %s246, 31
          %s250 = scalar_select %p249, %s246, 31
          %s251 = smul.addr %s248, 32
          %s252 = sadd.s32 %s250, %s251
          %s253 = smul.addr %s252, 8
          %s254 = scalar_lea.vmem %s5, %s253
          %s255 = smul.u32 16, %s24
        $region40: #{bottleneck_forward_nhwc.3} parent=31 // pred_fallthru
          _
      $region32: #{bottleneck_forward_nhwc.3} parent=5 // pred_fallthru
        _
      %p256 = scmp.le.s32.totalorder 1, %s16
      %p257 = scmp.lt.s32.totalorder %s16, 5
      %p258 = pnand %p256, %p257
      %p259 = pneg %p258
      // Predicated region
      $region41: #{bottleneck_forward_nhwc.3} parent=5 // pred_check
        _
      $region42: #{bottleneck_forward_nhwc.3} parent=5 // pred_check_branch
        %261 = sbr.rel (%p258) target = $region44
      $region43: #{bottleneck_forward_nhwc.3} parent=5 // pred_region
        %s262 = ssub.s32 %s16, 1
        // Predicated region
        $region45: #{bottleneck_forward_nhwc.3} parent=43 // pred_check
          %p263 = pneg %p75
        $region46: #{bottleneck_forward_nhwc.3} parent=43 // pred_check_branch
          %265 = sbr.rel (%p263) target = $region48
        $region47: #{bottleneck_forward_nhwc.3} parent=43 // pred_region
          %266 = dma.done [#allocation4], 9216
        $region48: #{bottleneck_forward_nhwc.3} parent=43 // pred_fallthru
          _
        %p267 = scmp.lt.s32.totalorder %s25, 1
        %s268 = scalar_select %p267, %s25, 1
        %s269 = smul.addr %s268, 32
        %s270 = smul.addr %s269, 4
        %s271 = scalar_lea.vmem %s0, %s270
        %p272 = pneg %p54
        %p273 = pneg %p51
        %p274 = pneg %p75
        %p275 = pneg %p72
        %p276 = pneg %p96
        %p277 = pneg %p93
        %p278 = pneg %p117
        %p279 = pneg %p114
        %p280 = pneg %p138
        %p281 = pneg %p135
        %s282 = smul.u32 16, %s26
        %p283 = scmp.lt.s32.totalorder %s25, 1
        %s284 = scalar_select %p283, %s25, 1
        %p285 = scmp.lt.s32.totalorder %s282, 31
        %s286 = scalar_select %p285, %s282, 31
        %s287 = smul.addr %s284, 32
        %s288 = sadd.s32 %s286, %s287
        %s289 = smul.addr %s288, 8
        %s290 = scalar_lea.vmem %s5, %s289
        %p291 = pneg %p166
        %p292 = pneg %p163
        %p293 = pneg %p194
        %p294 = pneg %p191
        %s295 = sand.u32 %s181, 1
        %s296 = scalar_lea.sflag [#allocation5], %s295
        %s297 = sand.u32 %s181, 1
        %s298 = smul.addr %s297, 128
        %s299 = scalar_lea.vmem [#allocation6], %s298
        %p300 = scmp.lt.s32.totalorder %s25, 1
        %s301 = scalar_select %p300, %s25, 1
        %s302 = smul.addr %s301, 32
        %s303 = smul.addr %s302, 4
        %s304 = scalar_lea.vmem %s0, %s303
        %s305 = smul.u32 16, %s26
        %p306 = scmp.lt.s32.totalorder %s25, 1
        %s307 = scalar_select %p306, %s25, 1
        %p308 = scmp.lt.s32.totalorder %s305, 31
        %s309 = scalar_select %p308, %s305, 31
        %s310 = smul.addr %s307, 32
        %s311 = sadd.s32 %s309, %s310
        %s312 = smul.addr %s311, 8
        %s313 = scalar_lea.vmem %s5, %s312
        %s314 = smul.u32 16, %s26
        %s315 = smul.u32 16, %s26
        %317 = vst [vmem:[#allocation2] sm:$0xf] 0
        %318 = vst [vmem:[#allocation2 + $0x4] sm:$0xf] 0
        %319 = vst [vmem:[#allocation2 + $0x8] sm:$0xf] 0
        %320 = vst [vmem:[#allocation2 + $0xc] sm:$0xf] 0
        %321 = vst [vmem:[#allocation2 + $0x10] sm:$0xf] 0
        %322 = vst [vmem:[#allocation2 + $0x14] sm:$0xf] 0
        %323 = vst [vmem:[#allocation2 + $0x18] sm:$0xf] 0
        %324 = vst [vmem:[#allocation2 + $0x1c] sm:$0xf] 0
        %325 = vst [vmem:[#allocation2 + $0x20] sm:$0xf] 0
        %326 = vst [vmem:[#allocation2 + $0x24] sm:$0xf] 0
        %327 = vst [vmem:[#allocation2 + $0x28] sm:$0xf] 0
        %328 = vst [vmem:[#allocation2 + $0x2c] sm:$0xf] 0
        %329 = vst [vmem:[#allocation2 + $0x30] sm:$0xf] 0
        %330 = vst [vmem:[#allocation2 + $0x34] sm:$0xf] 0
        %331 = vst [vmem:[#allocation2 + $0x38] sm:$0xf] 0
        %332 = vst [vmem:[#allocation2 + $0x3c] sm:$0xf] 0
        %333 = vst [vmem:[#allocation2 + $0x40] sm:$0xf] 0
        %334 = vst [vmem:[#allocation2 + $0x44] sm:$0xf] 0
        %335 = vst [vmem:[#allocation2 + $0x48] sm:$0xf] 0
        %336 = vst [vmem:[#allocation2 + $0x4c] sm:$0xf] 0
        %337 = vst [vmem:[#allocation2 + $0x50] sm:$0xf] 0
        %338 = vst [vmem:[#allocation2 + $0x54] sm:$0xf] 0
        %339 = vst [vmem:[#allocation2 + $0x58] sm:$0xf] 0
        %340 = vst [vmem:[#allocation2 + $0x5c] sm:$0xf] 0
        %341 = vst [vmem:[#allocation2 + $0x60] sm:$0x7] 0
        %s342 = smul.u32 %s26, 8
        %s343 = ssub.s32 %s342, 1
        %p344 = scmp.gt.s32.totalorder %s343, 0
        %s345 = scalar_select %p344, %s343, 0
        %p346 = scmp.lt.s32.totalorder %s345, 15
        %s347 = scalar_select %p346, %s345, 15
        %s348 = smul.u32 %s347, 16
        %s349 = sshra.s32 %s348, 3
        %s350 = sand.u32 %s348, 7
        %s351 = smul.addr %s349, 4
        %s352 = scalar_lea.vmem %s304, %s351
        %v353 = vld [vmem:[%s352] sm:$0xf]
        %v354 = vld [vmem:[%s352 + $0x4] sm:$0xf]
        %vm355 = vsmask.f32 256
        %vm356 = vsmask.f32 4368
        %vm357 = vmor %vm355, %vm356
        %v359 = vshrl.u32 %v353, 16
        %v361 = vrot.slane %v359, 7
        %v362 = vshll.u32 %v353, 16
        %v364 = vor.u32 %v361, %v362
        %v365 = vrot.slane %v361, 4
        %v367 = vshrl.u32 %v354, 16
        %v369 = vrot.slane %v367, 7
        %v370 = vshll.u32 %v354, 16
        %v372 = vor.u32 %v369, %v370
        %v373 = vsel %vm357, %v365, %v372
        %v374 = vrot.slane %v369, 4
        %vm378 = vcmask 1043456
        %vm379 = vsmask.f32 7938
        %vm380 = vmand %vm378, %vm379
        %v381 = vld [vmem:[#allocation2] sm:$0xf]
        %v382 = vsel %vm380, %v364, %v381
        %383 = vst [vmem:[#allocation2] sm:$0xf] %v382
        %384 = vst [vmem:[#allocation2 + $0x4] sm:$0xf] %v373
        %vm385 = vcmask 1040384
        %vm386 = vmand %vm385, %vm355
        %v387 = vld [vmem:[#allocation2 + $0x8] sm:$0x1]
        %v388 = vsel %vm386, %v374, %v387
        %389 = vst [vmem:[#allocation2 + $0x8] sm:$0x1] %v388
        %p390 = scmp.gt.s32.totalorder %s342, 0
        %s391 = scalar_select %p390, %s342, 0
        %p392 = scmp.lt.s32.totalorder %s391, 15
        %s393 = scalar_select %p392, %s391, 15
        %s394 = smul.u32 %s393, 16
        %s395 = sshra.s32 %s394, 3
        %s396 = sand.u32 %s394, 7
        %s397 = smul.addr %s395, 4
        %s398 = scalar_lea.vmem %s304, %s397
        %v399 = vld [vmem:[%s398] sm:$0xf]
        %v400 = vld [vmem:[%s398 + $0x4] sm:$0xf]
        %vm401 = vsmask.f32 1280
        %vm402 = vsmask.f32 5392
        %vm403 = vmor %vm401, %vm402
        %v405 = vshrl.u32 %v399, 16
        %v407 = vrot.slane %v405, 6
        %v408 = vshll.u32 %v399, 16
        %v410 = vrot.slane %v408, 7
        %v411 = vor.u32 %v407, %v410
        %v412 = vrot.slane %v411, 4
        %v414 = vshrl.u32 %v400, 16
        %v416 = vrot.slane %v414, 6
        %v417 = vshll.u32 %v400, 16
        %v419 = vrot.slane %v417, 7
        %v420 = vor.u32 %v416, %v419
        %v421 = vsel %vm403, %v412, %v420
        %v422 = vrot.slane %v420, 4
        %vm426 = vcmask 1043457
        %vm427 = vsmask.f32 7942
        %vm428 = vmand %vm426, %vm427
        %v429 = vld [vmem:[#allocation2 + $0x8] sm:$0xe]
        %v430 = vsel %vm428, %v411, %v429
        %431 = vst [vmem:[#allocation2 + $0x8] sm:$0xe] %v430
        %432 = vst [vmem:[#allocation2 + $0xc] sm:$0xf] %v421
        %vm433 = vcmask 1041408
        %vm434 = vmand %vm433, %vm401
        %v435 = vld [vmem:[#allocation2 + $0x10] sm:$0x3]
        %v436 = vsel %vm434, %v422, %v435
        %437 = vst [vmem:[#allocation2 + $0x10] sm:$0x3] %v436
        %s438 = sadd.s32 %s342, 1
        %p439 = scmp.gt.s32.totalorder %s438, 0
        %s440 = scalar_select %p439, %s438, 0
        %p441 = scmp.lt.s32.totalorder %s440, 15
        %s442 = scalar_select %p441, %s440, 15
        %s443 = smul.u32 %s442, 16
        %s444 = sshra.s32 %s443, 3
        %s445 = sand.u32 %s443, 7
        %s446 = smul.addr %s444, 4
        %s447 = scalar_lea.vmem %s304, %s446
        %v448 = vld [vmem:[%s447] sm:$0xf]
        %v449 = vld [vmem:[%s447 + $0x4] sm:$0xf]
        %vm450 = vsmask.f32 2304
        %vm451 = vsmask.f32 6416
        %vm452 = vmor %vm450, %vm451
        %v454 = vshrl.u32 %v448, 16
        %v456 = vrot.slane %v454, 5
        %v457 = vshll.u32 %v448, 16
        %v459 = vrot.slane %v457, 6
        %v460 = vor.u32 %v456, %v459
        %v461 = vrot.slane %v460, 4
        %v463 = vshrl.u32 %v449, 16
        %v465 = vrot.slane %v463, 5
        %v466 = vshll.u32 %v449, 16
        %v468 = vrot.slane %v466, 6
        %v469 = vor.u32 %v465, %v468
        %v470 = vsel %vm452, %v461, %v469
        %v471 = vrot.slane %v469, 4
        %vm475 = vcmask 1043458
        %vm476 = vsmask.f32 7946
        %vm477 = vmand %vm475, %vm476
        %v478 = vld [vmem:[#allocation2 + $0x10] sm:$0xc]
        %v479 = vsel %vm477, %v460, %v478
        %480 = vst [vmem:[#allocation2 + $0x10] sm:$0xc] %v479
        %481 = vst [vmem:[#allocation2 + $0x14] sm:$0xf] %v470
        %vm482 = vcmask 1042432
        %vm483 = vmand %vm482, %vm450
        %v484 = vld [vmem:[#allocation2 + $0x18] sm:$0x7]
        %v485 = vsel %vm483, %v471, %v484
        %486 = vst [vmem:[#allocation2 + $0x18] sm:$0x7] %v485
        %s487 = sadd.s32 %s342, 2
        %p488 = scmp.gt.s32.totalorder %s487, 0
        %s489 = scalar_select %p488, %s487, 0
        %p490 = scmp.lt.s32.totalorder %s489, 15
        %s491 = scalar_select %p490, %s489, 15
        %s492 = smul.u32 %s491, 16
        %s493 = sshra.s32 %s492, 3
        %s494 = sand.u32 %s492, 7
        %s495 = smul.addr %s493, 4
        %s496 = scalar_lea.vmem %s304, %s495
        %v497 = vld [vmem:[%s496] sm:$0xf]
        %v498 = vld [vmem:[%s496 + $0x4] sm:$0xf]
        %vm499 = vsmask.f32 3328
        %vm500 = vsmask.f32 7440
        %vm501 = vmor %vm499, %vm500
        %v503 = vshll.u32 %v497, 16
        %v505 = vrot.slane %v503, 5
        %v506 = vshrl.u32 %v497, 16
        %v508 = vrot.slane %v506, 4
        %v509 = vor.u32 %v508, %v505
        %v510 = vrot.slane %v509, 4
        %v512 = vshll.u32 %v498, 16
        %v514 = vrot.slane %v512, 5
        %v515 = vsel %vm501, %v510, %v514
        %v516 = vshrl.u32 %v498, 16
        %v518 = vrot.slane %v516, 4
        %v519 = vor.u32 %v518, %v514
        %v520 = vrot.slane %v519, 4
        %vm524 = vcmask 1043459
        %vm525 = vsmask.f32 7950
        %vm526 = vmand %vm524, %vm525
        %v527 = vld [vmem:[#allocation2 + $0x18] sm:$0x8]
        %v528 = vsel %vm526, %v505, %v527
        %529 = vst [vmem:[#allocation2 + $0x18] sm:$0x8] %v528
        %530 = vst [vmem:[#allocation2 + $0x1c] sm:$0xf] %v515
        %vm531 = vmand %vm378, %vm499
        %v532 = vld [vmem:[#allocation2 + $0x20] sm:$0xf]
        %v533 = vsel %vm531, %v520, %v532
        %534 = vst [vmem:[#allocation2 + $0x20] sm:$0xf] %v533
        %s535 = sadd.s32 %s342, 3
        %p536 = scmp.gt.s32.totalorder %s535, 0
        %s537 = scalar_select %p536, %s535, 0
        %p538 = scmp.lt.s32.totalorder %s537, 15
        %s539 = scalar_select %p538, %s537, 15
        %s540 = smul.u32 %s539, 16
        %s541 = sshra.s32 %s540, 3
        %s542 = sand.u32 %s540, 7
        %s543 = smul.addr %s541, 4
        %s544 = scalar_lea.vmem %s304, %s543
        %v545 = vld [vmem:[%s544] sm:$0xf]
        %v546 = vld [vmem:[%s544 + $0x4] sm:$0xf]
        %v548 = vshrl.u32 %v545, 16
        %v550 = vrot.slane %v548, 7
        %v551 = vshll.u32 %v545, 16
        %v553 = vor.u32 %v550, %v551
        %v554 = vrot.slane %v550, 4
        %v556 = vshrl.u32 %v546, 16
        %v558 = vrot.slane %v556, 7
        %v559 = vshll.u32 %v546, 16
        %v561 = vor.u32 %v558, %v559
        %v562 = vsel %vm357, %v554, %v561
        %v563 = vrot.slane %v558, 4
        %v567 = vld [vmem:[#allocation2 + $0x24] sm:$0xf]
        %v568 = vsel %vm380, %v553, %v567
        %569 = vst [vmem:[#allocation2 + $0x24] sm:$0xf] %v568
        %570 = vst [vmem:[#allocation2 + $0x28] sm:$0xf] %v562
        %v571 = vld [vmem:[#allocation2 + $0x2c] sm:$0x1]
        %v572 = vsel %vm386, %v563, %v571
        %573 = vst [vmem:[#allocation2 + $0x2c] sm:$0x1] %v572
        %s574 = sadd.s32 %s342, 4
        %p575 = scmp.gt.s32.totalorder %s574, 0
        %s576 = scalar_select %p575, %s574, 0
        %p577 = scmp.lt.s32.totalorder %s576, 15
        %s578 = scalar_select %p577, %s576, 15
        %s579 = smul.u32 %s578, 16
        %s580 = sshra.s32 %s579, 3
        %s581 = sand.u32 %s579, 7
        %s582 = smul.addr %s580, 4
        %s583 = scalar_lea.vmem %s304, %s582
        %v584 = vld [vmem:[%s583] sm:$0xf]
        %v585 = vld [vmem:[%s583 + $0x4] sm:$0xf]
        %v587 = vshrl.u32 %v584, 16
        %v589 = vrot.slane %v587, 6
        %v590 = vshll.u32 %v584, 16
        %v592 = vrot.slane %v590, 7
        %v593 = vor.u32 %v589, %v592
        %v594 = vrot.slane %v593, 4
        %v596 = vshrl.u32 %v585, 16
        %v598 = vrot.slane %v596, 6
        %v599 = vshll.u32 %v585, 16
        %v601 = vrot.slane %v599, 7
        %v602 = vor.u32 %v598, %v601
        %v603 = vsel %vm403, %v594, %v602
        %v604 = vrot.slane %v602, 4
        %v608 = vld [vmem:[#allocation2 + $0x2c] sm:$0xe]
        %v609 = vsel %vm428, %v593, %v608
        %610 = vst [vmem:[#allocation2 + $0x2c] sm:$0xe] %v609
        %611 = vst [vmem:[#allocation2 + $0x30] sm:$0xf] %v603
        %v612 = vld [vmem:[#allocation2 + $0x34] sm:$0x3]
        %v613 = vsel %vm434, %v604, %v612
        %614 = vst [vmem:[#allocation2 + $0x34] sm:$0x3] %v613
        %s615 = sadd.s32 %s342, 5
        %p616 = scmp.gt.s32.totalorder %s615, 0
        %s617 = scalar_select %p616, %s615, 0
        %p618 = scmp.lt.s32.totalorder %s617, 15
        %s619 = scalar_select %p618, %s617, 15
        %s620 = smul.u32 %s619, 16
        %s621 = sshra.s32 %s620, 3
        %s622 = sand.u32 %s620, 7
        %s623 = smul.addr %s621, 4
        %s624 = scalar_lea.vmem %s304, %s623
        %v625 = vld [vmem:[%s624] sm:$0xf]
        %v626 = vld [vmem:[%s624 + $0x4] sm:$0xf]
        %v628 = vshrl.u32 %v625, 16
        %v630 = vrot.slane %v628, 5
        %v631 = vshll.u32 %v625, 16
        %v633 = vrot.slane %v631, 6
        %v634 = vor.u32 %v630, %v633
        %v635 = vrot.slane %v634, 4
        %v637 = vshrl.u32 %v626, 16
        %v639 = vrot.slane %v637, 5
        %v640 = vshll.u32 %v626, 16
        %v642 = vrot.slane %v640, 6
        %v643 = vor.u32 %v639, %v642
        %v644 = vsel %vm452, %v635, %v643
        %v645 = vrot.slane %v643, 4
        %v649 = vld [vmem:[#allocation2 + $0x34] sm:$0xc]
        %v650 = vsel %vm477, %v634, %v649
        %651 = vst [vmem:[#allocation2 + $0x34] sm:$0xc] %v650
        %652 = vst [vmem:[#allocation2 + $0x38] sm:$0xf] %v644
        %v653 = vld [vmem:[#allocation2 + $0x3c] sm:$0x7]
        %v654 = vsel %vm483, %v645, %v653
        %655 = vst [vmem:[#allocation2 + $0x3c] sm:$0x7] %v654
        %s656 = sadd.s32 %s342, 6
        %p657 = scmp.gt.s32.totalorder %s656, 0
        %s658 = scalar_select %p657, %s656, 0
        %p659 = scmp.lt.s32.totalorder %s658, 15
        %s660 = scalar_select %p659, %s658, 15
        %s661 = smul.u32 %s660, 16
        %s662 = sshra.s32 %s661, 3
        %s663 = sand.u32 %s661, 7
        %s664 = smul.addr %s662, 4
        %s665 = scalar_lea.vmem %s304, %s664
        %v666 = vld [vmem:[%s665] sm:$0xf]
        %v667 = vld [vmem:[%s665 + $0x4] sm:$0xf]
        %v669 = vshll.u32 %v666, 16
        %v671 = vrot.slane %v669, 5
        %v672 = vshrl.u32 %v666, 16
        %v674 = vrot.slane %v672, 4
        %v675 = vor.u32 %v674, %v671
        %v676 = vrot.slane %v675, 4
        %v678 = vshll.u32 %v667, 16
        %v680 = vrot.slane %v678, 5
        %v681 = vsel %vm501, %v676, %v680
        %v682 = vshrl.u32 %v667, 16
        %v684 = vrot.slane %v682, 4
        %v685 = vor.u32 %v684, %v680
        %v686 = vrot.slane %v685, 4
        %v690 = vld [vmem:[#allocation2 + $0x3c] sm:$0x8]
        %v691 = vsel %vm526, %v671, %v690
        %692 = vst [vmem:[#allocation2 + $0x3c] sm:$0x8] %v691
        %693 = vst [vmem:[#allocation2 + $0x40] sm:$0xf] %v681
        %v694 = vld [vmem:[#allocation2 + $0x44] sm:$0xf]
        %v695 = vsel %vm531, %v686, %v694
        %696 = vst [vmem:[#allocation2 + $0x44] sm:$0xf] %v695
        %s697 = sadd.s32 %s342, 7
        %p698 = scmp.gt.s32.totalorder %s697, 0
        %s699 = scalar_select %p698, %s697, 0
        %p700 = scmp.lt.s32.totalorder %s699, 15
        %s701 = scalar_select %p700, %s699, 15
        %s702 = smul.u32 %s701, 16
        %s703 = sshra.s32 %s702, 3
        %s704 = sand.u32 %s702, 7
        %s705 = smul.addr %s703, 4
        %s706 = scalar_lea.vmem %s304, %s705
        %v707 = vld [vmem:[%s706] sm:$0xf]
        %v708 = vld [vmem:[%s706 + $0x4] sm:$0xf]
        %v710 = vshrl.u32 %v707, 16
        %v712 = vrot.slane %v710, 7
        %v713 = vshll.u32 %v707, 16
        %v715 = vor.u32 %v712, %v713
        %v716 = vrot.slane %v712, 4
        %v718 = vshrl.u32 %v708, 16
        %v720 = vrot.slane %v718, 7
        %v721 = vshll.u32 %v708, 16
        %v723 = vor.u32 %v720, %v721
        %v724 = vsel %vm357, %v716, %v723
        %v725 = vrot.slane %v720, 4
        %v729 = vld [vmem:[#allocation2 + $0x48] sm:$0xf]
        %v730 = vsel %vm380, %v715, %v729
        %731 = vst [vmem:[#allocation2 + $0x48] sm:$0xf] %v730
        %732 = vst [vmem:[#allocation2 + $0x4c] sm:$0xf] %v724
        %v733 = vld [vmem:[#allocation2 + $0x50] sm:$0x1]
        %v734 = vsel %vm386, %v725, %v733
        %735 = vst [vmem:[#allocation2 + $0x50] sm:$0x1] %v734
        %s736 = sadd.s32 %s342, 8
        %p737 = scmp.gt.s32.totalorder %s736, 0
        %s738 = scalar_select %p737, %s736, 0
        %p739 = scmp.lt.s32.totalorder %s738, 15
        %s740 = scalar_select %p739, %s738, 15
        %s741 = smul.u32 %s740, 16
        %s742 = sshra.s32 %s741, 3
        %s743 = sand.u32 %s741, 7
        %s744 = smul.addr %s742, 4
        %s745 = scalar_lea.vmem %s304, %s744
        %v746 = vld [vmem:[%s745] sm:$0xf]
        %v747 = vld [vmem:[%s745 + $0x4] sm:$0xf]
        %v749 = vshrl.u32 %v746, 16
        %v751 = vrot.slane %v749, 6
        %v752 = vshll.u32 %v746, 16
        %v754 = vrot.slane %v752, 7
        %v755 = vor.u32 %v751, %v754
        %v756 = vrot.slane %v755, 4
        %v758 = vshrl.u32 %v747, 16
        %v760 = vrot.slane %v758, 6
        %v761 = vshll.u32 %v747, 16
        %v763 = vrot.slane %v761, 7
        %v764 = vor.u32 %v760, %v763
        %v765 = vsel %vm403, %v756, %v764
        %v766 = vrot.slane %v764, 4
        %v770 = vld [vmem:[#allocation2 + $0x50] sm:$0xe]
        %v771 = vsel %vm428, %v755, %v770
        %772 = vst [vmem:[#allocation2 + $0x50] sm:$0xe] %v771
        %773 = vst [vmem:[#allocation2 + $0x54] sm:$0xf] %v765
        %v774 = vld [vmem:[#allocation2 + $0x58] sm:$0x3]
        %v775 = vsel %vm434, %v766, %v774
        %776 = vst [vmem:[#allocation2 + $0x58] sm:$0x3] %v775
        %p777 = scmp.eq.s32.totalorder %s26, 0
        // Predicated region
        $region49: #{bottleneck_forward_nhwc.3} parent=43 // pred_check
          %p778 = pneg %p777
        $region50: #{bottleneck_forward_nhwc.3} parent=43 // pred_check_branch
          %780 = sbr.rel (%p778) target = $region52
        $region51: #{bottleneck_forward_nhwc.3} parent=43 // pred_region
          %781 = vst [vmem:[#allocation2] sm:$0xf] 0
          %782 = vst [vmem:[#allocation2 + $0x4] sm:$0xf] 0
          %783 = vst [vmem:[#allocation2 + $0x8] sm:$0x1] 0
        $region52: #{bottleneck_forward_nhwc.3} parent=43 // pred_fallthru
          _
        %p784 = scmp.eq.s32.totalorder %s26, 1
        // Predicated region
        $region53: #{bottleneck_forward_nhwc.3} parent=43 // pred_check
          %p785 = pneg %p784
        $region54: #{bottleneck_forward_nhwc.3} parent=43 // pred_check_branch
          %787 = sbr.rel (%p785) target = $region56
        $region55: #{bottleneck_forward_nhwc.3} parent=43 // pred_region
          %788 = vst [vmem:[#allocation2 + $0x50] sm:$0xe] 0
          %789 = vst [vmem:[#allocation2 + $0x54] sm:$0xf] 0
          %790 = vst [vmem:[#allocation2 + $0x58] sm:$0x3] 0
        $region56: #{bottleneck_forward_nhwc.3} parent=43 // pred_fallthru
          _
        %v791 = vld [vmem:[#allocation2] sm:$0xf]
        %v792 = vld [vmem:[#allocation2 + $0x4] sm:$0xf]
        %v793 = vld [vmem:[#allocation2 + $0x8] sm:$0xf]
        %v794 = vld [vmem:[#allocation2 + $0xc] sm:$0xf]
        %v795 = vld [vmem:[#allocation2 + $0x10] sm:$0xf]
        %v796 = vld [vmem:[#allocation2 + $0x14] sm:$0xf]
        %v797 = vld [vmem:[#allocation2 + $0x18] sm:$0xf]
        %v798 = vld [vmem:[#allocation2 + $0x1c] sm:$0xf]
        %v799 = vld [vmem:[#allocation2 + $0x20] sm:$0xf]
        %v800 = vld [vmem:[#allocation2 + $0x24] sm:$0xf]
        %v801 = vld [vmem:[#allocation2 + $0x28] sm:$0xf]
        %v802 = vld [vmem:[#allocation2 + $0x2c] sm:$0xf]
        %v803 = vld [vmem:[#allocation2 + $0x30] sm:$0xf]
        %v804 = vld [vmem:[#allocation2 + $0x34] sm:$0xf]
        %v805 = vld [vmem:[#allocation2 + $0x38] sm:$0xf]
        %v806 = vld [vmem:[#allocation2 + $0x3c] sm:$0xf]
        %v807 = vld [vmem:[#allocation2 + $0x40] sm:$0xf]
        %v808 = vld [vmem:[#allocation2 + $0x44] sm:$0xf]
        %v809 = vld [vmem:[#allocation2 + $0x48] sm:$0x1]
        %v810 = vld [vmem:[#allocation2] sm:$0xe]
        %v811 = vld [vmem:[#allocation2 + $0x8] sm:$0xe]
        %v812 = vld [vmem:[#allocation2 + $0x48] sm:$0xf]
        %v813 = vld [vmem:[#allocation2 + $0x4c] sm:$0xf]
        %v814 = vld [vmem:[#allocation2 + $0x50] sm:$0x1]
        %v815 = vld [vmem:[#allocation2 + $0x50] sm:$0x3]
        %v816 = vld [vmem:[#allocation2 + $0x8] sm:$0xc]
        %v817 = vld [vmem:[#allocation2 + $0x10] sm:$0xc]
        %v818 = vld [vmem:[#allocation2 + $0x50] sm:$0xf]
        %v819 = vld [vmem:[#allocation2 + $0x54] sm:$0xf]
        %v820 = vld [vmem:[#allocation2 + $0x58] sm:$0x3]
        %v821 = vld [vmem:[#allocation2 + $0x58] sm:$0x7]
        %v822 = vld [vmem:[#allocation2 + $0x10] sm:$0x8]
        %v841 = vunpack.c.l.b16 %v791
        %v842 = vunpack.c.l.b16 %v792
        %v843 = vunpack.c.l.b16 %v793
        %v844 = vunpack.c.l.b16 %v794
        %v845 = vunpack.c.l.b16 %v795
        %v846 = vunpack.c.l.b16 %v796
        %v847 = vunpack.c.l.b16 %v797
        %v848 = vunpack.c.l.b16 %v798
        %v849 = vunpack.c.l.b16 %v799
        %v850 = vunpack.c.l.b16 %v800
        %v851 = vunpack.c.l.b16 %v801
        %v852 = vunpack.c.l.b16 %v802
        %v853 = vunpack.c.l.b16 %v803
        %v854 = vunpack.c.l.b16 %v804
        %v855 = vunpack.c.l.b16 %v805
        %v856 = vunpack.c.l.b16 %v806
        %v857 = vunpack.c.l.b16 %v807
        %v858 = vunpack.c.l.b16 %v808
        %v859 = vpack.c.b16 %v842, %v841
        %v860 = vpack.c.b16 %v844, %v843
        %v861 = vpack.c.b16 %v846, %v845
        %v862 = vpack.c.b16 %v848, %v847
        %v863 = vpack.c.b16 %v850, %v849
        %v864 = vpack.c.b16 %v852, %v851
        %v865 = vpack.c.b16 %v854, %v853
        %v866 = vpack.c.b16 %v856, %v855
        %v867 = vpack.c.b16 %v858, %v857
        %v878 = vunpack.c.l.b16 %v809
        %v879 = vpack.c.b16 %v878, %v878
        %vm880 = vsmask.f32 7424
        %v882 = vshrl.u32 %v859, 16
        %v884 = vshll.u32 %v859, 16
        %v886 = vrot.slane %v884, 1
        %v887 = vor.u32 %v882, %v886
        %v889 = vshll.u32 %v860, 16
        %v891 = vrot.slane %v889, 1
        %v892 = vsel %vm880, %v887, %v891
        %v893 = vshrl.u32 %v860, 16
        %v895 = vor.u32 %v893, %v891
        %v897 = vshll.u32 %v861, 16
        %v899 = vrot.slane %v897, 1
        %v900 = vsel %vm880, %v895, %v899
        %v901 = vshrl.u32 %v861, 16
        %v903 = vor.u32 %v901, %v899
        %v905 = vshll.u32 %v862, 16
        %v907 = vrot.slane %v905, 1
        %v908 = vsel %vm880, %v903, %v907
        %v909 = vshrl.u32 %v862, 16
        %v911 = vor.u32 %v909, %v907
        %v913 = vshll.u32 %v863, 16
        %v915 = vrot.slane %v913, 1
        %v916 = vsel %vm880, %v911, %v915
        %v917 = vshrl.u32 %v863, 16
        %v919 = vor.u32 %v917, %v915
        %v921 = vshll.u32 %v864, 16
        %v923 = vrot.slane %v921, 1
        %v924 = vsel %vm880, %v919, %v923
        %v925 = vshrl.u32 %v864, 16
        %v927 = vor.u32 %v925, %v923
        %v929 = vshll.u32 %v865, 16
        %v931 = vrot.slane %v929, 1
        %v932 = vsel %vm880, %v927, %v931
        %v933 = vshrl.u32 %v865, 16
        %v935 = vor.u32 %v933, %v931
        %v937 = vshll.u32 %v866, 16
        %v939 = vrot.slane %v937, 1
        %v940 = vsel %vm880, %v935, %v939
        %v941 = vshrl.u32 %v866, 16
        %v943 = vor.u32 %v941, %v939
        %v945 = vshll.u32 %v867, 16
        %v947 = vrot.slane %v945, 1
        %v948 = vsel %vm880, %v943, %v947
        %v949 = vshrl.u32 %v867, 16
        %v951 = vor.u32 %v949, %v947
        %v953 = vshll.u32 %v879, 16
        %v955 = vrot.slane %v953, 1
        %v956 = vsel %vm880, %v951, %v955
        %v967 = vunpack.c.l.b16 %v810
        %v968 = vpack.c.b16 %v842, %v967
        %vm969 = vcmask 1046528
        %v970 = vrot.slane %v968, 1
        %v971 = vrot.slane %v860, 1
        %v972 = vsel %vm969, %v970, %v971
        %v973 = vrot.slane %v861, 1
        %v974 = vsel %vm969, %v971, %v973
        %v975 = vrot.slane %v862, 1
        %v976 = vsel %vm969, %v973, %v975
        %v977 = vrot.slane %v863, 1
        %v978 = vsel %vm969, %v975, %v977
        %v979 = vrot.slane %v864, 1
        %v980 = vsel %vm969, %v977, %v979
        %v981 = vrot.slane %v865, 1
        %v982 = vsel %vm969, %v979, %v981
        %v983 = vrot.slane %v866, 1
        %v984 = vsel %vm969, %v981, %v983
        %v985 = vrot.slane %v867, 1
        %v986 = vsel %vm969, %v983, %v985
        %v987 = vrot.slane %v879, 1
        %v988 = vsel %vm969, %v985, %v987
        %v1002 = vunpack.c.l.b16 %v811
        %v1003 = vunpack.c.l.b16 %v812
        %v1004 = vunpack.c.l.b16 %v813
        %v1005 = vunpack.c.l.b16 %v814
        %v1006 = vpack.c.b16 %v844, %v1002
        %v1007 = vpack.c.b16 %v1004, %v1003
        %v1008 = vpack.c.b16 %v1005, %v1005
        %v1009 = vrot.slane %v1006, 1
        %v1010 = vsel %vm969, %v1009, %v973
        %v1011 = vrot.slane %v1007, 1
        %v1012 = vsel %vm969, %v985, %v1011
        %v1013 = vrot.slane %v1008, 1
        %v1014 = vsel %vm969, %v1011, %v1013
        %v1019 = vunpack.c.l.b16 %v815
        %v1020 = vpack.c.b16 %v1019, %v1019
        %vm1021 = vsmask.f32 6400
        %v1023 = vshrl.u32 %v1006, 16
        %v1025 = vrot.slane %v1023, 1
        %v1026 = vshll.u32 %v1006, 16
        %v1028 = vrot.slane %v1026, 2
        %v1029 = vor.u32 %v1025, %v1028
        %v1030 = vrot.slane %v901, 1
        %v1031 = vrot.slane %v897, 2
        %v1032 = vor.u32 %v1030, %v1031
        %v1033 = vsel %vm1021, %v1029, %v1032
        %v1034 = vrot.slane %v909, 1
        %v1035 = vrot.slane %v905, 2
        %v1036 = vor.u32 %v1034, %v1035
        %v1037 = vsel %vm1021, %v1032, %v1036
        %v1038 = vrot.slane %v917, 1
        %v1039 = vrot.slane %v913, 2
        %v1040 = vor.u32 %v1038, %v1039
        %v1041 = vsel %vm1021, %v1036, %v1040
        %v1042 = vrot.slane %v925, 1
        %v1043 = vrot.slane %v921, 2
        %v1044 = vor.u32 %v1042, %v1043
        %v1045 = vsel %vm1021, %v1040, %v1044
        %v1046 = vrot.slane %v933, 1
        %v1047 = vrot.slane %v929, 2
        %v1048 = vor.u32 %v1046, %v1047
        %v1049 = vsel %vm1021, %v1044, %v1048
        %v1050 = vrot.slane %v941, 1
        %v1051 = vrot.slane %v937, 2
        %v1052 = vor.u32 %v1050, %v1051
        %v1053 = vsel %vm1021, %v1048, %v1052
        %v1054 = vrot.slane %v949, 1
        %v1055 = vrot.slane %v945, 2
        %v1056 = vor.u32 %v1054, %v1055
        %v1057 = vsel %vm1021, %v1052, %v1056
        %v1059 = vshrl.u32 %v1007, 16
        %v1061 = vrot.slane %v1059, 1
        %v1062 = vshll.u32 %v1007, 16
        %v1064 = vrot.slane %v1062, 2
        %v1065 = vor.u32 %v1061, %v1064
        %v1066 = vsel %vm1021, %v1056, %v1065
        %v1068 = vshrl.u32 %v1020, 16
        %v1070 = vrot.slane %v1068, 1
        %v1071 = vshll.u32 %v1020, 16
        %v1073 = vrot.slane %v1071, 2
        %v1074 = vor.u32 %v1070, %v1073
        %v1075 = vsel %vm1021, %v1065, %v1074
        %v1086 = vunpack.c.l.b16 %v816
        %v1087 = vpack.c.b16 %v844, %v1086
        %vm1088 = vcmask 1045504
        %v1089 = vrot.slane %v1087, 2
        %v1090 = vrot.slane %v861, 2
        %v1091 = vsel %vm1088, %v1089, %v1090
        %v1092 = vrot.slane %v862, 2
        %v1093 = vsel %vm1088, %v1090, %v1092
        %v1094 = vrot.slane %v863, 2
        %v1095 = vsel %vm1088, %v1092, %v1094
        %v1096 = vrot.slane %v864, 2
        %v1097 = vsel %vm1088, %v1094, %v1096
        %v1098 = vrot.slane %v865, 2
        %v1099 = vsel %vm1088, %v1096, %v1098
        %v1100 = vrot.slane %v866, 2
        %v1101 = vsel %vm1088, %v1098, %v1100
        %v1102 = vrot.slane %v867, 2
        %v1103 = vsel %vm1088, %v1100, %v1102
        %v1104 = vrot.slane %v1007, 2
        %v1105 = vsel %vm1088, %v1102, %v1104
        %v1106 = vrot.slane %v1020, 2
        %v1107 = vsel %vm1088, %v1104, %v1106
        %v1121 = vunpack.c.l.b16 %v817
        %v1122 = vunpack.c.l.b16 %v818
        %v1123 = vunpack.c.l.b16 %v819
        %v1124 = vunpack.c.l.b16 %v820
        %v1125 = vpack.c.b16 %v846, %v1121
        %v1126 = vpack.c.b16 %v1123, %v1122
        %v1127 = vpack.c.b16 %v1124, %v1124
        %v1128 = vrot.slane %v1125, 2
        %v1129 = vsel %vm1088, %v1128, %v1092
        %v1130 = vrot.slane %v1126, 2
        %v1131 = vsel %vm1088, %v1104, %v1130
        %v1132 = vrot.slane %v1127, 2
        %v1133 = vsel %vm1088, %v1130, %v1132
        %v1138 = vunpack.c.l.b16 %v821
        %v1139 = vpack.c.b16 %v1138, %v1138
        %vm1140 = vsmask.f32 5376
        %v1142 = vshrl.u32 %v1125, 16
        %v1144 = vrot.slane %v1142, 2
        %v1145 = vshll.u32 %v1125, 16
        %v1147 = vrot.slane %v1145, 3
        %v1148 = vor.u32 %v1144, %v1147
        %v1149 = vrot.slane %v909, 2
        %v1150 = vrot.slane %v905, 3
        %v1151 = vor.u32 %v1149, %v1150
        %v1152 = vsel %vm1140, %v1148, %v1151
        %v1153 = vrot.slane %v917, 2
        %v1154 = vrot.slane %v913, 3
        %v1155 = vor.u32 %v1153, %v1154
        %v1156 = vsel %vm1140, %v1151, %v1155
        %v1157 = vrot.slane %v925, 2
        %v1158 = vrot.slane %v921, 3
        %v1159 = vor.u32 %v1157, %v1158
        %v1160 = vsel %vm1140, %v1155, %v1159
        %v1161 = vrot.slane %v933, 2
        %v1162 = vrot.slane %v929, 3
        %v1163 = vor.u32 %v1161, %v1162
        %v1164 = vsel %vm1140, %v1159, %v1163
        %v1165 = vrot.slane %v941, 2
        %v1166 = vrot.slane %v937, 3
        %v1167 = vor.u32 %v1165, %v1166
        %v1168 = vsel %vm1140, %v1163, %v1167
        %v1169 = vrot.slane %v949, 2
        %v1170 = vrot.slane %v945, 3
        %v1171 = vor.u32 %v1169, %v1170
        %v1172 = vsel %vm1140, %v1167, %v1171
        %v1173 = vrot.slane %v1059, 2
        %v1174 = vrot.slane %v1062, 3
        %v1175 = vor.u32 %v1173, %v1174
        %v1176 = vsel %vm1140, %v1171, %v1175
        %v1178 = vshrl.u32 %v1126, 16
        %v1180 = vrot.slane %v1178, 2
        %v1181 = vshll.u32 %v1126, 16
        %v1183 = vrot.slane %v1181, 3
        %v1184 = vor.u32 %v1180, %v1183
        %v1185 = vsel %vm1140, %v1175, %v1184
        %v1187 = vshrl.u32 %v1139, 16
        %v1189 = vrot.slane %v1187, 2
        %v1190 = vshll.u32 %v1139, 16
        %v1192 = vrot.slane %v1190, 3
        %v1193 = vor.u32 %v1189, %v1192
        %v1194 = vsel %vm1140, %v1184, %v1193
        %v1205 = vunpack.c.l.b16 %v822
        %v1206 = vpack.c.b16 %v846, %v1205
        %vm1207 = vcmask 1044480
        %v1208 = vrot.slane %v1206, 3
        %v1209 = vrot.slane %v862, 3
        %v1210 = vsel %vm1207, %v1208, %v1209
        %v1211 = vrot.slane %v863, 3
        %v1212 = vsel %vm1207, %v1209, %v1211
        %v1213 = vrot.slane %v864, 3
        %v1214 = vsel %vm1207, %v1211, %v1213
        %v1215 = vrot.slane %v865, 3
        %v1216 = vsel %vm1207, %v1213, %v1215
        %v1217 = vrot.slane %v866, 3
        %v1218 = vsel %vm1207, %v1215, %v1217
        %v1219 = vrot.slane %v867, 3
        %v1220 = vsel %vm1207, %v1217, %v1219
        %v1221 = vrot.slane %v1007, 3
        %v1222 = vsel %vm1207, %v1219, %v1221
        %v1223 = vrot.slane %v1126, 3
        %v1224 = vsel %vm1207, %v1221, %v1223
        %v1225 = vrot.slane %v1139, 3
        %v1226 = vsel %vm1207, %v1223, %v1225
        %v1236 = vld [vmem:[#allocation3] sm:$0xf]
        %v1237 = vld [vmem:[#allocation3 + $0x4] sm:$0xf]
        %v1238 = vld [vmem:[#allocation3 + $0x8] sm:$0xf]
        %v1239 = vld [vmem:[#allocation3 + $0xc] sm:$0xf]
        %v1240 = vld [vmem:[#allocation3 + $0x10] sm:$0xf]
        %v1241 = vld [vmem:[#allocation3 + $0x14] sm:$0xf]
        %v1242 = vld [vmem:[#allocation3 + $0x18] sm:$0xf]
        %v1243 = vld [vmem:[#allocation3 + $0x1c] sm:$0xf]
        %v1244 = vld [vmem:[#allocation3 + $0x20] sm:$0xf]
        %v1245 = vld [vmem:[#allocation3 + $0x24] sm:$0xf]
        %v1246 = vld [vmem:[#allocation3 + $0x28] sm:$0xf]
        %v1247 = vld [vmem:[#allocation3 + $0x2c] sm:$0xf]
        %v1248 = vld [vmem:[#allocation3 + $0x30] sm:$0xf]
        %v1249 = vld [vmem:[#allocation3 + $0x34] sm:$0xf]
        %v1250 = vld [vmem:[#allocation3 + $0x38] sm:$0xf]
        %v1251 = vld [vmem:[#allocation3 + $0x3c] sm:$0xf]
        %v1252 = vld [vmem:[#allocation3 + $0x40] sm:$0xf]
        %v1253 = vld [vmem:[#allocation3 + $0x44] sm:$0xf]
        %v1254 = vld [vmem:[#allocation3 + $0x48] sm:$0xf]
        %v1255 = vld [vmem:[#allocation3 + $0x4c] sm:$0xf]
        %v1256 = vld [vmem:[#allocation3 + $0x50] sm:$0xf]
        %v1257 = vld [vmem:[#allocation3 + $0x54] sm:$0xf]
        %v1258 = vld [vmem:[#allocation3 + $0x58] sm:$0xf]
        %v1259 = vld [vmem:[#allocation3 + $0x5c] sm:$0xf]
        %v1260 = vld [vmem:[#allocation3 + $0x60] sm:$0xf]
        %v1261 = vld [vmem:[#allocation3 + $0x64] sm:$0xf]
        %v1262 = vld [vmem:[#allocation3 + $0x68] sm:$0xf]
        %v1263 = vld [vmem:[#allocation3 + $0x6c] sm:$0xf]
        %v1264 = vld [vmem:[#allocation3 + $0x70] sm:$0xf]
        %v1265 = vld [vmem:[#allocation3 + $0x74] sm:$0xf]
        %v1266 = vld [vmem:[#allocation3 + $0x78] sm:$0xf]
        %v1267 = vld [vmem:[#allocation3 + $0x7c] sm:$0xf]
        %v1268 = vld [vmem:[#allocation3 + $0x80] sm:$0xf]
        %v1269 = vld [vmem:[#allocation3 + $0x84] sm:$0xf]
        %v1270 = vld [vmem:[#allocation3 + $0x88] sm:$0xf]
        %v1271 = vld [vmem:[#allocation3 + $0x8c] sm:$0xf]
        %v1272 = vld [vmem:[#allocation3 + $0x90] sm:$0xf]
        %v1273 = vld [vmem:[#allocation3 + $0x94] sm:$0xf]
        %v1274 = vld [vmem:[#allocation3 + $0x98] sm:$0xf]
        %v1275 = vld [vmem:[#allocation3 + $0x9c] sm:$0xf]
        %v1276 = vld [vmem:[#allocation3 + $0xa0] sm:$0xf]
        %v1277 = vld [vmem:[#allocation3 + $0xa4] sm:$0xf]
        %v1278 = vld [vmem:[#allocation3 + $0xa8] sm:$0xf]
        %v1279 = vld [vmem:[#allocation3 + $0xac] sm:$0xf]
        %v1280 = vld [vmem:[#allocation3 + $0xb0] sm:$0xf]
        %v1281 = vld [vmem:[#allocation3 + $0xb4] sm:$0xf]
        %v1282 = vld [vmem:[#allocation3 + $0xb8] sm:$0xf]
        %v1283 = vld [vmem:[#allocation3 + $0xbc] sm:$0xf]
        %v1284 = vld [vmem:[#allocation3 + $0xc0] sm:$0xf]
        %v1285 = vld [vmem:[#allocation3 + $0xc4] sm:$0xf]
        %v1286 = vld [vmem:[#allocation3 + $0xc8] sm:$0xf]
        %v1287 = vld [vmem:[#allocation3 + $0xcc] sm:$0xf]
        %v1288 = vld [vmem:[#allocation3 + $0xd0] sm:$0xf]
        %v1289 = vld [vmem:[#allocation3 + $0xd4] sm:$0xf]
        %v1290 = vld [vmem:[#allocation3 + $0xd8] sm:$0xf]
        %v1291 = vld [vmem:[#allocation3 + $0xdc] sm:$0xf]
        %v1292 = vld [vmem:[#allocation3 + $0xe0] sm:$0xf]
        %v1293 = vld [vmem:[#allocation3 + $0xe4] sm:$0xf]
        %v1294 = vld [vmem:[#allocation3 + $0xe8] sm:$0xf]
        %v1295 = vld [vmem:[#allocation3 + $0xec] sm:$0xf]
        %v1296 = vld [vmem:[#allocation3 + $0xf0] sm:$0xf]
        %v1297 = vld [vmem:[#allocation3 + $0xf4] sm:$0xf]
        %v1298 = vld [vmem:[#allocation3 + $0xf8] sm:$0xf]
        %v1299 = vld [vmem:[#allocation3 + $0xfc] sm:$0xf]
        %v1300 = vld [vmem:[#allocation3 + $0x100] sm:$0xf]
        %v1301 = vld [vmem:[#allocation3 + $0x104] sm:$0xf]
        %v1302 = vld [vmem:[#allocation3 + $0x108] sm:$0xf]
        %v1303 = vld [vmem:[#allocation3 + $0x10c] sm:$0xf]
        %v1304 = vld [vmem:[#allocation3 + $0x110] sm:$0xf]
        %v1305 = vld [vmem:[#allocation3 + $0x114] sm:$0xf]
        %v1306 = vld [vmem:[#allocation3 + $0x118] sm:$0xf]
        %v1307 = vld [vmem:[#allocation3 + $0x11c] sm:$0xf]
        %v1308 = vld [vmem:[#allocation3 + $0x120] sm:$0xf]
        %v1309 = vld [vmem:[#allocation3 + $0x124] sm:$0xf]
        %v1310 = vld [vmem:[#allocation3 + $0x128] sm:$0xf]
        %v1311 = vld [vmem:[#allocation3 + $0x12c] sm:$0xf]
        %v1312 = vld [vmem:[#allocation3 + $0x130] sm:$0xf]
        %v1313 = vld [vmem:[#allocation3 + $0x134] sm:$0xf]
        %v1314 = vld [vmem:[#allocation3 + $0x138] sm:$0xf]
        %v1315 = vld [vmem:[#allocation3 + $0x13c] sm:$0xf]
        %v1316 = vld [vmem:[#allocation3 + $0x140] sm:$0xf]
        %v1317 = vld [vmem:[#allocation3 + $0x144] sm:$0xf]
        %v1318 = vld [vmem:[#allocation3 + $0x148] sm:$0xf]
        %v1319 = vld [vmem:[#allocation3 + $0x14c] sm:$0xf]
        %v1320 = vld [vmem:[#allocation3 + $0x150] sm:$0xf]
        %v1321 = vld [vmem:[#allocation3 + $0x154] sm:$0xf]
        %v1322 = vld [vmem:[#allocation3 + $0x158] sm:$0xf]
        %v1323 = vld [vmem:[#allocation3 + $0x15c] sm:$0xf]
        %v1324 = vld [vmem:[#allocation3 + $0x160] sm:$0xf]
        %v1325 = vld [vmem:[#allocation3 + $0x164] sm:$0xf]
        %v1326 = vld [vmem:[#allocation3 + $0x168] sm:$0xf]
        %v1327 = vld [vmem:[#allocation3 + $0x16c] sm:$0xf]
        %v1328 = vld [vmem:[#allocation3 + $0x170] sm:$0xf]
        %v1329 = vld [vmem:[#allocation3 + $0x174] sm:$0xf]
        %v1330 = vld [vmem:[#allocation3 + $0x178] sm:$0xf]
        %v1331 = vld [vmem:[#allocation3 + $0x17c] sm:$0xf]
        %v1332 = vld [vmem:[#allocation3 + $0x180] sm:$0xf]
        %v1333 = vld [vmem:[#allocation3 + $0x184] sm:$0xf]
        %v1334 = vld [vmem:[#allocation3 + $0x188] sm:$0xf]
        %v1335 = vld [vmem:[#allocation3 + $0x18c] sm:$0xf]
        %v1336 = vld [vmem:[#allocation3 + $0x190] sm:$0xf]
        %v1337 = vld [vmem:[#allocation3 + $0x194] sm:$0xf]
        %v1338 = vld [vmem:[#allocation3 + $0x198] sm:$0xf]
        %v1339 = vld [vmem:[#allocation3 + $0x19c] sm:$0xf]
        %v1340 = vld [vmem:[#allocation3 + $0x1a0] sm:$0xf]
        %v1341 = vld [vmem:[#allocation3 + $0x1a4] sm:$0xf]
        %v1342 = vld [vmem:[#allocation3 + $0x1a8] sm:$0xf]
        %v1343 = vld [vmem:[#allocation3 + $0x1ac] sm:$0xf]
        %v1344 = vld [vmem:[#allocation3 + $0x1b0] sm:$0xf]
        %v1345 = vld [vmem:[#allocation3 + $0x1b4] sm:$0xf]
        %v1346 = vld [vmem:[#allocation3 + $0x1b8] sm:$0xf]
        %v1347 = vld [vmem:[#allocation3 + $0x1bc] sm:$0xf]
        %v1348 = vld [vmem:[#allocation3 + $0x1c0] sm:$0xf]
        %v1349 = vld [vmem:[#allocation3 + $0x1c4] sm:$0xf]
        %v1350 = vld [vmem:[#allocation3 + $0x1c8] sm:$0xf]
        %v1351 = vld [vmem:[#allocation3 + $0x1cc] sm:$0xf]
        %v1352 = vld [vmem:[#allocation3 + $0x1d0] sm:$0xf]
        %v1353 = vld [vmem:[#allocation3 + $0x1d4] sm:$0xf]
        %v1354 = vld [vmem:[#allocation3 + $0x1d8] sm:$0xf]
        %v1355 = vld [vmem:[#allocation3 + $0x1dc] sm:$0xf]
        %v1356 = vld [vmem:[#allocation3 + $0x1e0] sm:$0xf]
        %v1357 = vld [vmem:[#allocation3 + $0x1e4] sm:$0xf]
        %v1358 = vld [vmem:[#allocation3 + $0x1e8] sm:$0xf]
        %v1359 = vld [vmem:[#allocation3 + $0x1ec] sm:$0xf]
        %v1360 = vld [vmem:[#allocation3 + $0x1f0] sm:$0xf]
        %v1361 = vld [vmem:[#allocation3 + $0x1f4] sm:$0xf]
        %v1362 = vld [vmem:[#allocation3 + $0x1f8] sm:$0xf]
        %v1363 = vld [vmem:[#allocation3 + $0x1fc] sm:$0xf]
        %v1364 = vld [vmem:[#allocation3 + $0x200] sm:$0xf]
        %v1365 = vld [vmem:[#allocation3 + $0x204] sm:$0xf]
        %v1366 = vld [vmem:[#allocation3 + $0x208] sm:$0xf]
        %v1367 = vld [vmem:[#allocation3 + $0x20c] sm:$0xf]
        %v1368 = vld [vmem:[#allocation3 + $0x210] sm:$0xf]
        %v1369 = vld [vmem:[#allocation3 + $0x214] sm:$0xf]
        %v1370 = vld [vmem:[#allocation3 + $0x218] sm:$0xf]
        %v1371 = vld [vmem:[#allocation3 + $0x21c] sm:$0xf]
        %v1372 = vld [vmem:[#allocation3 + $0x220] sm:$0xf]
        %v1373 = vld [vmem:[#allocation3 + $0x224] sm:$0xf]
        %v1374 = vld [vmem:[#allocation3 + $0x228] sm:$0xf]
        %v1375 = vld [vmem:[#allocation3 + $0x22c] sm:$0xf]
        %v1376 = vld [vmem:[#allocation3 + $0x230] sm:$0xf]
        %v1377 = vld [vmem:[#allocation3 + $0x234] sm:$0xf]
        %v1378 = vld [vmem:[#allocation3 + $0x238] sm:$0xf]
        %v1379 = vld [vmem:[#allocation3 + $0x23c] sm:$0xf]
        %v1524 = vunpack.c.l.b16 %v1236
        %v1525 = vunpack.c.l.b16 %v1237
        %v1526 = vunpack.c.l.b16 %v1238
        %v1527 = vunpack.c.l.b16 %v1239
        %v1528 = vunpack.c.l.b16 %v1240
        %v1529 = vunpack.c.l.b16 %v1241
        %v1530 = vunpack.c.l.b16 %v1242
        %v1531 = vunpack.c.l.b16 %v1243
        %v1532 = vunpack.c.l.b16 %v1244
        %v1533 = vunpack.c.l.b16 %v1245
        %v1534 = vunpack.c.l.b16 %v1246
        %v1535 = vunpack.c.l.b16 %v1247
        %v1536 = vunpack.c.l.b16 %v1248
        %v1537 = vunpack.c.l.b16 %v1249
        %v1538 = vunpack.c.l.b16 %v1250
        %v1539 = vunpack.c.l.b16 %v1251
        %v1540 = vunpack.c.l.b16 %v1252
        %v1541 = vunpack.c.l.b16 %v1253
        %v1542 = vunpack.c.l.b16 %v1254
        %v1543 = vunpack.c.l.b16 %v1255
        %v1544 = vunpack.c.l.b16 %v1256
        %v1545 = vunpack.c.l.b16 %v1257
        %v1546 = vunpack.c.l.b16 %v1258
        %v1547 = vunpack.c.l.b16 %v1259
        %v1548 = vunpack.c.l.b16 %v1260
        %v1549 = vunpack.c.l.b16 %v1261
        %v1550 = vunpack.c.l.b16 %v1262
        %v1551 = vunpack.c.l.b16 %v1263
        %v1552 = vunpack.c.l.b16 %v1264
        %v1553 = vunpack.c.l.b16 %v1265
        %v1554 = vunpack.c.l.b16 %v1266
        %v1555 = vunpack.c.l.b16 %v1267
        %v1556 = vunpack.c.l.b16 %v1268
        %v1557 = vunpack.c.l.b16 %v1269
        %v1558 = vunpack.c.l.b16 %v1270
        %v1559 = vunpack.c.l.b16 %v1271
        %v1560 = vunpack.c.l.b16 %v1272
        %v1561 = vunpack.c.l.b16 %v1273
        %v1562 = vunpack.c.l.b16 %v1274
        %v1563 = vunpack.c.l.b16 %v1275
        %v1564 = vunpack.c.l.b16 %v1276
        %v1565 = vunpack.c.l.b16 %v1277
        %v1566 = vunpack.c.l.b16 %v1278
        %v1567 = vunpack.c.l.b16 %v1279
        %v1568 = vunpack.c.l.b16 %v1280
        %v1569 = vunpack.c.l.b16 %v1281
        %v1570 = vunpack.c.l.b16 %v1282
        %v1571 = vunpack.c.l.b16 %v1283
        %v1572 = vunpack.c.l.b16 %v1284
        %v1573 = vunpack.c.l.b16 %v1285
        %v1574 = vunpack.c.l.b16 %v1286
        %v1575 = vunpack.c.l.b16 %v1287
        %v1576 = vunpack.c.l.b16 %v1288
        %v1577 = vunpack.c.l.b16 %v1289
        %v1578 = vunpack.c.l.b16 %v1290
        %v1579 = vunpack.c.l.b16 %v1291
        %v1580 = vunpack.c.l.b16 %v1292
        %v1581 = vunpack.c.l.b16 %v1293
        %v1582 = vunpack.c.l.b16 %v1294
        %v1583 = vunpack.c.l.b16 %v1295
        %v1584 = vunpack.c.l.b16 %v1296
        %v1585 = vunpack.c.l.b16 %v1297
        %v1586 = vunpack.c.l.b16 %v1298
        %v1587 = vunpack.c.l.b16 %v1299
        %v1588 = vunpack.c.l.b16 %v1300
        %v1589 = vunpack.c.l.b16 %v1301
        %v1590 = vunpack.c.l.b16 %v1302
        %v1591 = vunpack.c.l.b16 %v1303
        %v1592 = vunpack.c.l.b16 %v1304
        %v1593 = vunpack.c.l.b16 %v1305
        %v1594 = vunpack.c.l.b16 %v1306
        %v1595 = vunpack.c.l.b16 %v1307
        %v1596 = vunpack.c.l.b16 %v1308
        %v1597 = vunpack.c.l.b16 %v1309
        %v1598 = vunpack.c.l.b16 %v1310
        %v1599 = vunpack.c.l.b16 %v1311
        %v1600 = vunpack.c.l.b16 %v1312
        %v1601 = vunpack.c.l.b16 %v1313
        %v1602 = vunpack.c.l.b16 %v1314
        %v1603 = vunpack.c.l.b16 %v1315
        %v1604 = vunpack.c.l.b16 %v1316
        %v1605 = vunpack.c.l.b16 %v1317
        %v1606 = vunpack.c.l.b16 %v1318
        %v1607 = vunpack.c.l.b16 %v1319
        %v1608 = vunpack.c.l.b16 %v1320
        %v1609 = vunpack.c.l.b16 %v1321
        %v1610 = vunpack.c.l.b16 %v1322
        %v1611 = vunpack.c.l.b16 %v1323
        %v1612 = vunpack.c.l.b16 %v1324
        %v1613 = vunpack.c.l.b16 %v1325
        %v1614 = vunpack.c.l.b16 %v1326
        %v1615 = vunpack.c.l.b16 %v1327
        %v1616 = vunpack.c.l.b16 %v1328
        %v1617 = vunpack.c.l.b16 %v1329
        %v1618 = vunpack.c.l.b16 %v1330
        %v1619 = vunpack.c.l.b16 %v1331
        %v1620 = vunpack.c.l.b16 %v1332
        %v1621 = vunpack.c.l.b16 %v1333
        %v1622 = vunpack.c.l.b16 %v1334
        %v1623 = vunpack.c.l.b16 %v1335
        %v1624 = vunpack.c.l.b16 %v1336
        %v1625 = vunpack.c.l.b16 %v1337
        %v1626 = vunpack.c.l.b16 %v1338
        %v1627 = vunpack.c.l.b16 %v1339
        %v1628 = vunpack.c.l.b16 %v1340
        %v1629 = vunpack.c.l.b16 %v1341
        %v1630 = vunpack.c.l.b16 %v1342
        %v1631 = vunpack.c.l.b16 %v1343
        %v1632 = vunpack.c.l.b16 %v1344
        %v1633 = vunpack.c.l.b16 %v1345
        %v1634 = vunpack.c.l.b16 %v1346
        %v1635 = vunpack.c.l.b16 %v1347
        %v1636 = vunpack.c.l.b16 %v1348
        %v1637 = vunpack.c.l.b16 %v1349
        %v1638 = vunpack.c.l.b16 %v1350
        %v1639 = vunpack.c.l.b16 %v1351
        %v1640 = vunpack.c.l.b16 %v1352
        %v1641 = vunpack.c.l.b16 %v1353
        %v1642 = vunpack.c.l.b16 %v1354
        %v1643 = vunpack.c.l.b16 %v1355
        %v1644 = vunpack.c.l.b16 %v1356
        %v1645 = vunpack.c.l.b16 %v1357
        %v1646 = vunpack.c.l.b16 %v1358
        %v1647 = vunpack.c.l.b16 %v1359
        %v1648 = vunpack.c.l.b16 %v1360
        %v1649 = vunpack.c.l.b16 %v1361
        %v1650 = vunpack.c.l.b16 %v1362
        %v1651 = vunpack.c.l.b16 %v1363
        %v1652 = vunpack.c.l.b16 %v1364
        %v1653 = vunpack.c.l.b16 %v1365
        %v1654 = vunpack.c.l.b16 %v1366
        %v1655 = vunpack.c.l.b16 %v1367
        %v1656 = vunpack.c.l.b16 %v1368
        %v1657 = vunpack.c.l.b16 %v1369
        %v1658 = vunpack.c.l.b16 %v1370
        %v1659 = vunpack.c.l.b16 %v1371
        %v1660 = vunpack.c.l.b16 %v1372
        %v1661 = vunpack.c.l.b16 %v1373
        %v1662 = vunpack.c.l.b16 %v1374
        %v1663 = vunpack.c.l.b16 %v1375
        %v1664 = vunpack.c.l.b16 %v1376
        %v1665 = vunpack.c.l.b16 %v1377
        %v1666 = vunpack.c.l.b16 %v1378
        %v1667 = vunpack.c.l.b16 %v1379
        %v1668 = vpack.c.b16 %v1525, %v1524
        %v1669 = vpack.c.b16 %v1527, %v1526
        %v1670 = vpack.c.b16 %v1529, %v1528
        %v1671 = vpack.c.b16 %v1531, %v1530
        %v1672 = vpack.c.b16 %v1533, %v1532
        %v1673 = vpack.c.b16 %v1535, %v1534
        %v1674 = vpack.c.b16 %v1537, %v1536
        %v1675 = vpack.c.b16 %v1539, %v1538
        %v1676 = vpack.c.b16 %v1541, %v1540
        %v1677 = vpack.c.b16 %v1543, %v1542
        %v1678 = vpack.c.b16 %v1545, %v1544
        %v1679 = vpack.c.b16 %v1547, %v1546
        %v1680 = vpack.c.b16 %v1549, %v1548
        %v1681 = vpack.c.b16 %v1551, %v1550
        %v1682 = vpack.c.b16 %v1553, %v1552
        %v1683 = vpack.c.b16 %v1555, %v1554
        %v1684 = vpack.c.b16 %v1557, %v1556
        %v1685 = vpack.c.b16 %v1559, %v1558
        %v1686 = vpack.c.b16 %v1561, %v1560
        %v1687 = vpack.c.b16 %v1563, %v1562
        %v1688 = vpack.c.b16 %v1565, %v1564
        %v1689 = vpack.c.b16 %v1567, %v1566
        %v1690 = vpack.c.b16 %v1569, %v1568
        %v1691 = vpack.c.b16 %v1571, %v1570
        %v1692 = vpack.c.b16 %v1573, %v1572
        %v1693 = vpack.c.b16 %v1575, %v1574
        %v1694 = vpack.c.b16 %v1577, %v1576
        %v1695 = vpack.c.b16 %v1579, %v1578
        %v1696 = vpack.c.b16 %v1581, %v1580
        %v1697 = vpack.c.b16 %v1583, %v1582
        %v1698 = vpack.c.b16 %v1585, %v1584
        %v1699 = vpack.c.b16 %v1587, %v1586
        %v1700 = vpack.c.b16 %v1589, %v1588
        %v1701 = vpack.c.b16 %v1591, %v1590
        %v1702 = vpack.c.b16 %v1593, %v1592
        %v1703 = vpack.c.b16 %v1595, %v1594
        %v1704 = vpack.c.b16 %v1597, %v1596
        %v1705 = vpack.c.b16 %v1599, %v1598
        %v1706 = vpack.c.b16 %v1601, %v1600
        %v1707 = vpack.c.b16 %v1603, %v1602
        %v1708 = vpack.c.b16 %v1605, %v1604
        %v1709 = vpack.c.b16 %v1607, %v1606
        %v1710 = vpack.c.b16 %v1609, %v1608
        %v1711 = vpack.c.b16 %v1611, %v1610
        %v1712 = vpack.c.b16 %v1613, %v1612
        %v1713 = vpack.c.b16 %v1615, %v1614
        %v1714 = vpack.c.b16 %v1617, %v1616
        %v1715 = vpack.c.b16 %v1619, %v1618
        %v1716 = vpack.c.b16 %v1621, %v1620
        %v1717 = vpack.c.b16 %v1623, %v1622
        %v1718 = vpack.c.b16 %v1625, %v1624
        %v1719 = vpack.c.b16 %v1627, %v1626
        %v1720 = vpack.c.b16 %v1629, %v1628
        %v1721 = vpack.c.b16 %v1631, %v1630
        %v1722 = vpack.c.b16 %v1633, %v1632
        %v1723 = vpack.c.b16 %v1635, %v1634
        %v1724 = vpack.c.b16 %v1637, %v1636
        %v1725 = vpack.c.b16 %v1639, %v1638
        %v1726 = vpack.c.b16 %v1641, %v1640
        %v1727 = vpack.c.b16 %v1643, %v1642
        %v1728 = vpack.c.b16 %v1645, %v1644
        %v1729 = vpack.c.b16 %v1647, %v1646
        %v1730 = vpack.c.b16 %v1649, %v1648
        %v1731 = vpack.c.b16 %v1651, %v1650
        %v1732 = vpack.c.b16 %v1653, %v1652
        %v1733 = vpack.c.b16 %v1655, %v1654
        %v1734 = vpack.c.b16 %v1657, %v1656
        %v1735 = vpack.c.b16 %v1659, %v1658
        %v1736 = vpack.c.b16 %v1661, %v1660
        %v1737 = vpack.c.b16 %v1663, %v1662
        %v1738 = vpack.c.b16 %v1665, %v1664
        %v1739 = vpack.c.b16 %v1667, %v1666
        %1812 = vmatprep.subr.bf16.mxu0 0
        %1813 = vmatpush1.bf16.msra.mxu0 %v1668
        %1814 = vmatprep.subr.bf16.mxu0 0
        %1815 = vmatpush1.bf16.msra.mxu0 %v1669
        %1816 = vmatprep.subr.bf16.mxu0 0
        %1817 = vmatpush1.bf16.msra.mxu0 %v1670
        %1818 = vmatprep.subr.bf16.mxu0 0
        %1819 = vmatpush1.bf16.msra.mxu0 %v1671
        %1820 = vmatprep.subr.bf16.mxu0 0
        %1821 = vmatpush1.bf16.msra.mxu0 %v1672
        %1822 = vmatprep.subr.bf16.mxu0 0
        %1823 = vmatpush1.bf16.msra.mxu0 %v1673
        %1824 = vmatprep.subr.bf16.mxu0 0
        %1825 = vmatpush1.bf16.msra.mxu0 %v1674
        %1826 = vmatprep.subr.bf16.mxu0 0
        %1827 = vmatpush1.bf16.msra.mxu0 %v1675
        %1828 = vmatprep.subr.bf16.mxu0 0
        %1829 = vmatpush1.bf16.msra.mxu0 %v1676
        %1830 = vmatprep.subr.bf16.mxu0 0
        %1831 = vmatpush1.bf16.msra.mxu0 %v1677
        %1832 = vmatprep.subr.bf16.mxu0 0
        %1833 = vmatpush1.bf16.msra.mxu0 %v1678
        %1834 = vmatprep.subr.bf16.mxu0 0
        %1835 = vmatpush1.bf16.msra.mxu0 %v1679
        %1836 = vmatprep.subr.bf16.mxu0 0
        %1837 = vmatpush1.bf16.msra.mxu0 %v1680
        %1838 = vmatprep.subr.bf16.mxu0 0
        %1839 = vmatpush1.bf16.msra.mxu0 %v1681
        %1840 = vmatprep.subr.bf16.mxu0 0
        %1841 = vmatpush1.bf16.msra.mxu0 %v1682
        %1842 = vmatprep.subr.bf16.mxu0 0
        %1843 = vmatpush1.bf16.msra.mxu0 %v1683
        %1844 = vmatprep.mubr.bf16.mxu0 %v892
        %1845 = vmatmul.mubr.bf16.gmra.mrb[0].mxu0 %v859
        %v1846 = vpop.f32.mrb[0].mxu0
        %v1847 = vadd.f32 0.0, %v1846
        %v1848 = vpop.f32.mrb[0].mxu0
        %v1849 = vpop.f32.mrb[0].mxu0
        %v1850 = vadd.f32 0.0, %v1849
        %v1851 = vpop.f32.mrb[0].mxu0
        %1852 = vmatprep.mubr.bf16.mxu0 %v900
        %1853 = vmatmul.mubr.bf16.gmra.mrb[0].mxu0 %v860
        %v1854 = vpop.f32.mrb[0].mxu0
        %v1855 = vadd.f32 0.0, %v1854
        %v1856 = vpop.f32.mrb[0].mxu0
        %v1857 = vpop.f32.mrb[0].mxu0
        %v1858 = vadd.f32 0.0, %v1857
        %v1859 = vpop.f32.mrb[0].mxu0
        %1860 = vmatprep.mubr.bf16.mxu0 %v908
        %1861 = vmatmul.mubr.bf16.gmra.mrb[0].mxu0 %v861
        %v1862 = vpop.f32.mrb[0].mxu0
        %v1863 = vadd.f32 0.0, %v1862
        %v1864 = vpop.f32.mrb[0].mxu0
        %v1865 = vpop.f32.mrb[0].mxu0
        %v1866 = vadd.f32 0.0, %v1865
        %v1867 = vpop.f32.mrb[0].mxu0
        %1868 = vmatprep.mubr.bf16.mxu0 %v916
        %1869 = vmatmul.mubr.bf16.gmra.mrb[0].mxu0 %v862
        %v1870 = vpop.f32.mrb[0].mxu0
        %v1871 = vadd.f32 0.0, %v1870
        %v1872 = vpop.f32.mrb[0].mxu0
        %v1873 = vpop.f32.mrb[0].mxu0
        %v1874 = vadd.f32 0.0, %v1873
        %v1875 = vpop.f32.mrb[0].mxu0
        %1876 = vmatprep.mubr.bf16.mxu0 %v924
        %1877 = vmatmul.mubr.bf16.gmra.mrb[0].mxu0 %v863
        %v1878 = vpop.f32.mrb[0].mxu0
        %v1879 = vadd.f32 0.0, %v1878
        %v1880 = vpop.f32.mrb[0].mxu0
        %v1881 = vpop.f32.mrb[0].mxu0
        %v1882 = vadd.f32 0.0, %v1881
        %v1883 = vpop.f32.mrb[0].mxu0
        %1884 = vmatprep.mubr.bf16.mxu0 %v932
        %1885 = vmatmul.mubr.bf16.gmra.mrb[0].mxu0 %v864
        %v1886 = vpop.f32.mrb[0].mxu0
        %v1887 = vadd.f32 0.0, %v1886
        %v1888 = vpop.f32.mrb[0].mxu0
        %v1889 = vpop.f32.mrb[0].mxu0
        %v1890 = vadd.f32 0.0, %v1889
        %v1891 = vpop.f32.mrb[0].mxu0
        %1892 = vmatprep.mubr.bf16.mxu0 %v940
        %1893 = vmatmul.mubr.bf16.gmra.mrb[0].mxu0 %v865
        %v1894 = vpop.f32.mrb[0].mxu0
        %v1895 = vadd.f32 0.0, %v1894
        %v1896 = vpop.f32.mrb[0].mxu0
        %v1897 = vpop.f32.mrb[0].mxu0
        %v1898 = vadd.f32 0.0, %v1897
        %v1899 = vpop.f32.mrb[0].mxu0
        %1900 = vmatprep.mubr.bf16.mxu0 %v948
        %1901 = vmatmul.mubr.bf16.gmra.mrb[0].mxu0 %v866
        %v1902 = vpop.f32.mrb[0].mxu0
        %v1903 = vadd.f32 0.0, %v1902
        %v1904 = vpop.f32.mrb[0].mxu0
        %v1905 = vpop.f32.mrb[0].mxu0
        %v1906 = vadd.f32 0.0, %v1905
        %v1907 = vpop.f32.mrb[0].mxu0
        %1908 = vmatprep.mubr.bf16.mxu0 %v956
        %1909 = vmatmul.mubr.bf16.gmra.mrb[0].mxu0 %v867
        %v1910 = vpop.f32.mrb[0].mxu0
        %v1911 = vadd.f32 0.0, %v1910
        %v1912 = vpop.f32.mrb[0].mxu0
        %v1913 = vpop.f32.mrb[0].mxu0
        %v1914 = vadd.f32 0.0, %v1913
        %v1915 = vpop.f32.mrb[0].mxu0
        %1916 = vdwg.mxu0
        %1917 = vmatprep.subr.bf16.mxu0 0
        %1918 = vmatpush1.bf16.msra.mxu0 %v1684
        %1919 = vmatprep.subr.bf16.mxu0 0
        %1920 = vmatpush1.bf16.msra.mxu0 %v1685
        %1921 = vmatprep.subr.bf16.mxu0 0
        %1922 = vmatpush1.bf16.msra.mxu0 %v1686
        %1923 = vmatprep.subr.bf16.mxu0 0
        %1924 = vmatpush1.bf16.msra.mxu0 %v1687
        %1925 = vmatprep.subr.bf16.mxu0 0
        %1926 = vmatpush1.bf16.msra.mxu0 %v1688
        %1927 = vmatprep.subr.bf16.mxu0 0
        %1928 = vmatpush1.bf16.msra.mxu0 %v1689
        %1929 = vmatprep.subr.bf16.mxu0 0
        %1930 = vmatpush1.bf16.msra.mxu0 %v1690
        %1931 = vmatprep.subr.bf16.mxu0 0
        %1932 = vmatpush1.bf16.msra.mxu0 %v1691
        %1933 = vmatprep.subr.bf16.mxu0 0
        %1934 = vmatpush1.bf16.msra.mxu0 %v1692
        %1935 = vmatprep.subr.bf16.mxu0 0
        %1936 = vmatpush1.bf16.msra.mxu0 %v1693
        %1937 = vmatprep.subr.bf16.mxu0 0
        %1938 = vmatpush1.bf16.msra.mxu0 %v1694
        %1939 = vmatprep.subr.bf16.mxu0 0
        %1940 = vmatpush1.bf16.msra.mxu0 %v1695
        %1941 = vmatprep.subr.bf16.mxu0 0
        %1942 = vmatpush1.bf16.msra.mxu0 %v1696
        %1943 = vmatprep.subr.bf16.mxu0 0
        %1944 = vmatpush1.bf16.msra.mxu0 %v1697
        %1945 = vmatprep.subr.bf16.mxu0 0
        %1946 = vmatpush1.bf16.msra.mxu0 %v1698
        %1947 = vmatprep.subr.bf16.mxu0 0
        %1948 = vmatpush1.bf16.msra.mxu0 %v1699
        %1949 = vmatprep.mubr.bf16.mxu0 %v1010
        %1950 = vmatmul.mubr.bf16.gmra.mrb[0].mxu0 %v972
        %v1951 = vpop.f32.mrb[0].mxu0
        %v1952 = vadd.f32 %v1847, %v1951
        %v1953 = vpop.f32.mrb[0].mxu0
        %v1954 = vpop.f32.mrb[0].mxu0
        %v1955 = vadd.f32 %v1850, %v1954
        %v1956 = vpop.f32.mrb[0].mxu0
        %1957 = vmatprep.mubr.bf16.mxu0 %v976
        %1958 = vmatmul.mubr.bf16.gmra.mrb[0].mxu0 %v974
        %v1959 = vpop.f32.mrb[0].mxu0
        %v1960 = vadd.f32 %v1855, %v1959
        %v1961 = vpop.f32.mrb[0].mxu0
        %v1962 = vpop.f32.mrb[0].mxu0
        %v1963 = vadd.f32 %v1858, %v1962
        %v1964 = vpop.f32.mrb[0].mxu0
        %1965 = vmatprep.mubr.bf16.mxu0 %v978
        %1966 = vmatmul.mubr.bf16.gmra.mrb[0].mxu0 %v976
        %v1967 = vpop.f32.mrb[0].mxu0
        %v1968 = vadd.f32 %v1863, %v1967
        %v1969 = vpop.f32.mrb[0].mxu0
        %v1970 = vpop.f32.mrb[0].mxu0
        %v1971 = vadd.f32 %v1866, %v1970
        %v1972 = vpop.f32.mrb[0].mxu0
        %1973 = vmatprep.mubr.bf16.mxu0 %v980
        %1974 = vmatmul.mubr.bf16.gmra.mrb[0].mxu0 %v978
        %v1975 = vpop.f32.mrb[0].mxu0
        %v1976 = vadd.f32 %v1871, %v1975
        %v1977 = vpop.f32.mrb[0].mxu0
        %v1978 = vpop.f32.mrb[0].mxu0
        %v1979 = vadd.f32 %v1874, %v1978
        %v1980 = vpop.f32.mrb[0].mxu0
        %1981 = vmatprep.mubr.bf16.mxu0 %v982
        %1982 = vmatmul.mubr.bf16.gmra.mrb[0].mxu0 %v980
        %v1983 = vpop.f32.mrb[0].mxu0
        %v1984 = vadd.f32 %v1879, %v1983
        %v1985 = vpop.f32.mrb[0].mxu0
        %v1986 = vpop.f32.mrb[0].mxu0
        %v1987 = vadd.f32 %v1882, %v1986
        %v1988 = vpop.f32.mrb[0].mxu0
        %1989 = vmatprep.mubr.bf16.mxu0 %v984
        %1990 = vmatmul.mubr.bf16.gmra.mrb[0].mxu0 %v982
        %v1991 = vpop.f32.mrb[0].mxu0
        %v1992 = vadd.f32 %v1887, %v1991
        %v1993 = vpop.f32.mrb[0].mxu0
        %v1994 = vpop.f32.mrb[0].mxu0
        %v1995 = vadd.f32 %v1890, %v1994
        %v1996 = vpop.f32.mrb[0].mxu0
        %1997 = vmatprep.mubr.bf16.mxu0 %v986
        %1998 = vmatmul.mubr.bf16.gmra.mrb[0].mxu0 %v984
        %v1999 = vpop.f32.mrb[0].mxu0
        %v2000 = vadd.f32 %v1895, %v1999
        %v2001 = vpop.f32.mrb[0].mxu0
        %v2002 = vpop.f32.mrb[0].mxu0
        %v2003 = vadd.f32 %v1898, %v2002
        %v2004 = vpop.f32.mrb[0].mxu0
        %2005 = vmatprep.mubr.bf16.mxu0 %v1012
        %2006 = vmatmul.mubr.bf16.gmra.mrb[0].mxu0 %v986
        %v2007 = vpop.f32.mrb[0].mxu0
        %v2008 = vadd.f32 %v1903, %v2007
        %v2009 = vpop.f32.mrb[0].mxu0
        %v2010 = vpop.f32.mrb[0].mxu0
        %v2011 = vadd.f32 %v1906, %v2010
        %v2012 = vpop.f32.mrb[0].mxu0
        %2013 = vmatprep.mubr.bf16.mxu0 %v1014
        %2014 = vmatmul.mubr.bf16.gmra.mrb[0].mxu0 %v988
        %v2015 = vpop.f32.mrb[0].mxu0
        %v2016 = vadd.f32 %v1911, %v2015
        %v2017 = vpop.f32.mrb[0].mxu0
        %v2018 = vpop.f32.mrb[0].mxu0
        %v2019 = vadd.f32 %v1914, %v2018
        %v2020 = vpop.f32.mrb[0].mxu0
        %2021 = vdwg.mxu0
        %2022 = vmatprep.subr.bf16.mxu0 0
        %2023 = vmatpush1.bf16.msra.mxu0 %v1700
        %2024 = vmatprep.subr.bf16.mxu0 0
        %2025 = vmatpush1.bf16.msra.mxu0 %v1701
        %2026 = vmatprep.subr.bf16.mxu0 0
        %2027 = vmatpush1.bf16.msra.mxu0 %v1702
        %2028 = vmatprep.subr.bf16.mxu0 0
        %2029 = vmatpush1.bf16.msra.mxu0 %v1703
        %2030 = vmatprep.subr.bf16.mxu0 0
        %2031 = vmatpush1.bf16.msra.mxu0 %v1704
        %2032 = vmatprep.subr.bf16.mxu0 0
        %2033 = vmatpush1.bf16.msra.mxu0 %v1705
        %2034 = vmatprep.subr.bf16.mxu0 0
        %2035 = vmatpush1.bf16.msra.mxu0 %v1706
        %2036 = vmatprep.subr.bf16.mxu0 0
        %2037 = vmatpush1.bf16.msra.mxu0 %v1707
        %2038 = vmatprep.subr.bf16.mxu0 0
        %2039 = vmatpush1.bf16.msra.mxu0 %v1708
        %2040 = vmatprep.subr.bf16.mxu0 0
        %2041 = vmatpush1.bf16.msra.mxu0 %v1709
        %2042 = vmatprep.subr.bf16.mxu0 0
        %2043 = vmatpush1.bf16.msra.mxu0 %v1710
        %2044 = vmatprep.subr.bf16.mxu0 0
        %2045 = vmatpush1.bf16.msra.mxu0 %v1711
        %2046 = vmatprep.subr.bf16.mxu0 0
        %2047 = vmatpush1.bf16.msra.mxu0 %v1712
        %2048 = vmatprep.subr.bf16.mxu0 0
        %2049 = vmatpush1.bf16.msra.mxu0 %v1713
        %2050 = vmatprep.subr.bf16.mxu0 0
        %2051 = vmatpush1.bf16.msra.mxu0 %v1714
        %2052 = vmatprep.subr.bf16.mxu0 0
        %2053 = vmatpush1.bf16.msra.mxu0 %v1715
        %2054 = vmatprep.mubr.bf16.mxu0 %v1091
        %2055 = vmatmul.mubr.bf16.gmra.mrb[0].mxu0 %v1033
        %v2056 = vpop.f32.mrb[0].mxu0
        %v2057 = vadd.f32 %v1952, %v2056
        %v2058 = vpop.f32.mrb[0].mxu0
        %v2059 = vpop.f32.mrb[0].mxu0
        %v2060 = vadd.f32 %v1955, %v2059
        %v2061 = vpop.f32.mrb[0].mxu0
        %2062 = vmatprep.mubr.bf16.mxu0 %v1093
        %2063 = vmatmul.mubr.bf16.gmra.mrb[0].mxu0 %v1037
        %v2064 = vpop.f32.mrb[0].mxu0
        %v2065 = vadd.f32 %v1960, %v2064
        %v2066 = vpop.f32.mrb[0].mxu0
        %v2067 = vpop.f32.mrb[0].mxu0
        %v2068 = vadd.f32 %v1963, %v2067
        %v2069 = vpop.f32.mrb[0].mxu0
        %2070 = vmatprep.mubr.bf16.mxu0 %v1095
        %2071 = vmatmul.mubr.bf16.gmra.mrb[0].mxu0 %v1041
        %v2072 = vpop.f32.mrb[0].mxu0
        %v2073 = vadd.f32 %v1968, %v2072
        %v2074 = vpop.f32.mrb[0].mxu0
        %v2075 = vpop.f32.mrb[0].mxu0
        %v2076 = vadd.f32 %v1971, %v2075
        %v2077 = vpop.f32.mrb[0].mxu0
        %2078 = vmatprep.mubr.bf16.mxu0 %v1097
        %2079 = vmatmul.mubr.bf16.gmra.mrb[0].mxu0 %v1045
        %v2080 = vpop.f32.mrb[0].mxu0
        %v2081 = vadd.f32 %v1976, %v2080
        %v2082 = vpop.f32.mrb[0].mxu0
        %v2083 = vpop.f32.mrb[0].mxu0
        %v2084 = vadd.f32 %v1979, %v2083
        %v2085 = vpop.f32.mrb[0].mxu0
        %2086 = vmatprep.mubr.bf16.mxu0 %v1099
        %2087 = vmatmul.mubr.bf16.gmra.mrb[0].mxu0 %v1049
        %v2088 = vpop.f32.mrb[0].mxu0
        %v2089 = vadd.f32 %v1984, %v2088
        %v2090 = vpop.f32.mrb[0].mxu0
        %v2091 = vpop.f32.mrb[0].mxu0
        %v2092 = vadd.f32 %v1987, %v2091
        %v2093 = vpop.f32.mrb[0].mxu0
        %2094 = vmatprep.mubr.bf16.mxu0 %v1101
        %2095 = vmatmul.mubr.bf16.gmra.mrb[0].mxu0 %v1053
        %v2096 = vpop.f32.mrb[0].mxu0
        %v2097 = vadd.f32 %v1992, %v2096
        %v2098 = vpop.f32.mrb[0].mxu0
        %v2099 = vpop.f32.mrb[0].mxu0
        %v2100 = vadd.f32 %v1995, %v2099
        %v2101 = vpop.f32.mrb[0].mxu0
        %2102 = vmatprep.mubr.bf16.mxu0 %v1103
        %2103 = vmatmul.mubr.bf16.gmra.mrb[0].mxu0 %v1057
        %v2104 = vpop.f32.mrb[0].mxu0
        %v2105 = vadd.f32 %v2000, %v2104
        %v2106 = vpop.f32.mrb[0].mxu0
        %v2107 = vpop.f32.mrb[0].mxu0
        %v2108 = vadd.f32 %v2003, %v2107
        %v2109 = vpop.f32.mrb[0].mxu0
        %2110 = vmatprep.mubr.bf16.mxu0 %v1105
        %2111 = vmatmul.mubr.bf16.gmra.mrb[0].mxu0 %v1066
        %v2112 = vpop.f32.mrb[0].mxu0
        %v2113 = vadd.f32 %v2008, %v2112
        %v2114 = vpop.f32.mrb[0].mxu0
        %v2115 = vpop.f32.mrb[0].mxu0
        %v2116 = vadd.f32 %v2011, %v2115
        %v2117 = vpop.f32.mrb[0].mxu0
        %2118 = vmatprep.mubr.bf16.mxu0 %v1107
        %2119 = vmatmul.mubr.bf16.gmra.mrb[0].mxu0 %v1075
        %v2120 = vpop.f32.mrb[0].mxu0
        %v2121 = vadd.f32 %v2016, %v2120
        %v2122 = vpop.f32.mrb[0].mxu0
        %v2123 = vpop.f32.mrb[0].mxu0
        %v2124 = vadd.f32 %v2019, %v2123
        %v2125 = vpop.f32.mrb[0].mxu0
        %2126 = vdwg.mxu0
        %2127 = vmatprep.subr.bf16.mxu0 0
        %2128 = vmatpush1.bf16.msra.mxu0 %v1716
        %2129 = vmatprep.subr.bf16.mxu0 0
        %2130 = vmatpush1.bf16.msra.mxu0 %v1717
        %2131 = vmatprep.subr.bf16.mxu0 0
        %2132 = vmatpush1.bf16.msra.mxu0 %v1718
        %2133 = vmatprep.subr.bf16.mxu0 0
        %2134 = vmatpush1.bf16.msra.mxu0 %v1719
        %2135 = vmatprep.subr.bf16.mxu0 0
        %2136 = vmatpush1.bf16.msra.mxu0 %v1720
        %2137 = vmatprep.subr.bf16.mxu0 0
        %2138 = vmatpush1.bf16.msra.mxu0 %v1721
        %2139 = vmatprep.subr.bf16.mxu0 0
        %2140 = vmatpush1.bf16.msra.mxu0 %v1722
        %2141 = vmatprep.subr.bf16.mxu0 0
        %2142 = vmatpush1.bf16.msra.mxu0 %v1723
        %2143 = vmatprep.subr.bf16.mxu0 0
        %2144 = vmatpush1.bf16.msra.mxu0 %v1724
        %2145 = vmatprep.subr.bf16.mxu0 0
        %2146 = vmatpush1.bf16.msra.mxu0 %v1725
        %2147 = vmatprep.subr.bf16.mxu0 0
        %2148 = vmatpush1.bf16.msra.mxu0 %v1726
        %2149 = vmatprep.subr.bf16.mxu0 0
        %2150 = vmatpush1.bf16.msra.mxu0 %v1727
        %2151 = vmatprep.subr.bf16.mxu0 0
        %2152 = vmatpush1.bf16.msra.mxu0 %v1728
        %2153 = vmatprep.subr.bf16.mxu0 0
        %2154 = vmatpush1.bf16.msra.mxu0 %v1729
        %2155 = vmatprep.subr.bf16.mxu0 0
        %2156 = vmatpush1.bf16.msra.mxu0 %v1730
        %2157 = vmatprep.subr.bf16.mxu0 0
        %2158 = vmatpush1.bf16.msra.mxu0 %v1731
        %2159 = vmatprep.mubr.bf16.mxu0 %v1152
        %2160 = vmatmul.mubr.bf16.gmra.mrb[0].mxu0 %v1129
        %v2161 = vpop.f32.mrb[0].mxu0
        %v2162 = vadd.f32 %v2057, %v2161
        %v2163 = vpop.f32.mrb[0].mxu0
        %v2164 = vpop.f32.mrb[0].mxu0
        %v2165 = vadd.f32 %v2060, %v2164
        %v2166 = vpop.f32.mrb[0].mxu0
        %2167 = vmatprep.mubr.bf16.mxu0 %v1156
        %2168 = vmatmul.mubr.bf16.gmra.mrb[0].mxu0 %v1095
        %v2169 = vpop.f32.mrb[0].mxu0
        %v2170 = vadd.f32 %v2065, %v2169
        %v2171 = vpop.f32.mrb[0].mxu0
        %v2172 = vpop.f32.mrb[0].mxu0
        %v2173 = vadd.f32 %v2068, %v2172
        %v2174 = vpop.f32.mrb[0].mxu0
        %2175 = vmatprep.mubr.bf16.mxu0 %v1160
        %2176 = vmatmul.mubr.bf16.gmra.mrb[0].mxu0 %v1097
        %v2177 = vpop.f32.mrb[0].mxu0
        %v2178 = vadd.f32 %v2073, %v2177
        %v2179 = vpop.f32.mrb[0].mxu0
        %v2180 = vpop.f32.mrb[0].mxu0
        %v2181 = vadd.f32 %v2076, %v2180
        %v2182 = vpop.f32.mrb[0].mxu0
        %2183 = vmatprep.mubr.bf16.mxu0 %v1164
        %2184 = vmatmul.mubr.bf16.gmra.mrb[0].mxu0 %v1099
        %v2185 = vpop.f32.mrb[0].mxu0
        %v2186 = vadd.f32 %v2081, %v2185
        %v2187 = vpop.f32.mrb[0].mxu0
        %v2188 = vpop.f32.mrb[0].mxu0
        %v2189 = vadd.f32 %v2084, %v2188
        %v2190 = vpop.f32.mrb[0].mxu0
        %2191 = vmatprep.mubr.bf16.mxu0 %v1168
        %2192 = vmatmul.mubr.bf16.gmra.mrb[0].mxu0 %v1101
        %v2193 = vpop.f32.mrb[0].mxu0
        %v2194 = vadd.f32 %v2089, %v2193
        %v2195 = vpop.f32.mrb[0].mxu0
        %v2196 = vpop.f32.mrb[0].mxu0
        %v2197 = vadd.f32 %v2092, %v2196
        %v2198 = vpop.f32.mrb[0].mxu0
        %2199 = vmatprep.mubr.bf16.mxu0 %v1172
        %2200 = vmatmul.mubr.bf16.gmra.mrb[0].mxu0 %v1103
        %v2201 = vpop.f32.mrb[0].mxu0
        %v2202 = vadd.f32 %v2097, %v2201
        %v2203 = vpop.f32.mrb[0].mxu0
        %v2204 = vpop.f32.mrb[0].mxu0
        %v2205 = vadd.f32 %v2100, %v2204
        %v2206 = vpop.f32.mrb[0].mxu0
        %2207 = vmatprep.mubr.bf16.mxu0 %v1176
        %2208 = vmatmul.mubr.bf16.gmra.mrb[0].mxu0 %v1105
        %v2209 = vpop.f32.mrb[0].mxu0
        %v2210 = vadd.f32 %v2105, %v2209
        %v2211 = vpop.f32.mrb[0].mxu0
        %v2212 = vpop.f32.mrb[0].mxu0
        %v2213 = vadd.f32 %v2108, %v2212
        %v2214 = vpop.f32.mrb[0].mxu0
        %2215 = vmatprep.mubr.bf16.mxu0 %v1185
        %2216 = vmatmul.mubr.bf16.gmra.mrb[0].mxu0 %v1131
        %v2217 = vpop.f32.mrb[0].mxu0
        %v2218 = vadd.f32 %v2113, %v2217
        %v2219 = vpop.f32.mrb[0].mxu0
        %v2220 = vpop.f32.mrb[0].mxu0
        %v2221 = vadd.f32 %v2116, %v2220
        %v2222 = vpop.f32.mrb[0].mxu0
        %2223 = vmatprep.mubr.bf16.mxu0 %v1194
        %2224 = vmatmul.mubr.bf16.gmra.mrb[0].mxu0 %v1133
        %v2225 = vpop.f32.mrb[0].mxu0
        %v2226 = vadd.f32 %v2121, %v2225
        %v2227 = vpop.f32.mrb[0].mxu0
        %v2228 = vpop.f32.mrb[0].mxu0
        %v2229 = vadd.f32 %v2124, %v2228
        %v2230 = vpop.f32.mrb[0].mxu0
        %2231 = vdwg.mxu0
        %2232 = vmatprep.subr.bf16.mxu0 0
        %2233 = vmatpush1.bf16.msra.mxu0 %v1732
        %2234 = vmatprep.subr.bf16.mxu0 0
        %2235 = vmatpush1.bf16.msra.mxu0 %v1733
        %2236 = vmatprep.subr.bf16.mxu0 0
        %2237 = vmatpush1.bf16.msra.mxu0 %v1734
        %2238 = vmatprep.subr.bf16.mxu0 0
        %2239 = vmatpush1.bf16.msra.mxu0 %v1735
        %2240 = vmatprep.subr.bf16.mxu0 0
        %2241 = vmatpush1.bf16.msra.mxu0 %v1736
        %2242 = vmatprep.subr.bf16.mxu0 0
        %2243 = vmatpush1.bf16.msra.mxu0 %v1737
        %2244 = vmatprep.subr.bf16.mxu0 0
        %2245 = vmatpush1.bf16.msra.mxu0 %v1738
        %2246 = vmatprep.subr.bf16.mxu0 0
        %2247 = vmatpush1.bf16.msra.mxu0 %v1739
        %2248 = vmatprep.subr.bf16.mxu0 0
        %2249 = vmatpush1.bf16.msra.mxu0 0
        %2250 = vmatprep.subr.bf16.mxu0 0
        %2251 = vmatpush1.bf16.msra.mxu0 0
        %2252 = vmatprep.subr.bf16.mxu0 0
        %2253 = vmatpush1.bf16.msra.mxu0 0
        %2254 = vmatprep.subr.bf16.mxu0 0
        %2255 = vmatpush1.bf16.msra.mxu0 0
        %2256 = vmatprep.subr.bf16.mxu0 0
        %2257 = vmatpush1.bf16.msra.mxu0 0
        %2258 = vmatprep.subr.bf16.mxu0 0
        %2259 = vmatpush1.bf16.msra.mxu0 0
        %2260 = vmatprep.subr.bf16.mxu0 0
        %2261 = vmatpush1.bf16.msra.mxu0 0
        %2262 = vmatprep.subr.bf16.mxu0 0
        %2263 = vmatpush1.bf16.msra.mxu0 0
        %2264 = vmatprep.mubr.bf16.mxu0 0
        %2265 = vmatmul.mubr.bf16.gmra.mrb[0].mxu0 %v1210
        %v2266 = vpop.f32.mrb[0].mxu0
        %v2267 = vadd.f32 %v2162, %v2266
        %v2268 = vpop.f32.mrb[0].mxu0
        %v2269 = vpop.f32.mrb[0].mxu0
        %v2270 = vadd.f32 %v2165, %v2269
        %v2271 = vpop.f32.mrb[0].mxu0
        %2272 = vmatprep.mubr.bf16.mxu0 0
        %2273 = vmatmul.mubr.bf16.gmra.mrb[0].mxu0 %v1212
        %v2274 = vpop.f32.mrb[0].mxu0
        %v2275 = vadd.f32 %v2170, %v2274
        %v2276 = vpop.f32.mrb[0].mxu0
        %v2277 = vpop.f32.mrb[0].mxu0
        %v2278 = vadd.f32 %v2173, %v2277
        %v2279 = vpop.f32.mrb[0].mxu0
        %2280 = vmatprep.mubr.bf16.mxu0 0
        %2281 = vmatmul.mubr.bf16.gmra.mrb[0].mxu0 %v1214
        %v2282 = vpop.f32.mrb[0].mxu0
        %v2283 = vadd.f32 %v2178, %v2282
        %v2284 = vpop.f32.mrb[0].mxu0
        %v2285 = vpop.f32.mrb[0].mxu0
        %v2286 = vadd.f32 %v2181, %v2285
        %v2287 = vpop.f32.mrb[0].mxu0
        %2288 = vmatprep.mubr.bf16.mxu0 0
        %2289 = vmatmul.mubr.bf16.gmra.mrb[0].mxu0 %v1216
        %v2290 = vpop.f32.mrb[0].mxu0
        %v2291 = vadd.f32 %v2186, %v2290
        %v2292 = vpop.f32.mrb[0].mxu0
        %v2293 = vpop.f32.mrb[0].mxu0
        %v2294 = vadd.f32 %v2189, %v2293
        %v2295 = vpop.f32.mrb[0].mxu0
        %2296 = vmatprep.mubr.bf16.mxu0 0
        %2297 = vmatmul.mubr.bf16.gmra.mrb[0].mxu0 %v1218
        %v2298 = vpop.f32.mrb[0].mxu0
        %v2299 = vadd.f32 %v2194, %v2298
        %v2300 = vpop.f32.mrb[0].mxu0
        %v2301 = vpop.f32.mrb[0].mxu0
        %v2302 = vadd.f32 %v2197, %v2301
        %v2303 = vpop.f32.mrb[0].mxu0
        %2304 = vmatprep.mubr.bf16.mxu0 0
        %2305 = vmatmul.mubr.bf16.gmra.mrb[0].mxu0 %v1220
        %v2306 = vpop.f32.mrb[0].mxu0
        %v2307 = vadd.f32 %v2202, %v2306
        %v2308 = vpop.f32.mrb[0].mxu0
        %v2309 = vpop.f32.mrb[0].mxu0
        %v2310 = vadd.f32 %v2205, %v2309
        %v2311 = vpop.f32.mrb[0].mxu0
        %2312 = vmatprep.mubr.bf16.mxu0 0
        %2313 = vmatmul.mubr.bf16.gmra.mrb[0].mxu0 %v1222
        %v2314 = vpop.f32.mrb[0].mxu0
        %v2315 = vadd.f32 %v2210, %v2314
        %v2316 = vpop.f32.mrb[0].mxu0
        %v2317 = vpop.f32.mrb[0].mxu0
        %v2318 = vadd.f32 %v2213, %v2317
        %v2319 = vpop.f32.mrb[0].mxu0
        %2320 = vmatprep.mubr.bf16.mxu0 0
        %2321 = vmatmul.mubr.bf16.gmra.mrb[0].mxu0 %v1224
        %v2322 = vpop.f32.mrb[0].mxu0
        %v2323 = vadd.f32 %v2218, %v2322
        %v2324 = vpop.f32.mrb[0].mxu0
        %v2325 = vpop.f32.mrb[0].mxu0
        %v2326 = vadd.f32 %v2221, %v2325
        %v2327 = vpop.f32.mrb[0].mxu0
        %2328 = vmatprep.mubr.bf16.mxu0 0
        %2329 = vmatmul.mubr.bf16.gmra.mrb[0].mxu0 %v1226
        %v2330 = vpop.f32.mrb[0].mxu0
        %v2331 = vadd.f32 %v2226, %v2330
        %v2332 = vpop.f32.mrb[0].mxu0
        %v2333 = vpop.f32.mrb[0].mxu0
        %v2334 = vadd.f32 %v2229, %v2333
        %v2335 = vpop.f32.mrb[0].mxu0
        %2336 = vdwg.mxu0
        %vm2340 = vcmask 1045504
        %v2341 = vrot.slane %v2275, 2
        %v2342 = vrot.slane %v2278, 2
        %v2343 = vsel %vm2340, %v2341, %v2342
        %v2344 = vrot.slane %v2283, 2
        %v2345 = vsel %vm2340, %v2342, %v2344
        %vm2350 = vcmask 1043456
        %v2351 = vrot.slane %v2283, 4
        %v2352 = vrot.slane %v2286, 4
        %v2353 = vsel %vm2350, %v2351, %v2352
        %v2354 = vrot.slane %v2291, 4
        %v2355 = vsel %vm2350, %v2352, %v2354
        %vm2360 = vcmask 1041408
        %v2361 = vrot.slane %v2291, 6
        %v2362 = vrot.slane %v2294, 6
        %v2363 = vsel %vm2360, %v2361, %v2362
        %v2364 = vrot.slane %v2299, 6
        %v2365 = vsel %vm2360, %v2362, %v2364
        %v2371 = vrot.slane %v2310, 2
        %v2372 = vrot.slane %v2315, 2
        %v2373 = vsel %vm2340, %v2371, %v2372
        %v2374 = vrot.slane %v2318, 2
        %v2375 = vsel %vm2340, %v2372, %v2374
        %v2380 = vrot.slane %v2318, 4
        %v2381 = vrot.slane %v2323, 4
        %v2382 = vsel %vm2350, %v2380, %v2381
        %v2383 = vrot.slane %v2326, 4
        %v2384 = vsel %vm2350, %v2381, %v2383
        %v2389 = vrot.slane %v2326, 6
        %v2390 = vrot.slane %v2331, 6
        %v2391 = vsel %vm2360, %v2389, %v2390
        %v2392 = vrot.slane %v2334, 6
        %v2393 = vsel %vm2360, %v2390, %v2392
        %v2396 = vld [vmem:[%s2] sm:$0x1]
        %v2398 = vlaneseq
        %v2399 = vshrl.u32 %v2398, 7
        %v2400 = vsub.s32 0, %v2399
        %v2401 = vrot.slane %v2396, %v2400
        %v2403 = vmul.f32 %v2267, %v2401
        %v2404 = vmul.f32 %v2270, %v2401
        %v2405 = vmul.f32 %v2343, %v2401
        %v2406 = vmul.f32 %v2345, %v2401
        %v2407 = vmul.f32 %v2353, %v2401
        %v2408 = vmul.f32 %v2355, %v2401
        %v2409 = vmul.f32 %v2363, %v2401
        %v2410 = vmul.f32 %v2365, %v2401
        %v2411 = vmul.f32 %v2302, %v2401
        %v2412 = vmul.f32 %v2307, %v2401
        %v2413 = vmul.f32 %v2373, %v2401
        %v2414 = vmul.f32 %v2375, %v2401
        %v2415 = vmul.f32 %v2382, %v2401
        %v2416 = vmul.f32 %v2384, %v2401
        %v2417 = vmul.f32 %v2391, %v2401
        %v2418 = vmul.f32 %v2393, %v2401
        %v2419 = vld [vmem:[%s3] sm:$0x1]
        %v2421 = vlaneseq
        %v2422 = vshrl.u32 %v2421, 7
        %v2423 = vsub.s32 0, %v2422
        %v2424 = vrot.slane %v2419, %v2423
        %v2426 = vadd.f32 %v2403, %v2424
        %v2427 = vadd.f32 %v2404, %v2424
        %v2428 = vadd.f32 %v2405, %v2424
        %v2429 = vadd.f32 %v2406, %v2424
        %v2430 = vadd.f32 %v2407, %v2424
        %v2431 = vadd.f32 %v2408, %v2424
        %v2432 = vadd.f32 %v2409, %v2424
        %v2433 = vadd.f32 %v2410, %v2424
        %v2434 = vadd.f32 %v2411, %v2424
        %v2435 = vadd.f32 %v2412, %v2424
        %v2436 = vadd.f32 %v2413, %v2424
        %v2437 = vadd.f32 %v2414, %v2424
        %v2438 = vadd.f32 %v2415, %v2424
        %v2439 = vadd.f32 %v2416, %v2424
        %v2440 = vadd.f32 %v2417, %v2424
        %v2441 = vadd.f32 %v2418, %v2424
        %v2442 = vmax.f32 %v2426, 0.0
        %v2443 = vmax.f32 %v2427, 0.0
        %v2444 = vmax.f32 %v2428, 0.0
        %v2445 = vmax.f32 %v2429, 0.0
        %v2446 = vmax.f32 %v2430, 0.0
        %v2447 = vmax.f32 %v2431, 0.0
        %v2448 = vmax.f32 %v2432, 0.0
        %v2449 = vmax.f32 %v2433, 0.0
        %v2450 = vmax.f32 %v2434, 0.0
        %v2451 = vmax.f32 %v2435, 0.0
        %v2452 = vmax.f32 %v2436, 0.0
        %v2453 = vmax.f32 %v2437, 0.0
        %v2454 = vmax.f32 %v2438, 0.0
        %v2455 = vmax.f32 %v2439, 0.0
        %v2456 = vmax.f32 %v2440, 0.0
        %v2457 = vmax.f32 %v2441, 0.0
        %v2458 = vpack.c.bf16 %v2443, %v2442
        %v2459 = vpack.c.bf16 %v2445, %v2444
        %v2460 = vpack.c.bf16 %v2447, %v2446
        %v2461 = vpack.c.bf16 %v2449, %v2448
        %v2462 = vpack.c.bf16 %v2451, %v2450
        %v2463 = vpack.c.bf16 %v2453, %v2452
        %v2464 = vpack.c.bf16 %v2455, %v2454
        %v2465 = vpack.c.bf16 %v2457, %v2456
        %v2466 = vld [vmem:[%s4] sm:$0xf]
        %v2467 = vld [vmem:[%s4 + $0x4] sm:$0xf]
        %v2468 = vld [vmem:[%s4 + $0x8] sm:$0xf]
        %v2469 = vld [vmem:[%s4 + $0xc] sm:$0xf]
        %v2470 = vld [vmem:[%s4 + $0x10] sm:$0xf]
        %v2471 = vld [vmem:[%s4 + $0x14] sm:$0xf]
        %v2472 = vld [vmem:[%s4 + $0x18] sm:$0xf]
        %v2473 = vld [vmem:[%s4 + $0x1c] sm:$0xf]
        %v2474 = vld [vmem:[%s4 + $0x20] sm:$0xf]
        %v2475 = vld [vmem:[%s4 + $0x24] sm:$0xf]
        %v2476 = vld [vmem:[%s4 + $0x28] sm:$0xf]
        %v2477 = vld [vmem:[%s4 + $0x2c] sm:$0xf]
        %v2478 = vld [vmem:[%s4 + $0x30] sm:$0xf]
        %v2479 = vld [vmem:[%s4 + $0x34] sm:$0xf]
        %v2480 = vld [vmem:[%s4 + $0x38] sm:$0xf]
        %v2481 = vld [vmem:[%s4 + $0x3c] sm:$0xf]
        %v2482 = vld [vmem:[%s313] sm:$0xff]
        %v2483 = vld [vmem:[%s313 + $0x8] sm:$0xff]
        %v2484 = vld [vmem:[%s313 + $0x10] sm:$0xff]
        %v2485 = vld [vmem:[%s313 + $0x18] sm:$0xff]
        %v2486 = vld [vmem:[%s313 + $0x20] sm:$0xff]
        %v2487 = vld [vmem:[%s313 + $0x28] sm:$0xff]
        %v2488 = vld [vmem:[%s313 + $0x30] sm:$0xff]
        %v2489 = vld [vmem:[%s313 + $0x38] sm:$0xff]
        %v2490 = vld [vmem:[%s313 + $0x40] sm:$0xff]
        %v2491 = vld [vmem:[%s313 + $0x48] sm:$0xff]
        %v2492 = vld [vmem:[%s313 + $0x50] sm:$0xff]
        %v2493 = vld [vmem:[%s313 + $0x58] sm:$0xff]
        %v2494 = vld [vmem:[%s313 + $0x60] sm:$0xff]
        %v2495 = vld [vmem:[%s313 + $0x68] sm:$0xff]
        %v2496 = vld [vmem:[%s313 + $0x70] sm:$0xff]
        %v2497 = vld [vmem:[%s313 + $0x78] sm:$0xff]
        %v2514 = vunpack.c.l.b16 %v2466
        %v2515 = vunpack.c.l.b16 %v2467
        %v2516 = vunpack.c.l.b16 %v2468
        %v2517 = vunpack.c.l.b16 %v2469
        %v2518 = vunpack.c.l.b16 %v2470
        %v2519 = vunpack.c.l.b16 %v2471
        %v2520 = vunpack.c.l.b16 %v2472
        %v2521 = vunpack.c.l.b16 %v2473
        %v2522 = vunpack.c.l.b16 %v2474
        %v2523 = vunpack.c.l.b16 %v2475
        %v2524 = vunpack.c.l.b16 %v2476
        %v2525 = vunpack.c.l.b16 %v2477
        %v2526 = vunpack.c.l.b16 %v2478
        %v2527 = vunpack.c.l.b16 %v2479
        %v2528 = vunpack.c.l.b16 %v2480
        %v2529 = vunpack.c.l.b16 %v2481
        %v2530 = vpack.c.b16 %v2515, %v2514
        %v2531 = vpack.c.b16 %v2517, %v2516
        %v2532 = vpack.c.b16 %v2519, %v2518
        %v2533 = vpack.c.b16 %v2521, %v2520
        %v2534 = vpack.c.b16 %v2523, %v2522
        %v2535 = vpack.c.b16 %v2525, %v2524
        %v2536 = vpack.c.b16 %v2527, %v2526
        %v2537 = vpack.c.b16 %v2529, %v2528
        %2546 = vmatprep.subr.bf16.mxu0 0
        %2547 = vmatpush1.bf16.msra.mxu0 %v2530
        %2548 = vmatprep.subr.bf16.mxu0 0
        %2549 = vmatpush1.bf16.msra.mxu0 %v2531
        %2550 = vmatprep.subr.bf16.mxu0 0
        %2551 = vmatpush1.bf16.msra.mxu0 %v2532
        %2552 = vmatprep.subr.bf16.mxu0 0
        %2553 = vmatpush1.bf16.msra.mxu0 %v2533
        %2554 = vmatprep.subr.bf16.mxu0 0
        %2555 = vmatpush1.bf16.msra.mxu0 %v2534
        %2556 = vmatprep.subr.bf16.mxu0 0
        %2557 = vmatpush1.bf16.msra.mxu0 %v2535
        %2558 = vmatprep.subr.bf16.mxu0 0
        %2559 = vmatpush1.bf16.msra.mxu0 %v2536
        %2560 = vmatprep.subr.bf16.mxu0 0
        %2561 = vmatpush1.bf16.msra.mxu0 %v2537
        %2562 = vmatprep.subr.bf16.mxu0 0
        %2563 = vmatpush1.bf16.msra.mxu0 0
        %2564 = vmatprep.subr.bf16.mxu0 0
        %2565 = vmatpush1.bf16.msra.mxu0 0
        %2566 = vmatprep.subr.bf16.mxu0 0
        %2567 = vmatpush1.bf16.msra.mxu0 0
        %2568 = vmatprep.subr.bf16.mxu0 0
        %2569 = vmatpush1.bf16.msra.mxu0 0
        %2570 = vmatprep.subr.bf16.mxu0 0
        %2571 = vmatpush1.bf16.msra.mxu0 0
        %2572 = vmatprep.subr.bf16.mxu0 0
        %2573 = vmatpush1.bf16.msra.mxu0 0
        %2574 = vmatprep.subr.bf16.mxu0 0
        %2575 = vmatpush1.bf16.msra.mxu0 0
        %2576 = vmatprep.subr.bf16.mxu0 0
        %2577 = vmatpush1.bf16.msra.mxu0 0
        %2578 = vmatprep.mubr.bf16.mxu0 0
        %2579 = vmatmul.mubr.bf16.gmra.mrb[0].mxu0 %v2458
        %v2580 = vpop.f32.mrb[0].mxu0
        %v2581 = vadd.f32 %v2482, %v2580
        %v2582 = vpop.f32.mrb[0].mxu0
        %v2583 = vpop.f32.mrb[0].mxu0
        %v2584 = vadd.f32 %v2483, %v2583
        %v2585 = vpop.f32.mrb[0].mxu0
        %2586 = vmatprep.mubr.bf16.mxu0 0
        %2587 = vmatmul.mubr.bf16.gmra.mrb[0].mxu0 %v2459
        %v2588 = vpop.f32.mrb[0].mxu0
        %v2589 = vadd.f32 %v2484, %v2588
        %v2590 = vpop.f32.mrb[0].mxu0
        %v2591 = vpop.f32.mrb[0].mxu0
        %v2592 = vadd.f32 %v2485, %v2591
        %v2593 = vpop.f32.mrb[0].mxu0
        %2594 = vmatprep.mubr.bf16.mxu0 0
        %2595 = vmatmul.mubr.bf16.gmra.mrb[0].mxu0 %v2460
        %v2596 = vpop.f32.mrb[0].mxu0
        %v2597 = vadd.f32 %v2486, %v2596
        %v2598 = vpop.f32.mrb[0].mxu0
        %v2599 = vpop.f32.mrb[0].mxu0
        %v2600 = vadd.f32 %v2487, %v2599
        %v2601 = vpop.f32.mrb[0].mxu0
        %2602 = vmatprep.mubr.bf16.mxu0 0
        %2603 = vmatmul.mubr.bf16.gmra.mrb[0].mxu0 %v2461
        %v2604 = vpop.f32.mrb[0].mxu0
        %v2605 = vadd.f32 %v2488, %v2604
        %v2606 = vpop.f32.mrb[0].mxu0
        %v2607 = vpop.f32.mrb[0].mxu0
        %v2608 = vadd.f32 %v2489, %v2607
        %v2609 = vpop.f32.mrb[0].mxu0
        %2610 = vmatprep.mubr.bf16.mxu0 0
        %2611 = vmatmul.mubr.bf16.gmra.mrb[0].mxu0 %v2462
        %v2612 = vpop.f32.mrb[0].mxu0
        %v2613 = vadd.f32 %v2490, %v2612
        %v2614 = vpop.f32.mrb[0].mxu0
        %v2615 = vpop.f32.mrb[0].mxu0
        %v2616 = vadd.f32 %v2491, %v2615
        %v2617 = vpop.f32.mrb[0].mxu0
        %2618 = vmatprep.mubr.bf16.mxu0 0
        %2619 = vmatmul.mubr.bf16.gmra.mrb[0].mxu0 %v2463
        %v2620 = vpop.f32.mrb[0].mxu0
        %v2621 = vadd.f32 %v2492, %v2620
        %v2622 = vpop.f32.mrb[0].mxu0
        %v2623 = vpop.f32.mrb[0].mxu0
        %v2624 = vadd.f32 %v2493, %v2623
        %v2625 = vpop.f32.mrb[0].mxu0
        %2626 = vmatprep.mubr.bf16.mxu0 0
        %2627 = vmatmul.mubr.bf16.gmra.mrb[0].mxu0 %v2464
        %v2628 = vpop.f32.mrb[0].mxu0
        %v2629 = vadd.f32 %v2494, %v2628
        %v2630 = vpop.f32.mrb[0].mxu0
        %v2631 = vpop.f32.mrb[0].mxu0
        %v2632 = vadd.f32 %v2495, %v2631
        %v2633 = vpop.f32.mrb[0].mxu0
        %2634 = vmatprep.mubr.bf16.mxu0 0
        %2635 = vmatmul.mubr.bf16.gmra.mrb[0].mxu0 %v2465
        %v2636 = vpop.f32.mrb[0].mxu0
        %v2637 = vadd.f32 %v2496, %v2636
        %v2638 = vpop.f32.mrb[0].mxu0
        %v2639 = vpop.f32.mrb[0].mxu0
        %v2640 = vadd.f32 %v2497, %v2639
        %v2641 = vpop.f32.mrb[0].mxu0
        %2642 = vdwg.mxu0
        %vm2643 = vcmask 261120
        %2644 = vst.msk [vmem:[%s299] sm:$0xff] %vm2643, %v2581
        %2645 = vst.msk [vmem:[%s299 + $0x8] sm:$0xff] %vm2643, %v2584
        %2646 = vst.msk [vmem:[%s299 + $0x10] sm:$0xff] %vm2643, %v2589
        %2647 = vst.msk [vmem:[%s299 + $0x18] sm:$0xff] %vm2643, %v2592
        %2648 = vst.msk [vmem:[%s299 + $0x20] sm:$0xff] %vm2643, %v2597
        %2649 = vst.msk [vmem:[%s299 + $0x28] sm:$0xff] %vm2643, %v2600
        %2650 = vst.msk [vmem:[%s299 + $0x30] sm:$0xff] %vm2643, %v2605
        %2651 = vst.msk [vmem:[%s299 + $0x38] sm:$0xff] %vm2643, %v2608
        %2652 = vst.msk [vmem:[%s299 + $0x40] sm:$0xff] %vm2643, %v2613
        %2653 = vst.msk [vmem:[%s299 + $0x48] sm:$0xff] %vm2643, %v2616
        %2654 = vst.msk [vmem:[%s299 + $0x50] sm:$0xff] %vm2643, %v2621
        %2655 = vst.msk [vmem:[%s299 + $0x58] sm:$0xff] %vm2643, %v2624
        %2656 = vst.msk [vmem:[%s299 + $0x60] sm:$0xff] %vm2643, %v2629
        %2657 = vst.msk [vmem:[%s299 + $0x68] sm:$0xff] %vm2643, %v2632
        %2658 = vst.msk [vmem:[%s299 + $0x70] sm:$0xff] %vm2643, %v2637
        %2659 = vst.msk [vmem:[%s299 + $0x78] sm:$0xff] %vm2643, %v2640
        %s2660 = sand.u32 %s181, 1
        %s2661 = scalar_lea.sflag [#allocation5], %s2660
        %s2662 = sand.u32 %s181, 1
        %s2663 = smul.addr %s2662, 128
        %s2664 = scalar_lea.vmem [#allocation6], %s2663
        // Predicated region
        $region57: #{bottleneck_forward_nhwc.3} parent=43 // pred_check
          %p2665 = pneg %p191
        $region58: #{bottleneck_forward_nhwc.3} parent=43 // pred_check_branch
          %2667 = sbr.rel (%p2665) target = $region60
        $region59: #{bottleneck_forward_nhwc.3} parent=43 // pred_region
          %s2668 = smul.u32 16, %s26
          %s2670 = ssub.s32 2048, 2048
          %2671 = vsyncadd %s2661, %s2670
          %s2672 = smul.addr %s25, 32
          %s2673 = sadd.s32 %s2668, %s2672
          %s2674 = smul.addr %s2673, 128
          %s2675 = scalar_lea.hbm %s6, %s2674
          %s2676 = sshll.u32 %s2664, 4
          %s2677 = int_to_ptr.vmem [resolvable:$true] %s2676
          %2682 = dma.vmem_to_hbm [thread:$0]  %s2677, 2048, %s2675, %s2661, 128, 128, 8
        $region60: #{bottleneck_forward_nhwc.3} parent=43 // pred_fallthru
          _
      $region44: #{bottleneck_forward_nhwc.3} parent=5 // pred_fallthru
        _
      %p2683 = scmp.le.s32.totalorder 2, %s16
      // Predicated region
      $region61: #{bottleneck_forward_nhwc.3} parent=5 // pred_check
        %p2684 = pneg %p2683
      $region62: #{bottleneck_forward_nhwc.3} parent=5 // pred_check_branch
        %2686 = sbr.rel (%p2684) target = $region64
      $region63: #{bottleneck_forward_nhwc.3} parent=5 // pred_region
        %s2687 = ssub.s32 %s16, 2
        // Predicated region
        $region65: #{bottleneck_forward_nhwc.3} parent=63 // pred_check
          %p2688 = pneg %p197
        $region66: #{bottleneck_forward_nhwc.3} parent=63 // pred_check_branch
          %2690 = sbr.rel (%p2688) target = $region68
        $region67: #{bottleneck_forward_nhwc.3} parent=63 // pred_region
          %s2691 = sand.u32 %s182, 1
          %s2692 = scalar_lea.sflag [#allocation5], %s2691
          %s2693 = sand.u32 %s182, 1
          %s2694 = smul.addr %s2693, 128
          %s2695 = scalar_lea.vmem [#allocation6], %s2694
          %2696 = dma.done %s2692, 2048
        $region68: #{bottleneck_forward_nhwc.3} parent=63 // pred_fallthru
          _
      $region64: #{bottleneck_forward_nhwc.3} parent=5 // pred_fallthru
        _
    $region6: #{bottleneck_forward_nhwc.3} parent=1 // loop_footer
      %s20 = sadd.s32 1, %s16
    $region7: #{bottleneck_forward_nhwc.3} parent=1 // loop_footer_branch
      %15 = sbr.rel target = $region3
    $region8: #{bottleneck_forward_nhwc.3} parent=1 // loop_exit
      _
    %2697 = vsyncpa [#allocation4], 1
    %s2698 = scalar_lea.sflag [#allocation4], 1
    %2699 = vsyncpa %s2698, 1
    %2700 = vsyncpa [#allocation5], 1
    %s2701 = scalar_lea.sflag [#allocation5], 1
    %2702 = vsyncpa %s2701, 1

</llo_original>
